<compile_context>
chip_gen: v5e
topology: v5e:2x2
jax: 0.10.0
libtpu: 0.0.40
codegen_flags: <defaults>
</compile_context>

<pallas_src>
import numpy as np

import jax
import jax.numpy as jnp
from jax.experimental import pallas as pl
from jax.experimental.pallas import tpu as pltpu


# -----------------------------------------------------------------------------
# Static per-image geometry (flattened zero-padded row layout, 8-aligned)
# -----------------------------------------------------------------------------
def _round8(n):
    return ((n + 7) // 8) * 8


def _geom(H):
    """Geometry of one 3x3/pad-1 conv layer on a square HxH image (per image).

    Layout: row(ip, jp) = ip*Wp + jp for the zero-padded (Wp x Wp) image,
    channels on lanes.  Conv output row r = i*Wp + j; taps are r + kh*Wp + kw.
    """
    Wp = H + 2
    M = _round8((H - 1) * (Wp + 1) + 1)      # conv-output rows computed
    rows = _round8(M + 2 * Wp + 2)           # padded input-buffer rows (>= taps)
    return dict(H=H, Wp=Wp, M=M, rows=rows, L=M - Wp - 1)


def _pool_T(gs, gd):
    """Per-image 0/1 matrix scattering 2x2/stride-2 blended rows into the next
    zero-padded buffer (also writes the zero padding)."""
    Hn, Wps, Wpd = gd["H"], gs["Wp"], gd["Wp"]
    t = np.zeros((gd["rows"], gs["L"]), np.float32)
    for i in range(Hn):
        for j in range(Hn):
            t[(i + 1) * Wpd + (j + 1), (2 * i) * Wps + (2 * j)] = 1.0
    return t


def _same_T(gs, gd):
    """Per-image 0/1 matrix scattering valid conv rows into the next padded buffer."""
    H, Wps, Wpd = gs["H"], gs["Wp"], gd["Wp"]
    t = np.zeros((gd["rows"], gs["M"]), np.float32)
    for i in range(H):
        for j in range(H):
            t[(i + 1) * Wpd + (j + 1), i * Wps + j] = 1.0
    return t


def _avg_vec(g):
    """(1, M) vector implementing AdaptiveAvgPool2d((1,1)) over the valid rows."""
    H, Wp = g["H"], g["Wp"]
    a = np.zeros((1, g["M"]), np.float32)
    for i in range(H):
        for j in range(H):
            a[0, i * Wp + j] = 1.0 / (H * H)
    return a


# -----------------------------------------------------------------------------
# Fused per-image kernel
# -----------------------------------------------------------------------------
def _make_kernel(g1, g2, g3, g4, g5, latent):

    def conv_gelu(p_ref, w_ref, b_ref, g):
        # 3x3 conv (pad=1, stride=1) as ONE im2col matmul: 9 shifted row-slices
        # of the bf16 padded buffer concatenated on lanes -> (M, 9*Cin), times
        # the folded-BN weights (9*Cin, Cout); f32 accumulation, bias, GELU.
        Wp, M = g["Wp"], g["M"]
        col = jnp.concatenate(
            [p_ref[pl.ds(kh * Wp + kw, M), :] for kh in range(3) for kw in range(3)],
            axis=-1)
        acc = jnp.dot(col, w_ref[...], preferred_element_type=jnp.float32)
        return jax.nn.gelu(acc + b_ref[...], approximate=True)

    def mixpool(y, g, alpha):
        # alpha*max + (1-alpha)*avg over the 2x2 window taps
        # (row offsets {0, 1, Wp, Wp+1}); alpha == 1.0 specialised to pure max.
        Wp, L = g["Wp"], g["L"]
        t00 = y[0:L]
        t01 = y[1:1 + L]
        t10 = y[Wp:Wp + L]
        t11 = y[Wp + 1:Wp + 1 + L]
        mx = jnp.maximum(jnp.maximum(t00, t01), jnp.maximum(t10, t11))
        if alpha == 1.0:
            return mx
        av = (t00 + t01 + t10 + t11) * 0.25
        return alpha * mx + (1.0 - alpha) * av

    def transfer(t_ref, y, p_ref):
        # Scatter rows of y into the next layer's zero-padded bf16 buffer with
        # a small per-image 0/1 selection matmul (also writes the zero padding,
        # so every row the next conv reads is initialised).
        p_ref[...] = jnp.dot(t_ref[...], y.astype(jnp.bfloat16),
                             preferred_element_type=jnp.float32).astype(p_ref.dtype)

    def kernel(p1, w1, b1, t1, w2, b2, t2, w3, b3, t3, w4, b4, t4, w5, b5,
               avg, wh, bh,
               mu_ref, lv_ref,
               p2, p3, p4, p5):
        # GACBlock1 -> MixPool(alpha=1.0)
        transfer(t1, mixpool(conv_gelu(p1, w1, b1, g1), g1, 1.0), p2)
        # GACBlock2 (no pool)
        transfer(t2, conv_gelu(p2, w2, b2, g2), p3)
        # GACBlock3 -> MixPool(alpha=0.6)
        transfer(t3, mixpool(conv_gelu(p3, w3, b3, g3), g3, 0.6), p4)
        # GACBlock4 -> MixPool(alpha=0.2)
        transfer(t4, mixpool(conv_gelu(p4, w4, b4, g4), g4, 0.2), p5)
        # GACBlock5 -> AdaptiveAvgPool2d((1,1)) -> fused [fc_mu || fc_logvar]
        y5 = conv_gelu(p5, w5, b5, g5)
        pooled = jnp.dot(avg[...], y5.astype(jnp.bfloat16),
                         preferred_element_type=jnp.float32)          # (1, 16c)
        head = jnp.dot(pooled.astype(jnp.bfloat16), wh[...],
                       preferred_element_type=jnp.float32) + bh[...]  # (1, 2*latent)
        mu_ref[...] = head[:, :latent].reshape(mu_ref.shape)
        lv_ref[...] = head[:, latent:].reshape(lv_ref.shape)

    return kernel


# -----------------------------------------------------------------------------
# Forward (single pallas_call, grid over images)
# -----------------------------------------------------------------------------
def gmac_encoder_forward(x_nchw, folded):
    """x_nchw: (B, colour_channels, H, H) -> (mu, logvar), each (B, latent_dims)."""
    B, C0, H0, W0 = x_nchw.shape
    assert H0 == W0 and H0 % 8 == 0, "spatial size must be square, divisible by 8"

    g1 = _geom(H0)
    g2 = _geom(H0 // 2)
    g3 = _geom(H0 // 2)
    g4 = _geom(H0 // 4)
    g5 = _geom(H0 // 8)
    geoms = [g1, g2, g3, g4, g5]

    couts = [folded[f"w{l}"].shape[1] for l in range(1, 6)]
    cins = [C0] + couts[:-1]
    two_latent = folded["wh"].shape[1]
    latent = two_latent // 2

    # Layer-1 input in the per-image flattened padded-rows layout, bf16.
    Wp1, rows1 = g1["Wp"], g1["rows"]
    x = jnp.transpose(x_nchw, (0, 2, 3, 1)).astype(jnp.float32)        # NHWC
    xp = jnp.pad(x, ((0, 0), (1, 1), (1, 1), (0, 0)))
    p1 = xp.reshape(B, Wp1 * Wp1, C0)
    p1 = jnp.pad(p1, ((0, 0), (0, rows1 - Wp1 * Wp1), (0, 0)))
    p1 = p1.reshape(B * rows1, C0).astype(jnp.bfloat16)

    # Small per-image selection / pooling matrices (baked at trace time).
    t1 = jnp.asarray(_pool_T(g1, g2), jnp.bfloat16)
    t2 = jnp.asarray(_same_T(g2, g3), jnp.bfloat16)
    t3 = jnp.asarray(_pool_T(g3, g4), jnp.bfloat16)
    t4 = jnp.asarray(_pool_T(g4, g5), jnp.bfloat16)
    avg = jnp.asarray(_avg_vec(g5), jnp.bfloat16)

    operands = (p1, folded["w1"], folded["b1"], t1,
                folded["w2"], folded["b2"], t2,
                folded["w3"], folded["b3"], t3,
                folded["w4"], folded["b4"], t4,
                folded["w5"], folded["b5"],
                avg, folded["wh"], folded["bh"])

    # Per-image block for p1; all weights / transfer matrices are resident
    # (block index constant across the grid -> DMA'd once).
    in_specs = [pl.BlockSpec((rows1, C0), lambda b: (b, 0))]
    in_specs += [pl.BlockSpec(a.shape, lambda b: (0, 0)) for a in operands[1:]]

    out_shape = (jax.ShapeDtypeStruct((B, 1, latent), jnp.float32),
                 jax.ShapeDtypeStruct((B, 1, latent), jnp.float32))
    out_specs = (pl.BlockSpec((1, 1, latent), lambda b: (b, 0, 0)),
                 pl.BlockSpec((1, 1, latent), lambda b: (b, 0, 0)))

    # bf16 inter-layer padded buffers (per image, fully rewritten every step).
    scratch_shapes = [
        pltpu.VMEM((g2["rows"], couts[0]), jnp.bfloat16),   # p2
        pltpu.VMEM((g3["rows"], couts[1]), jnp.bfloat16),   # p3
        pltpu.VMEM((g4["rows"], couts[2]), jnp.bfloat16),   # p4
        pltpu.VMEM((g5["rows"], couts[3]), jnp.bfloat16),   # p5
    ]

    # Advisory cost estimate (per review): matmul flops + GELU transcendentals.
    def mm(m, k, n):
        return 2 * m * k * n
    flops = sum(mm(g["M"], 9 * ci, co) for g, ci, co in zip(geoms, cins, couts))
    for t, co in ((t1, couts[0]), (t2, couts[1]), (t3, couts[2]), (t4, couts[3])):
        flops += mm(t.shape[0], t.shape[1], co)
    flops += mm(1, g5["M"], couts[4]) + mm(1, couts[4], two_latent)
    flops *= B
    transcendentals = B * sum(g["M"] * co for g, co in zip(geoms, couts))
    bytes_accessed = sum(int(a.size) * a.dtype.itemsize for a in operands) \
        + 2 * B * latent * 4

    kernel = _make_kernel(g1, g2, g3, g4, g5, latent)
    grid_spec = pltpu.PrefetchScalarGridSpec(
        num_scalar_prefetch=0,
        grid=(B,),
        in_specs=in_specs,
        out_specs=out_specs,
        scratch_shapes=scratch_shapes)

    mu3, lv3 = pl.pallas_call(
        kernel,
        out_shape=out_shape,
        grid_spec=grid_spec,
        compiler_params=pltpu.CompilerParams(
            dimension_semantics=("parallel",),          # v7x: one image per core
            vmem_limit_bytes=8 * 1024 * 1024),
        cost_estimate=pl.CostEstimate(flops=int(flops),
                                      transcendentals=int(transcendentals),
                                      bytes_accessed=int(bytes_accessed)),
    )(*operands)
    return mu3.reshape(B, latent), lv3.reshape(B, latent)


# -----------------------------------------------------------------------------
# Parameter init (deterministic, synthetic) and one-time BN folding
# -----------------------------------------------------------------------------
def init_params(key, colour_channels, c, latent_dims):
    def conv_bn(key, cin, cout):
        k1, k2 = jax.random.split(key)
        bound = 1.0 / jnp.sqrt(cin * 9.0)
        w = jax.random.uniform(k1, (3, 3, cin, cout), jnp.float32, -bound, bound)
        b = jax.random.uniform(k2, (cout,), jnp.float32, -bound, bound)
        gamma = jnp.ones((cout,), jnp.float32)
        beta = jnp.zeros((cout,), jnp.float32)
        mean = jnp.zeros((cout,), jnp.float32)
        var = jnp.ones((cout,), jnp.float32)
        return (w, b, gamma, beta, mean, var)

    def linear(key, cin, cout):
        k1, k2 = jax.random.split(key)
        bound = 1.0 / jnp.sqrt(float(cin))
        w = jax.random.uniform(k1, (cin, cout), jnp.float32, -bound, bound)
        b = jax.random.uniform(k2, (cout,), jnp.float32, -bound, bound)
        return w, b

    keys = jax.random.split(key, 7)
    params = {
        "gac1": conv_bn(keys[0], colour_channels, c),
        "gac2": conv_bn(keys[1], c, c * 2),
        "gac3": conv_bn(keys[2], c * 2, c * 4),
        "gac4": conv_bn(keys[3], c * 4, c * 8),
        "gac5": conv_bn(keys[4], c * 8, c * 16),
    }
    params["fc_mu_w"], params["fc_mu_b"] = linear(keys[5], c * 16, latent_dims)
    params["fc_logvar_w"], params["fc_logvar_b"] = linear(keys[6], c * 16, latent_dims)
    return params


def fold_params(params, eps=1e-5):
    """Fold eval-mode BatchNorm into conv weights once; reshape for im2col;
    fuse the two FC heads; all MXU operands are bf16."""
    folded = {}
    for l in range(1, 6):
        w, b, gamma, beta, mean, var = params[f"gac{l}"]
        scale = gamma / jnp.sqrt(var + eps)
        cin, cout = w.shape[2], w.shape[3]
        w_f = (w * scale[None, None, None, :]).reshape(9 * cin, cout)    # im2col weights
        folded[f"w{l}"] = w_f.astype(jnp.bfloat16)
        folded[f"b{l}"] = ((b - mean) * scale + beta).reshape(1, cout).astype(jnp.float32)
    folded["wh"] = jnp.concatenate(
        [params["fc_mu_w"], params["fc_logvar_w"]], axis=1).astype(jnp.bfloat16)
    folded["bh"] = jnp.concatenate(
        [params["fc_mu_b"], params["fc_logvar_b"]]).reshape(1, -1).astype(jnp.float32)
    return folded


if __name__ == "__main__":
    colour_channels, c, latent_dims = 3, 4, 8
    encoder_out_size = c * 16   # present in __init__ signature; unused in forward

    key = jax.random.PRNGKey(0)
    kx, kp = jax.random.split(key)
    x = jax.random.normal(kx, (2, colour_channels, 16, 16), jnp.float32)  # NCHW
    params = init_params(kp, colour_channels, c, latent_dims)
    folded = fold_params(params)          # BN folding done once, outside the forward

    fwd = jax.jit(gmac_encoder_forward)
    mu, logvar = fwd(x, folded)
    jax.block_until_ready((mu, logvar))

    assert mu.shape == (2, latent_dims) and logvar.shape == (2, latent_dims)
    assert bool(jnp.all(jnp.isfinite(mu))) and bool(jnp.all(jnp.isfinite(logvar)))
    print("KERNEL_OK")
</pallas_src>

<mosaic_0001>
module attributes {stable_mosaic.version = 11 : i64} {
  func.func @kernel(%arg0: i32, %arg1: memref<328x3xbf16, #tpu.memory_space<vmem>>, %arg2: memref<27x4xbf16, #tpu.memory_space<vmem>>, %arg3: memref<1x4xf32, #tpu.memory_space<vmem>>, %arg4: memref<104x269xbf16, #tpu.memory_space<vmem>>, %arg5: memref<36x8xbf16, #tpu.memory_space<vmem>>, %arg6: memref<1x8xf32, #tpu.memory_space<vmem>>, %arg7: memref<104x80xbf16, #tpu.memory_space<vmem>>, %arg8: memref<72x16xbf16, #tpu.memory_space<vmem>>, %arg9: memref<1x16xf32, #tpu.memory_space<vmem>>, %arg10: memref<40x69xbf16, #tpu.memory_space<vmem>>, %arg11: memref<144x32xbf16, #tpu.memory_space<vmem>>, %arg12: memref<1x32xf32, #tpu.memory_space<vmem>>, %arg13: memref<24x17xbf16, #tpu.memory_space<vmem>>, %arg14: memref<288x64xbf16, #tpu.memory_space<vmem>>, %arg15: memref<1x64xf32, #tpu.memory_space<vmem>>, %arg16: memref<1x8xbf16, #tpu.memory_space<vmem>>, %arg17: memref<64x16xbf16, #tpu.memory_space<vmem>>, %arg18: memref<1x16xf32, #tpu.memory_space<vmem>>, %arg19: memref<1x1x8xf32, #tpu.memory_space<vmem>>, %arg20: memref<1x1x8xf32, #tpu.memory_space<vmem>>, %arg21: memref<104x4xbf16, #tpu.memory_space<vmem>>, %arg22: memref<104x8xbf16, #tpu.memory_space<vmem>>, %arg23: memref<40x16xbf16, #tpu.memory_space<vmem>>, %arg24: memref<24x32xbf16, #tpu.memory_space<vmem>>) attributes {dimension_semantics = [#tpu.dimension_semantics<parallel>], iteration_bounds = array<i64: 2>, scalar_prefetch = 0 : i64, scratch_operands = 4 : i64, tpu.core_type = #tpu.core_type<tc>, window_params = [{transform_indices = @transform_0, window_bounds = array<i64: 328, 3>}, {pipeline_mode = #tpu.pipeline_mode<synchronous>, transform_indices = @transform_1, window_bounds = array<i64: 27, 4>}, {pipeline_mode = #tpu.pipeline_mode<synchronous>, transform_indices = @transform_2, window_bounds = array<i64: 1, 4>}, {pipeline_mode = #tpu.pipeline_mode<synchronous>, transform_indices = @transform_3, window_bounds = array<i64: 104, 269>}, {pipeline_mode = #tpu.pipeline_mode<synchronous>, transform_indices = @transform_4, window_bounds = array<i64: 36, 8>}, {pipeline_mode = #tpu.pipeline_mode<synchronous>, transform_indices = @transform_5, window_bounds = array<i64: 1, 8>}, {pipeline_mode = #tpu.pipeline_mode<synchronous>, transform_indices = @transform_6, window_bounds = array<i64: 104, 80>}, {pipeline_mode = #tpu.pipeline_mode<synchronous>, transform_indices = @transform_7, window_bounds = array<i64: 72, 16>}, {pipeline_mode = #tpu.pipeline_mode<synchronous>, transform_indices = @transform_8, window_bounds = array<i64: 1, 16>}, {pipeline_mode = #tpu.pipeline_mode<synchronous>, transform_indices = @transform_9, window_bounds = array<i64: 40, 69>}, {pipeline_mode = #tpu.pipeline_mode<synchronous>, transform_indices = @transform_10, window_bounds = array<i64: 144, 32>}, {pipeline_mode = #tpu.pipeline_mode<synchronous>, transform_indices = @transform_11, window_bounds = array<i64: 1, 32>}, {pipeline_mode = #tpu.pipeline_mode<synchronous>, transform_indices = @transform_12, window_bounds = array<i64: 24, 17>}, {pipeline_mode = #tpu.pipeline_mode<synchronous>, transform_indices = @transform_13, window_bounds = array<i64: 288, 64>}, {pipeline_mode = #tpu.pipeline_mode<synchronous>, transform_indices = @transform_14, window_bounds = array<i64: 1, 64>}, {pipeline_mode = #tpu.pipeline_mode<synchronous>, transform_indices = @transform_15, window_bounds = array<i64: 1, 8>}, {pipeline_mode = #tpu.pipeline_mode<synchronous>, transform_indices = @transform_16, window_bounds = array<i64: 64, 16>}, {pipeline_mode = #tpu.pipeline_mode<synchronous>, transform_indices = @transform_17, window_bounds = array<i64: 1, 16>}, {transform_indices = @transform_18, window_bounds = array<i64: 1, 1, 8>}, {transform_indices = @transform_19, window_bounds = array<i64: 1, 1, 8>}]} {
    %c0 = arith.constant 0 : index
    %c0_0 = arith.constant 0 : index
    %0 = vector.load %arg1[%c0, %c0_0] : memref<328x3xbf16, #tpu.memory_space<vmem>>, vector<288x3xbf16>
    %c1 = arith.constant 1 : index
    %c0_1 = arith.constant 0 : index
    %1 = vector.load %arg1[%c1, %c0_1] : memref<328x3xbf16, #tpu.memory_space<vmem>>, vector<288x3xbf16>
    %c2 = arith.constant 2 : index
    %c0_2 = arith.constant 0 : index
    %2 = vector.load %arg1[%c2, %c0_2] : memref<328x3xbf16, #tpu.memory_space<vmem>>, vector<288x3xbf16>
    %c18 = arith.constant 18 : index
    %c0_3 = arith.constant 0 : index
    %3 = vector.load %arg1[%c18, %c0_3] : memref<328x3xbf16, #tpu.memory_space<vmem>>, vector<288x3xbf16>
    %c19 = arith.constant 19 : index
    %c0_4 = arith.constant 0 : index
    %4 = vector.load %arg1[%c19, %c0_4] : memref<328x3xbf16, #tpu.memory_space<vmem>>, vector<288x3xbf16>
    %c20 = arith.constant 20 : index
    %c0_5 = arith.constant 0 : index
    %5 = vector.load %arg1[%c20, %c0_5] : memref<328x3xbf16, #tpu.memory_space<vmem>>, vector<288x3xbf16>
    %c36 = arith.constant 36 : index
    %c0_6 = arith.constant 0 : index
    %6 = vector.load %arg1[%c36, %c0_6] : memref<328x3xbf16, #tpu.memory_space<vmem>>, vector<288x3xbf16>
    %c37 = arith.constant 37 : index
    %c0_7 = arith.constant 0 : index
    %7 = vector.load %arg1[%c37, %c0_7] : memref<328x3xbf16, #tpu.memory_space<vmem>>, vector<288x3xbf16>
    %c38 = arith.constant 38 : index
    %c0_8 = arith.constant 0 : index
    %8 = vector.load %arg1[%c38, %c0_8] : memref<328x3xbf16, #tpu.memory_space<vmem>>, vector<288x3xbf16>
    %9 = tpu.concatenate %0, %1, %2, %3, %4, %5, %6, %7, %8 in 1 : vector<288x3xbf16>, vector<288x3xbf16>, vector<288x3xbf16>, vector<288x3xbf16>, vector<288x3xbf16>, vector<288x3xbf16>, vector<288x3xbf16>, vector<288x3xbf16>, vector<288x3xbf16> -> vector<288x27xbf16>
    %c0_9 = arith.constant 0 : index
    %c0_10 = arith.constant 0 : index
    %10 = vector.load %arg2[%c0_9, %c0_10] : memref<27x4xbf16, #tpu.memory_space<vmem>>, vector<27x4xbf16>
    %cst = arith.constant dense<0.000000e+00> : vector<288x4xf32>
    %11 = tpu.matmul %9, %10, %cst {dimension_numbers = #tpu.dot_dimension_numbers<[1], [0], [0], [1], [0, 0, 1, 1], [], []>} : vector<288x27xbf16>, vector<27x4xbf16>, vector<288x4xf32> -> vector<288x4xf32>
    %c0_11 = arith.constant 0 : index
    %c0_12 = arith.constant 0 : index
    %12 = vector.load %arg3[%c0_11, %c0_12] : memref<1x4xf32, #tpu.memory_space<vmem>>, vector<1x4xf32>
    %13 = vector.broadcast %12 : vector<1x4xf32> to vector<288x4xf32>
    %14 = arith.addf %11, %13 : vector<288x4xf32>
    %15 = arith.mulf %14, %14 : vector<288x4xf32>
    %16 = arith.mulf %14, %15 : vector<288x4xf32>
    %cst_13 = arith.constant 4.471500e-02 : f32
    %17 = vector.broadcast %cst_13 : f32 to vector<288x4xf32>
    %18 = arith.mulf %17, %16 : vector<288x4xf32>
    %19 = arith.addf %14, %18 : vector<288x4xf32>
    %cst_14 = arith.constant 0.797884583 : f32
    %20 = vector.broadcast %cst_14 : f32 to vector<288x4xf32>
    %21 = arith.mulf %20, %19 : vector<288x4xf32>
    %22 = math.tanh %21 : vector<288x4xf32>
    %cst_15 = arith.constant 1.000000e+00 : f32
    %23 = vector.broadcast %cst_15 : f32 to vector<288x4xf32>
    %24 = arith.addf %23, %22 : vector<288x4xf32>
    %cst_16 = arith.constant 5.000000e-01 : f32
    %25 = vector.broadcast %cst_16 : f32 to vector<288x4xf32>
    %26 = arith.mulf %25, %24 : vector<288x4xf32>
    %27 = arith.mulf %14, %26 : vector<288x4xf32>
    %28 = vector.extract_strided_slice %27 {offsets = [0, 0], sizes = [269, 4], strides = [1, 1]} : vector<288x4xf32> to vector<269x4xf32>
    %29 = vector.extract_strided_slice %27 {offsets = [1, 0], sizes = [269, 4], strides = [1, 1]} : vector<288x4xf32> to vector<269x4xf32>
    %30 = vector.extract_strided_slice %27 {offsets = [18, 0], sizes = [269, 4], strides = [1, 1]} : vector<288x4xf32> to vector<269x4xf32>
    %31 = vector.extract_strided_slice %27 {offsets = [19, 0], sizes = [269, 4], strides = [1, 1]} : vector<288x4xf32> to vector<269x4xf32>
    %32 = arith.maximumf %28, %29 : vector<269x4xf32>
    %33 = arith.maximumf %30, %31 : vector<269x4xf32>
    %34 = arith.maximumf %32, %33 : vector<269x4xf32>
    %c0_17 = arith.constant 0 : index
    %c0_18 = arith.constant 0 : index
    %35 = vector.load %arg4[%c0_17, %c0_18] : memref<104x269xbf16, #tpu.memory_space<vmem>>, vector<104x269xbf16>
    %36 = arith.truncf %34 : vector<269x4xf32> to vector<269x4xbf16>
    %cst_19 = arith.constant dense<0.000000e+00> : vector<104x4xf32>
    %37 = tpu.matmul %35, %36, %cst_19 {dimension_numbers = #tpu.dot_dimension_numbers<[1], [0], [0], [1], [0, 0, 1, 1], [], []>} : vector<104x269xbf16>, vector<269x4xbf16>, vector<104x4xf32> -> vector<104x4xf32>
    %38 = arith.truncf %37 : vector<104x4xf32> to vector<104x4xbf16>
    %c0_20 = arith.constant 0 : index
    %c0_21 = arith.constant 0 : index
    %39 = vector.load %arg21[%c0_20, %c0_21] : memref<104x4xbf16, #tpu.memory_space<vmem>>, vector<104x4xbf16>
    tpu.vector_store %arg21[%c0_20, %c0_21], %38 {strides = array<i32>} : memref<104x4xbf16, #tpu.memory_space<vmem>>, vector<104x4xbf16>,
    %c0_22 = arith.constant 0 : index
    %c0_23 = arith.constant 0 : index
    %40 = vector.load %arg21[%c0_22, %c0_23] : memref<104x4xbf16, #tpu.memory_space<vmem>>, vector<80x4xbf16>
    %c1_24 = arith.constant 1 : index
    %c0_25 = arith.constant 0 : index
    %41 = vector.load %arg21[%c1_24, %c0_25] : memref<104x4xbf16, #tpu.memory_space<vmem>>, vector<80x4xbf16>
    %c2_26 = arith.constant 2 : index
    %c0_27 = arith.constant 0 : index
    %42 = vector.load %arg21[%c2_26, %c0_27] : memref<104x4xbf16, #tpu.memory_space<vmem>>, vector<80x4xbf16>
    %c10 = arith.constant 10 : index
    %c0_28 = arith.constant 0 : index
    %43 = vector.load %arg21[%c10, %c0_28] : memref<104x4xbf16, #tpu.memory_space<vmem>>, vector<80x4xbf16>
    %c11 = arith.constant 11 : index
    %c0_29 = arith.constant 0 : index
    %44 = vector.load %arg21[%c11, %c0_29] : memref<104x4xbf16, #tpu.memory_space<vmem>>, vector<80x4xbf16>
    %c12 = arith.constant 12 : index
    %c0_30 = arith.constant 0 : index
    %45 = vector.load %arg21[%c12, %c0_30] : memref<104x4xbf16, #tpu.memory_space<vmem>>, vector<80x4xbf16>
    %c20_31 = arith.constant 20 : index
    %c0_32 = arith.constant 0 : index
    %46 = vector.load %arg21[%c20_31, %c0_32] : memref<104x4xbf16, #tpu.memory_space<vmem>>, vector<80x4xbf16>
    %c21 = arith.constant 21 : index
    %c0_33 = arith.constant 0 : index
    %47 = vector.load %arg21[%c21, %c0_33] : memref<104x4xbf16, #tpu.memory_space<vmem>>, vector<80x4xbf16>
    %c22 = arith.constant 22 : index
    %c0_34 = arith.constant 0 : index
    %48 = vector.load %arg21[%c22, %c0_34] : memref<104x4xbf16, #tpu.memory_space<vmem>>, vector<80x4xbf16>
    %49 = tpu.concatenate %40, %41, %42, %43, %44, %45, %46, %47, %48 in 1 : vector<80x4xbf16>, vector<80x4xbf16>, vector<80x4xbf16>, vector<80x4xbf16>, vector<80x4xbf16>, vector<80x4xbf16>, vector<80x4xbf16>, vector<80x4xbf16>, vector<80x4xbf16> -> vector<80x36xbf16>
    %c0_35 = arith.constant 0 : index
    %c0_36 = arith.constant 0 : index
    %50 = vector.load %arg5[%c0_35, %c0_36] : memref<36x8xbf16, #tpu.memory_space<vmem>>, vector<36x8xbf16>
    %cst_37 = arith.constant dense<0.000000e+00> : vector<80x8xf32>
    %51 = tpu.matmul %49, %50, %cst_37 {dimension_numbers = #tpu.dot_dimension_numbers<[1], [0], [0], [1], [0, 0, 1, 1], [], []>} : vector<80x36xbf16>, vector<36x8xbf16>, vector<80x8xf32> -> vector<80x8xf32>
    %c0_38 = arith.constant 0 : index
    %c0_39 = arith.constant 0 : index
    %52 = vector.load %arg6[%c0_38, %c0_39] : memref<1x8xf32, #tpu.memory_space<vmem>>, vector<1x8xf32>
    %53 = vector.broadcast %52 : vector<1x8xf32> to vector<80x8xf32>
    %54 = arith.addf %51, %53 : vector<80x8xf32>
    %55 = arith.mulf %54, %54 : vector<80x8xf32>
    %56 = arith.mulf %54, %55 : vector<80x8xf32>
    %cst_40 = arith.constant 4.471500e-02 : f32
    %57 = vector.broadcast %cst_40 : f32 to vector<80x8xf32>
    %58 = arith.mulf %57, %56 : vector<80x8xf32>
    %59 = arith.addf %54, %58 : vector<80x8xf32>
    %cst_41 = arith.constant 0.797884583 : f32
    %60 = vector.broadcast %cst_41 : f32 to vector<80x8xf32>
    %61 = arith.mulf %60, %59 : vector<80x8xf32>
    %62 = math.tanh %61 : vector<80x8xf32>
    %cst_42 = arith.constant 1.000000e+00 : f32
    %63 = vector.broadcast %cst_42 : f32 to vector<80x8xf32>
    %64 = arith.addf %63, %62 : vector<80x8xf32>
    %cst_43 = arith.constant 5.000000e-01 : f32
    %65 = vector.broadcast %cst_43 : f32 to vector<80x8xf32>
    %66 = arith.mulf %65, %64 : vector<80x8xf32>
    %67 = arith.mulf %54, %66 : vector<80x8xf32>
    %c0_44 = arith.constant 0 : index
    %c0_45 = arith.constant 0 : index
    %68 = vector.load %arg7[%c0_44, %c0_45] : memref<104x80xbf16, #tpu.memory_space<vmem>>, vector<104x80xbf16>
    %69 = arith.truncf %67 : vector<80x8xf32> to vector<80x8xbf16>
    %cst_46 = arith.constant dense<0.000000e+00> : vector<104x8xf32>
    %70 = tpu.matmul %68, %69, %cst_46 {dimension_numbers = #tpu.dot_dimension_numbers<[1], [0], [0], [1], [0, 0, 1, 1], [], []>} : vector<104x80xbf16>, vector<80x8xbf16>, vector<104x8xf32> -> vector<104x8xf32>
    %71 = arith.truncf %70 : vector<104x8xf32> to vector<104x8xbf16>
    %c0_47 = arith.constant 0 : index
    %c0_48 = arith.constant 0 : index
    %72 = vector.load %arg22[%c0_47, %c0_48] : memref<104x8xbf16, #tpu.memory_space<vmem>>, vector<104x8xbf16>
    tpu.vector_store %arg22[%c0_47, %c0_48], %71 {strides = array<i32>} : memref<104x8xbf16, #tpu.memory_space<vmem>>, vector<104x8xbf16>,
    %c0_49 = arith.constant 0 : index
    %c0_50 = arith.constant 0 : index
    %73 = vector.load %arg22[%c0_49, %c0_50] : memref<104x8xbf16, #tpu.memory_space<vmem>>, vector<80x8xbf16>
    %c1_51 = arith.constant 1 : index
    %c0_52 = arith.constant 0 : index
    %74 = vector.load %arg22[%c1_51, %c0_52] : memref<104x8xbf16, #tpu.memory_space<vmem>>, vector<80x8xbf16>
    %c2_53 = arith.constant 2 : index
    %c0_54 = arith.constant 0 : index
    %75 = vector.load %arg22[%c2_53, %c0_54] : memref<104x8xbf16, #tpu.memory_space<vmem>>, vector<80x8xbf16>
    %c10_55 = arith.constant 10 : index
    %c0_56 = arith.constant 0 : index
    %76 = vector.load %arg22[%c10_55, %c0_56] : memref<104x8xbf16, #tpu.memory_space<vmem>>, vector<80x8xbf16>
    %c11_57 = arith.constant 11 : index
    %c0_58 = arith.constant 0 : index
    %77 = vector.load %arg22[%c11_57, %c0_58] : memref<104x8xbf16, #tpu.memory_space<vmem>>, vector<80x8xbf16>
    %c12_59 = arith.constant 12 : index
    %c0_60 = arith.constant 0 : index
    %78 = vector.load %arg22[%c12_59, %c0_60] : memref<104x8xbf16, #tpu.memory_space<vmem>>, vector<80x8xbf16>
    %c20_61 = arith.constant 20 : index
    %c0_62 = arith.constant 0 : index
    %79 = vector.load %arg22[%c20_61, %c0_62] : memref<104x8xbf16, #tpu.memory_space<vmem>>, vector<80x8xbf16>
    %c21_63 = arith.constant 21 : index
    %c0_64 = arith.constant 0 : index
    %80 = vector.load %arg22[%c21_63, %c0_64] : memref<104x8xbf16, #tpu.memory_space<vmem>>, vector<80x8xbf16>
    %c22_65 = arith.constant 22 : index
    %c0_66 = arith.constant 0 : index
    %81 = vector.load %arg22[%c22_65, %c0_66] : memref<104x8xbf16, #tpu.memory_space<vmem>>, vector<80x8xbf16>
    %82 = tpu.concatenate %73, %74, %75, %76, %77, %78, %79, %80, %81 in 1 : vector<80x8xbf16>, vector<80x8xbf16>, vector<80x8xbf16>, vector<80x8xbf16>, vector<80x8xbf16>, vector<80x8xbf16>, vector<80x8xbf16>, vector<80x8xbf16>, vector<80x8xbf16> -> vector<80x72xbf16>
    %c0_67 = arith.constant 0 : index
    %c0_68 = arith.constant 0 : index
    %83 = vector.load %arg8[%c0_67, %c0_68] : memref<72x16xbf16, #tpu.memory_space<vmem>>, vector<72x16xbf16>
    %cst_69 = arith.constant dense<0.000000e+00> : vector<80x16xf32>
    %84 = tpu.matmul %82, %83, %cst_69 {dimension_numbers = #tpu.dot_dimension_numbers<[1], [0], [0], [1], [0, 0, 1, 1], [], []>} : vector<80x72xbf16>, vector<72x16xbf16>, vector<80x16xf32> -> vector<80x16xf32>
    %c0_70 = arith.constant 0 : index
    %c0_71 = arith.constant 0 : index
    %85 = vector.load %arg9[%c0_70, %c0_71] : memref<1x16xf32, #tpu.memory_space<vmem>>, vector<1x16xf32>
    %86 = vector.broadcast %85 : vector<1x16xf32> to vector<80x16xf32>
    %87 = arith.addf %84, %86 : vector<80x16xf32>
    %88 = arith.mulf %87, %87 : vector<80x16xf32>
    %89 = arith.mulf %87, %88 : vector<80x16xf32>
    %cst_72 = arith.constant 4.471500e-02 : f32
    %90 = vector.broadcast %cst_72 : f32 to vector<80x16xf32>
    %91 = arith.mulf %90, %89 : vector<80x16xf32>
    %92 = arith.addf %87, %91 : vector<80x16xf32>
    %cst_73 = arith.constant 0.797884583 : f32
    %93 = vector.broadcast %cst_73 : f32 to vector<80x16xf32>
    %94 = arith.mulf %93, %92 : vector<80x16xf32>
    %95 = math.tanh %94 : vector<80x16xf32>
    %cst_74 = arith.constant 1.000000e+00 : f32
    %96 = vector.broadcast %cst_74 : f32 to vector<80x16xf32>
    %97 = arith.addf %96, %95 : vector<80x16xf32>
    %cst_75 = arith.constant 5.000000e-01 : f32
    %98 = vector.broadcast %cst_75 : f32 to vector<80x16xf32>
    %99 = arith.mulf %98, %97 : vector<80x16xf32>
    %100 = arith.mulf %87, %99 : vector<80x16xf32>
    %101 = vector.extract_strided_slice %100 {offsets = [0, 0], sizes = [69, 16], strides = [1, 1]} : vector<80x16xf32> to vector<69x16xf32>
    %102 = vector.extract_strided_slice %100 {offsets = [1, 0], sizes = [69, 16], strides = [1, 1]} : vector<80x16xf32> to vector<69x16xf32>
    %103 = vector.extract_strided_slice %100 {offsets = [10, 0], sizes = [69, 16], strides = [1, 1]} : vector<80x16xf32> to vector<69x16xf32>
    %104 = vector.extract_strided_slice %100 {offsets = [11, 0], sizes = [69, 16], strides = [1, 1]} : vector<80x16xf32> to vector<69x16xf32>
    %105 = arith.maximumf %101, %102 : vector<69x16xf32>
    %106 = arith.maximumf %103, %104 : vector<69x16xf32>
    %107 = arith.maximumf %105, %106 : vector<69x16xf32>
    %108 = arith.addf %101, %102 : vector<69x16xf32>
    %109 = arith.addf %108, %103 : vector<69x16xf32>
    %110 = arith.addf %109, %104 : vector<69x16xf32>
    %cst_76 = arith.constant 2.500000e-01 : f32
    %111 = vector.broadcast %cst_76 : f32 to vector<69x16xf32>
    %112 = arith.mulf %110, %111 : vector<69x16xf32>
    %cst_77 = arith.constant 6.000000e-01 : f32
    %113 = vector.broadcast %cst_77 : f32 to vector<69x16xf32>
    %114 = arith.mulf %113, %107 : vector<69x16xf32>
    %cst_78 = arith.constant 4.000000e-01 : f32
    %115 = vector.broadcast %cst_78 : f32 to vector<69x16xf32>
    %116 = arith.mulf %115, %112 : vector<69x16xf32>
    %117 = arith.addf %114, %116 : vector<69x16xf32>
    %c0_79 = arith.constant 0 : index
    %c0_80 = arith.constant 0 : index
    %118 = vector.load %arg10[%c0_79, %c0_80] : memref<40x69xbf16, #tpu.memory_space<vmem>>, vector<40x69xbf16>
    %119 = arith.truncf %117 : vector<69x16xf32> to vector<69x16xbf16>
    %cst_81 = arith.constant dense<0.000000e+00> : vector<40x16xf32>
    %120 = tpu.matmul %118, %119, %cst_81 {dimension_numbers = #tpu.dot_dimension_numbers<[1], [0], [0], [1], [0, 0, 1, 1], [], []>} : vector<40x69xbf16>, vector<69x16xbf16>, vector<40x16xf32> -> vector<40x16xf32>
    %121 = arith.truncf %120 : vector<40x16xf32> to vector<40x16xbf16>
    %c0_82 = arith.constant 0 : index
    %c0_83 = arith.constant 0 : index
    %122 = vector.load %arg23[%c0_82, %c0_83] : memref<40x16xbf16, #tpu.memory_space<vmem>>, vector<40x16xbf16>
    tpu.vector_store %arg23[%c0_82, %c0_83], %121 {strides = array<i32>} : memref<40x16xbf16, #tpu.memory_space<vmem>>, vector<40x16xbf16>,
    %c0_84 = arith.constant 0 : index
    %c0_85 = arith.constant 0 : index
    %123 = vector.load %arg23[%c0_84, %c0_85] : memref<40x16xbf16, #tpu.memory_space<vmem>>, vector<24x16xbf16>
    %c1_86 = arith.constant 1 : index
    %c0_87 = arith.constant 0 : index
    %124 = vector.load %arg23[%c1_86, %c0_87] : memref<40x16xbf16, #tpu.memory_space<vmem>>, vector<24x16xbf16>
    %c2_88 = arith.constant 2 : index
    %c0_89 = arith.constant 0 : index
    %125 = vector.load %arg23[%c2_88, %c0_89] : memref<40x16xbf16, #tpu.memory_space<vmem>>, vector<24x16xbf16>
    %c6 = arith.constant 6 : index
    %c0_90 = arith.constant 0 : index
    %126 = vector.load %arg23[%c6, %c0_90] : memref<40x16xbf16, #tpu.memory_space<vmem>>, vector<24x16xbf16>
    %c7 = arith.constant 7 : index
    %c0_91 = arith.constant 0 : index
    %127 = vector.load %arg23[%c7, %c0_91] : memref<40x16xbf16, #tpu.memory_space<vmem>>, vector<24x16xbf16>
    %c8 = arith.constant 8 : index
    %c0_92 = arith.constant 0 : index
    %128 = vector.load %arg23[%c8, %c0_92] : memref<40x16xbf16, #tpu.memory_space<vmem>>, vector<24x16xbf16>
    %c12_93 = arith.constant 12 : index
    %c0_94 = arith.constant 0 : index
    %129 = vector.load %arg23[%c12_93, %c0_94] : memref<40x16xbf16, #tpu.memory_space<vmem>>, vector<24x16xbf16>
    %c13 = arith.constant 13 : index
    %c0_95 = arith.constant 0 : index
    %130 = vector.load %arg23[%c13, %c0_95] : memref<40x16xbf16, #tpu.memory_space<vmem>>, vector<24x16xbf16>
    %c14 = arith.constant 14 : index
    %c0_96 = arith.constant 0 : index
    %131 = vector.load %arg23[%c14, %c0_96] : memref<40x16xbf16, #tpu.memory_space<vmem>>, vector<24x16xbf16>
    %132 = tpu.concatenate %123, %124, %125, %126, %127, %128, %129, %130, %131 in 1 : vector<24x16xbf16>, vector<24x16xbf16>, vector<24x16xbf16>, vector<24x16xbf16>, vector<24x16xbf16>, vector<24x16xbf16>, vector<24x16xbf16>, vector<24x16xbf16>, vector<24x16xbf16> -> vector<24x144xbf16>
    %c0_97 = arith.constant 0 : index
    %c0_98 = arith.constant 0 : index
    %133 = vector.load %arg11[%c0_97, %c0_98] : memref<144x32xbf16, #tpu.memory_space<vmem>>, vector<144x32xbf16>
    %cst_99 = arith.constant dense<0.000000e+00> : vector<24x32xf32>
    %134 = tpu.matmul %132, %133, %cst_99 {dimension_numbers = #tpu.dot_dimension_numbers<[1], [0], [0], [1], [0, 0, 1, 1], [], []>} : vector<24x144xbf16>, vector<144x32xbf16>, vector<24x32xf32> -> vector<24x32xf32>
    %c0_100 = arith.constant 0 : index
    %c0_101 = arith.constant 0 : index
    %135 = vector.load %arg12[%c0_100, %c0_101] : memref<1x32xf32, #tpu.memory_space<vmem>>, vector<1x32xf32>
    %136 = vector.broadcast %135 : vector<1x32xf32> to vector<24x32xf32>
    %137 = arith.addf %134, %136 : vector<24x32xf32>
    %138 = arith.mulf %137, %137 : vector<24x32xf32>
    %139 = arith.mulf %137, %138 : vector<24x32xf32>
    %cst_102 = arith.constant 4.471500e-02 : f32
    %140 = vector.broadcast %cst_102 : f32 to vector<24x32xf32>
    %141 = arith.mulf %140, %139 : vector<24x32xf32>
    %142 = arith.addf %137, %141 : vector<24x32xf32>
    %cst_103 = arith.constant 0.797884583 : f32
    %143 = vector.broadcast %cst_103 : f32 to vector<24x32xf32>
    %144 = arith.mulf %143, %142 : vector<24x32xf32>
    %145 = math.tanh %144 : vector<24x32xf32>
    %cst_104 = arith.constant 1.000000e+00 : f32
    %146 = vector.broadcast %cst_104 : f32 to vector<24x32xf32>
    %147 = arith.addf %146, %145 : vector<24x32xf32>
    %cst_105 = arith.constant 5.000000e-01 : f32
    %148 = vector.broadcast %cst_105 : f32 to vector<24x32xf32>
    %149 = arith.mulf %148, %147 : vector<24x32xf32>
    %150 = arith.mulf %137, %149 : vector<24x32xf32>
    %151 = vector.extract_strided_slice %150 {offsets = [0, 0], sizes = [17, 32], strides = [1, 1]} : vector<24x32xf32> to vector<17x32xf32>
    %152 = vector.extract_strided_slice %150 {offsets = [1, 0], sizes = [17, 32], strides = [1, 1]} : vector<24x32xf32> to vector<17x32xf32>
    %153 = vector.extract_strided_slice %150 {offsets = [6, 0], sizes = [17, 32], strides = [1, 1]} : vector<24x32xf32> to vector<17x32xf32>
    %154 = vector.extract_strided_slice %150 {offsets = [7, 0], sizes = [17, 32], strides = [1, 1]} : vector<24x32xf32> to vector<17x32xf32>
    %155 = arith.maximumf %151, %152 : vector<17x32xf32>
    %156 = arith.maximumf %153, %154 : vector<17x32xf32>
    %157 = arith.maximumf %155, %156 : vector<17x32xf32>
    %158 = arith.addf %151, %152 : vector<17x32xf32>
    %159 = arith.addf %158, %153 : vector<17x32xf32>
    %160 = arith.addf %159, %154 : vector<17x32xf32>
    %cst_106 = arith.constant 2.500000e-01 : f32
    %161 = vector.broadcast %cst_106 : f32 to vector<17x32xf32>
    %162 = arith.mulf %160, %161 : vector<17x32xf32>
    %cst_107 = arith.constant 2.000000e-01 : f32
    %163 = vector.broadcast %cst_107 : f32 to vector<17x32xf32>
    %164 = arith.mulf %163, %157 : vector<17x32xf32>
    %cst_108 = arith.constant 8.000000e-01 : f32
    %165 = vector.broadcast %cst_108 : f32 to vector<17x32xf32>
    %166 = arith.mulf %165, %162 : vector<17x32xf32>
    %167 = arith.addf %164, %166 : vector<17x32xf32>
    %c0_109 = arith.constant 0 : index
    %c0_110 = arith.constant 0 : index
    %168 = vector.load %arg13[%c0_109, %c0_110] : memref<24x17xbf16, #tpu.memory_space<vmem>>, vector<24x17xbf16>
    %169 = arith.truncf %167 : vector<17x32xf32> to vector<17x32xbf16>
    %cst_111 = arith.constant dense<0.000000e+00> : vector<24x32xf32>
    %170 = tpu.matmul %168, %169, %cst_111 {dimension_numbers = #tpu.dot_dimension_numbers<[1], [0], [0], [1], [0, 0, 1, 1], [], []>} : vector<24x17xbf16>, vector<17x32xbf16>, vector<24x32xf32> -> vector<24x32xf32>
    %171 = arith.truncf %170 : vector<24x32xf32> to vector<24x32xbf16>
    %c0_112 = arith.constant 0 : index
    %c0_113 = arith.constant 0 : index
    %172 = vector.load %arg24[%c0_112, %c0_113] : memref<24x32xbf16, #tpu.memory_space<vmem>>, vector<24x32xbf16>
    tpu.vector_store %arg24[%c0_112, %c0_113], %171 {strides = array<i32>} : memref<24x32xbf16, #tpu.memory_space<vmem>>, vector<24x32xbf16>,
    %c0_114 = arith.constant 0 : index
    %c0_115 = arith.constant 0 : index
    %173 = vector.load %arg24[%c0_114, %c0_115] : memref<24x32xbf16, #tpu.memory_space<vmem>>, vector<8x32xbf16>
    %c1_116 = arith.constant 1 : index
    %c0_117 = arith.constant 0 : index
    %174 = vector.load %arg24[%c1_116, %c0_117] : memref<24x32xbf16, #tpu.memory_space<vmem>>, vector<8x32xbf16>
    %c2_118 = arith.constant 2 : index
    %c0_119 = arith.constant 0 : index
    %175 = vector.load %arg24[%c2_118, %c0_119] : memref<24x32xbf16, #tpu.memory_space<vmem>>, vector<8x32xbf16>
    %c4 = arith.constant 4 : index
    %c0_120 = arith.constant 0 : index
    %176 = vector.load %arg24[%c4, %c0_120] : memref<24x32xbf16, #tpu.memory_space<vmem>>, vector<8x32xbf16>
    %c5 = arith.constant 5 : index
    %c0_121 = arith.constant 0 : index
    %177 = vector.load %arg24[%c5, %c0_121] : memref<24x32xbf16, #tpu.memory_space<vmem>>, vector<8x32xbf16>
    %c6_122 = arith.constant 6 : index
    %c0_123 = arith.constant 0 : index
    %178 = vector.load %arg24[%c6_122, %c0_123] : memref<24x32xbf16, #tpu.memory_space<vmem>>, vector<8x32xbf16>
    %c8_124 = arith.constant 8 : index
    %c0_125 = arith.constant 0 : index
    %179 = vector.load %arg24[%c8_124, %c0_125] : memref<24x32xbf16, #tpu.memory_space<vmem>>, vector<8x32xbf16>
    %c9 = arith.constant 9 : index
    %c0_126 = arith.constant 0 : index
    %180 = vector.load %arg24[%c9, %c0_126] : memref<24x32xbf16, #tpu.memory_space<vmem>>, vector<8x32xbf16>
    %c10_127 = arith.constant 10 : index
    %c0_128 = arith.constant 0 : index
    %181 = vector.load %arg24[%c10_127, %c0_128] : memref<24x32xbf16, #tpu.memory_space<vmem>>, vector<8x32xbf16>
    %182 = tpu.concatenate %173, %174, %175, %176, %177, %178, %179, %180, %181 in 1 : vector<8x32xbf16>, vector<8x32xbf16>, vector<8x32xbf16>, vector<8x32xbf16>, vector<8x32xbf16>, vector<8x32xbf16>, vector<8x32xbf16>, vector<8x32xbf16>, vector<8x32xbf16> -> vector<8x288xbf16>
    %c0_129 = arith.constant 0 : index
    %c0_130 = arith.constant 0 : index
    %183 = vector.load %arg14[%c0_129, %c0_130] : memref<288x64xbf16, #tpu.memory_space<vmem>>, vector<288x64xbf16>
    %cst_131 = arith.constant dense<0.000000e+00> : vector<8x64xf32>
    %184 = tpu.matmul %182, %183, %cst_131 {dimension_numbers = #tpu.dot_dimension_numbers<[1], [0], [0], [1], [0, 0, 1, 1], [], []>} : vector<8x288xbf16>, vector<288x64xbf16>, vector<8x64xf32> -> vector<8x64xf32>
    %c0_132 = arith.constant 0 : index
    %c0_133 = arith.constant 0 : index
    %185 = vector.load %arg15[%c0_132, %c0_133] : memref<1x64xf32, #tpu.memory_space<vmem>>, vector<1x64xf32>
    %186 = vector.broadcast %185 : vector<1x64xf32> to vector<8x64xf32>
    %187 = arith.addf %184, %186 : vector<8x64xf32>
    %188 = arith.mulf %187, %187 : vector<8x64xf32>
    %189 = arith.mulf %187, %188 : vector<8x64xf32>
    %cst_134 = arith.constant 4.471500e-02 : f32
    %190 = vector.broadcast %cst_134 : f32 to vector<8x64xf32>
    %191 = arith.mulf %190, %189 : vector<8x64xf32>
    %192 = arith.addf %187, %191 : vector<8x64xf32>
    %cst_135 = arith.constant 0.797884583 : f32
    %193 = vector.broadcast %cst_135 : f32 to vector<8x64xf32>
    %194 = arith.mulf %193, %192 : vector<8x64xf32>
    %195 = math.tanh %194 : vector<8x64xf32>
    %cst_136 = arith.constant 1.000000e+00 : f32
    %196 = vector.broadcast %cst_136 : f32 to vector<8x64xf32>
    %197 = arith.addf %196, %195 : vector<8x64xf32>
    %cst_137 = arith.constant 5.000000e-01 : f32
    %198 = vector.broadcast %cst_137 : f32 to vector<8x64xf32>
    %199 = arith.mulf %198, %197 : vector<8x64xf32>
    %200 = arith.mulf %187, %199 : vector<8x64xf32>
    %c0_138 = arith.constant 0 : index
    %c0_139 = arith.constant 0 : index
    %201 = vector.load %arg16[%c0_138, %c0_139] : memref<1x8xbf16, #tpu.memory_space<vmem>>, vector<1x8xbf16>
    %202 = arith.truncf %200 : vector<8x64xf32> to vector<8x64xbf16>
    %cst_140 = arith.constant dense<0.000000e+00> : vector<1x64xf32>
    %203 = tpu.matmul %201, %202, %cst_140 {dimension_numbers = #tpu.dot_dimension_numbers<[1], [0], [0], [1], [0, 0, 1, 1], [], []>} : vector<1x8xbf16>, vector<8x64xbf16>, vector<1x64xf32> -> vector<1x64xf32>
    %204 = arith.truncf %203 : vector<1x64xf32> to vector<1x64xbf16>
    %c0_141 = arith.constant 0 : index
    %c0_142 = arith.constant 0 : index
    %205 = vector.load %arg17[%c0_141, %c0_142] : memref<64x16xbf16, #tpu.memory_space<vmem>>, vector<64x16xbf16>
    %cst_143 = arith.constant dense<0.000000e+00> : vector<1x16xf32>
    %206 = tpu.matmul %204, %205, %cst_143 {dimension_numbers = #tpu.dot_dimension_numbers<[1], [0], [0], [1], [0, 0, 1, 1], [], []>} : vector<1x64xbf16>, vector<64x16xbf16>, vector<1x16xf32> -> vector<1x16xf32>
    %c0_144 = arith.constant 0 : index
    %c0_145 = arith.constant 0 : index
    %207 = vector.load %arg18[%c0_144, %c0_145] : memref<1x16xf32, #tpu.memory_space<vmem>>, vector<1x16xf32>
    %208 = arith.addf %206, %207 : vector<1x16xf32>
    %209 = vector.extract_strided_slice %208 {offsets = [0, 0], sizes = [1, 8], strides = [1, 1]} : vector<1x16xf32> to vector<1x8xf32>
    %210 = vector.shape_cast %209 : vector<1x8xf32> to vector<1x1x8xf32>
    %c0_146 = arith.constant 0 : index
    %c0_147 = arith.constant 0 : index
    %c0_148 = arith.constant 0 : index
    %211 = vector.load %arg19[%c0_146, %c0_147, %c0_148] : memref<1x1x8xf32, #tpu.memory_space<vmem>>, vector<1x1x8xf32>
    tpu.vector_store %arg19[%c0_146, %c0_147, %c0_148], %210 {strides = array<i32>} : memref<1x1x8xf32, #tpu.memory_space<vmem>>, vector<1x1x8xf32>,
    %212 = vector.extract_strided_slice %208 {offsets = [0, 8], sizes = [1, 8], strides = [1, 1]} : vector<1x16xf32> to vector<1x8xf32>
    %213 = vector.shape_cast %212 : vector<1x8xf32> to vector<1x1x8xf32>
    %c0_149 = arith.constant 0 : index
    %c0_150 = arith.constant 0 : index
    %c0_151 = arith.constant 0 : index
    %214 = vector.load %arg20[%c0_149, %c0_150, %c0_151] : memref<1x1x8xf32, #tpu.memory_space<vmem>>, vector<1x1x8xf32>
    tpu.vector_store %arg20[%c0_149, %c0_150, %c0_151], %213 {strides = array<i32>} : memref<1x1x8xf32, #tpu.memory_space<vmem>>, vector<1x1x8xf32>,
    return
  }
  func.func @transform_0(%arg0: i32) -> (i32, i32) {
    %c0_i32 = arith.constant 0 : i32
    %c0_i32_0 = arith.constant 0 : i32
    return %arg0, %c0_i32 : i32, i32
  }
  func.func @transform_1(%arg0: i32) -> (i32, i32) {
    %c0_i32 = arith.constant 0 : i32
    %c0_i32_0 = arith.constant 0 : i32
    %c0_i32_1 = arith.constant 0 : i32
    return %c0_i32, %c0_i32_0 : i32, i32
  }
  func.func @transform_2(%arg0: i32) -> (i32, i32) {
    %c0_i32 = arith.constant 0 : i32
    %c0_i32_0 = arith.constant 0 : i32
    %c0_i32_1 = arith.constant 0 : i32
    return %c0_i32, %c0_i32_0 : i32, i32
  }
  func.func @transform_3(%arg0: i32) -> (i32, i32) {
    %c0_i32 = arith.constant 0 : i32
    %c0_i32_0 = arith.constant 0 : i32
    %c0_i32_1 = arith.constant 0 : i32
    return %c0_i32, %c0_i32_0 : i32, i32
  }
  func.func @transform_4(%arg0: i32) -> (i32, i32) {
    %c0_i32 = arith.constant 0 : i32
    %c0_i32_0 = arith.constant 0 : i32
    %c0_i32_1 = arith.constant 0 : i32
    return %c0_i32, %c0_i32_0 : i32, i32
  }
  func.func @transform_5(%arg0: i32) -> (i32, i32) {
    %c0_i32 = arith.constant 0 : i32
    %c0_i32_0 = arith.constant 0 : i32
    %c0_i32_1 = arith.constant 0 : i32
    return %c0_i32, %c0_i32_0 : i32, i32
  }
  func.func @transform_6(%arg0: i32) -> (i32, i32) {
    %c0_i32 = arith.constant 0 : i32
    %c0_i32_0 = arith.constant 0 : i32
    %c0_i32_1 = arith.constant 0 : i32
    return %c0_i32, %c0_i32_0 : i32, i32
  }
  func.func @transform_7(%arg0: i32) -> (i32, i32) {
    %c0_i32 = arith.constant 0 : i32
    %c0_i32_0 = arith.constant 0 : i32
    %c0_i32_1 = arith.constant 0 : i32
    return %c0_i32, %c0_i32_0 : i32, i32
  }
  func.func @transform_8(%arg0: i32) -> (i32, i32) {
    %c0_i32 = arith.constant 0 : i32
    %c0_i32_0 = arith.constant 0 : i32
    %c0_i32_1 = arith.constant 0 : i32
    return %c0_i32, %c0_i32_0 : i32, i32
  }
  func.func @transform_9(%arg0: i32) -> (i32, i32) {
    %c0_i32 = arith.constant 0 : i32
    %c0_i32_0 = arith.constant 0 : i32
    %c0_i32_1 = arith.constant 0 : i32
    return %c0_i32, %c0_i32_0 : i32, i32
  }
  func.func @transform_10(%arg0: i32) -> (i32, i32) {
    %c0_i32 = arith.constant 0 : i32
    %c0_i32_0 = arith.constant 0 : i32
    %c0_i32_1 = arith.constant 0 : i32
    return %c0_i32, %c0_i32_0 : i32, i32
  }
  func.func @transform_11(%arg0: i32) -> (i32, i32) {
    %c0_i32 = arith.constant 0 : i32
    %c0_i32_0 = arith.constant 0 : i32
    %c0_i32_1 = arith.constant 0 : i32
    return %c0_i32, %c0_i32_0 : i32, i32
  }
  func.func @transform_12(%arg0: i32) -> (i32, i32) {
    %c0_i32 = arith.constant 0 : i32
    %c0_i32_0 = arith.constant 0 : i32
    %c0_i32_1 = arith.constant 0 : i32
    return %c0_i32, %c0_i32_0 : i32, i32
  }
  func.func @transform_13(%arg0: i32) -> (i32, i32) {
    %c0_i32 = arith.constant 0 : i32
    %c0_i32_0 = arith.constant 0 : i32
    %c0_i32_1 = arith.constant 0 : i32
    return %c0_i32, %c0_i32_0 : i32, i32
  }
  func.func @transform_14(%arg0: i32) -> (i32, i32) {
    %c0_i32 = arith.constant 0 : i32
    %c0_i32_0 = arith.constant 0 : i32
    %c0_i32_1 = arith.constant 0 : i32
    return %c0_i32, %c0_i32_0 : i32, i32
  }
  func.func @transform_15(%arg0: i32) -> (i32, i32) {
    %c0_i32 = arith.constant 0 : i32
    %c0_i32_0 = arith.constant 0 : i32
    %c0_i32_1 = arith.constant 0 : i32
    return %c0_i32, %c0_i32_0 : i32, i32
  }
  func.func @transform_16(%arg0: i32) -> (i32, i32) {
    %c0_i32 = arith.constant 0 : i32
    %c0_i32_0 = arith.constant 0 : i32
    %c0_i32_1 = arith.constant 0 : i32
    return %c0_i32, %c0_i32_0 : i32, i32
  }
  func.func @transform_17(%arg0: i32) -> (i32, i32) {
    %c0_i32 = arith.constant 0 : i32
    %c0_i32_0 = arith.constant 0 : i32
    %c0_i32_1 = arith.constant 0 : i32
    return %c0_i32, %c0_i32_0 : i32, i32
  }
  func.func @transform_18(%arg0: i32) -> (i32, i32, i32) {
    %c0_i32 = arith.constant 0 : i32
    %c0_i32_0 = arith.constant 0 : i32
    %c0_i32_1 = arith.constant 0 : i32
    return %arg0, %c0_i32, %c0_i32_0 : i32, i32, i32
  }
  func.func @transform_19(%arg0: i32) -> (i32, i32, i32) {
    %c0_i32 = arith.constant 0 : i32
    %c0_i32_0 = arith.constant 0 : i32
    %c0_i32_1 = arith.constant 0 : i32
    return %arg0, %c0_i32, %c0_i32_0 : i32, i32, i32
  }
}

</mosaic_0001>

<llo_original>
// kernel: gmac_encoder_forward.1
$region0: #{gmac_encoder_forward.1}
  #allocation0 [shape = 'u32[]', space=smem, size = 0x4, offset = 0x4, fixed_abs, tag = 'smem constant byte address 0x4 - core index']
  #allocation1 [shape = 'u32[72,128]{1,0:T(1,128)}', space=vmem, size = 0x9000, scoped, tag = 'internal scratch']
  #allocation2 [shape = 'bf16[104,4]{1,0:T(8,128)(2,1)}', space=vmem, size = 0x6800, scoped, tag = 'scratch operand']
  #allocation3 [shape = 'bf16[104,8]{1,0:T(8,128)(2,1)}', space=vmem, size = 0x6800, scoped, tag = 'scratch operand']
  #allocation4 [shape = 'bf16[40,16]{1,0:T(8,128)(2,1)}', space=vmem, size = 0x2800, scoped, tag = 'scratch operand']
  #allocation5 [shape = 'bf16[24,32]{1,0:T(8,128)(2,1)}', space=vmem, size = 0x1800, scoped, tag = 'scratch operand']
  %s0 = inlined_call_operand.vmem [shape: bf16[656,3], index: 0, kind: input, shape index: {}]
  %s1 = inlined_call_operand.vmem [shape: bf16[27,4], index: 1, kind: input, shape index: {}]
  %s2 = inlined_call_operand.vmem [shape: f32[1,4], index: 2, kind: input, shape index: {}]
  %s3 = inlined_call_operand.vmem [shape: bf16[104,269], index: 3, kind: input, shape index: {}]
  %s4 = inlined_call_operand.vmem [shape: bf16[36,8], index: 4, kind: input, shape index: {}]
  %s5 = inlined_call_operand.vmem [shape: f32[1,8], index: 5, kind: input, shape index: {}]
  %s6 = inlined_call_operand.vmem [shape: bf16[104,80], index: 6, kind: input, shape index: {}]
  %s7 = inlined_call_operand.vmem [shape: bf16[72,16], index: 7, kind: input, shape index: {}]
  %s8 = inlined_call_operand.vmem [shape: f32[1,16], index: 8, kind: input, shape index: {}]
  %s9 = inlined_call_operand.vmem [shape: bf16[40,69], index: 9, kind: input, shape index: {}]
  %s10 = inlined_call_operand.vmem [shape: bf16[144,32], index: 10, kind: input, shape index: {}]
  %s11 = inlined_call_operand.vmem [shape: f32[1,32], index: 11, kind: input, shape index: {}]
  %s12 = inlined_call_operand.vmem [shape: bf16[24,17], index: 12, kind: input, shape index: {}]
  %s13 = inlined_call_operand.vmem [shape: bf16[288,64], index: 13, kind: input, shape index: {}]
  %s14 = inlined_call_operand.vmem [shape: f32[1,64], index: 14, kind: input, shape index: {}]
  %s15 = inlined_call_operand.vmem [shape: bf16[1,8], index: 15, kind: input, shape index: {}]
  %s16 = inlined_call_operand.vmem [shape: bf16[64,16], index: 16, kind: input, shape index: {}]
  %s17 = inlined_call_operand.vmem [shape: f32[1,16], index: 17, kind: input, shape index: {}]
  %s18 = inlined_call_operand.hbm [shape: f32[2,1,8], index: 18, kind: output, shape index: {0}]
  %s19 = inlined_call_operand.hbm [shape: f32[2,1,8], index: 19, kind: output, shape index: {1}]
  %20 = xla_tuple %s18, %s19
  %s21 = sld [smem:[#allocation0]]
  $region113: #{gmac_encoder_forward.1} parent=0
    _
  %s23 = ssub.s32 1, %s21
  %s24 = scalar_select 0, %s23, %s21
  $region1: #{gmac_encoder_forward.1} parent=0
    #allocation6 [shape = 'u8[1024]{0}', space=vmem, size = 0x400, scoped, tag = 'output window, operand 0']
    #allocation7 [shape = 's32[2]{0}', space=sflag, size = 0x8, scoped, tag = 'scoped memory for gmac_encoder_forward.1']
    #allocation8 [shape = 'u8[1024]{0}', space=vmem, size = 0x400, scoped, tag = 'output window, operand 1']
    #allocation9 [shape = 's32[2]{0}', space=sflag, size = 0x8, scoped, tag = 'scoped memory for gmac_encoder_forward.1']
    %25 = vsyncpa [#allocation7], 0
    %s26 = scalar_lea.sflag [#allocation7], 1
    %27 = vsyncpa %s26, 0
    %28 = vsyncpa [#allocation9], 0
    %s29 = scalar_lea.sflag [#allocation9], 1
    %30 = vsyncpa %s29, 0
    loop: start=0, step=1, limit=4
    $region2: #{gmac_encoder_forward.1} parent=1 // loop_pre_header
      _
    $region3: #{gmac_encoder_forward.1} parent=1 // loop_header
      %s32 = sphi 0, %s36
      %p33 = scmp.ge.s32.totalorder %s32, 4
      %s42 = sphi 0, %s44
      %s45 = sphi 0, %s42
      %s46 = sphi 0, %s45
      %s62 = sphi 0, %s46
      %s66 = sphi 0, %s66
      %s68 = sphi 0, %s66
      %s69 = sphi 0, %s68
      %s83 = sphi 0, %s69
      %s87 = sphi 0, %s87
      %s89 = sphi 0, %s87
      %s90 = sphi 0, %s89
      %s104 = sphi 0, %s90
      %s108 = sphi 0, %s108
      %s110 = sphi 0, %s108
      %s111 = sphi 0, %s110
      %s125 = sphi 0, %s111
      %s129 = sphi 0, %s129
      %s131 = sphi 0, %s129
      %s132 = sphi 0, %s131
      %s146 = sphi 0, %s132
      %s150 = sphi 0, %s150
      %s152 = sphi 0, %s150
      %s153 = sphi 0, %s152
      %s167 = sphi 0, %s153
      %s171 = sphi 0, %s171
      %s173 = sphi 0, %s171
      %s174 = sphi 0, %s173
      %s188 = sphi 0, %s174
      %s192 = sphi 0, %s192
      %s194 = sphi 0, %s192
      %s195 = sphi 0, %s194
      %s209 = sphi 0, %s195
      %s213 = sphi 0, %s213
      %s215 = sphi 0, %s213
      %s216 = sphi 0, %s215
      %s230 = sphi 0, %s216
      %s234 = sphi 0, %s234
      %s236 = sphi 0, %s234
      %s237 = sphi 0, %s236
      %s251 = sphi 0, %s237
      %s255 = sphi 0, %s255
      %s257 = sphi 0, %s255
      %s258 = sphi 0, %s257
      %s272 = sphi 0, %s258
      %s276 = sphi 0, %s276
      %s278 = sphi 0, %s276
      %s279 = sphi 0, %s278
      %s293 = sphi 0, %s279
      %s297 = sphi 0, %s297
      %s299 = sphi 0, %s297
      %s300 = sphi 0, %s299
      %s314 = sphi 0, %s300
      %s318 = sphi 0, %s318
      %s320 = sphi 0, %s318
      %s321 = sphi 0, %s320
      %s335 = sphi 0, %s321
      %s339 = sphi 0, %s339
      %s341 = sphi 0, %s339
      %s342 = sphi 0, %s341
      %s356 = sphi 0, %s342
      %s360 = sphi 0, %s360
      %s362 = sphi 0, %s360
      %s363 = sphi 0, %s362
      %s377 = sphi 0, %s363
      %s381 = sphi 0, %s381
      %s383 = sphi 0, %s381
      %s384 = sphi 0, %s383
      %s398 = sphi 0, %s384
      %s402 = sphi 0, %s402
      %s404 = sphi 0, %s402
      %s405 = sphi 0, %s404
      %s419 = sphi 0, %s405
      %s425 = sphi 0, %s427
      %s428 = sphi 0, %s425
      %s429 = sphi 0, %s428
      %s445 = sphi 0, %s429
      %s451 = sphi 0, %s453
      %s454 = sphi 0, %s451
      %s455 = sphi 0, %s454
      %s471 = sphi 0, %s455
    $region4: #{gmac_encoder_forward.1} parent=1 // loop_header_branch
      %35 = sbr.rel (%p33) target = $region8
    $region5: #{gmac_encoder_forward.1} parent=1 // loop_body
      %s37 = ssub.s32 %s32, 1
      %s38 = ssub.s32 %s32, 2
      %s39 = sadd.s32 %s32, 1
      %s40 = ssub.s32 %s32, %s39
      %p41 = scmp.eq.s32.totalorder %s40, 0
      %s43 = sadd.s32 %s42, 1
      %s44 = scalar_select %p41, %s42, %s43
      %p47 = pneg %p41
      %p48 = scmp.eq.s32.totalorder %s32, 1
      %p49 = por %p47, %p48
      %p50 = scmp.ne.s32.totalorder %s42, %s45
      %p51 = scmp.eq.s32.totalorder %s32, 0
      %p52 = por %p50, %p51
      %p53 = scmp.ne.s32.totalorder %s42, %s45
      %p54 = scmp.eq.s32.totalorder %s37, 1
      %p55 = por %p53, %p54
      %p56 = scmp.ne.s32.totalorder %s45, %s46
      %p57 = scmp.eq.s32.totalorder %s37, 0
      %p58 = por %p56, %p57
      %p59 = scmp.ne.s32.totalorder %s45, %s46
      %p60 = scmp.eq.s32.totalorder %s38, 1
      %p61 = por %p59, %p60
      %p63 = scmp.ne.s32.totalorder %s46, %s62
      %p64 = scmp.eq.s32.totalorder %s38, 0
      %p65 = por %p63, %p64
      %s67 = sadd.s32 %s66, 1
      %p70 = scmp.eq.s32.totalorder %s32, 1
      %p71 = scmp.ne.s32.totalorder %s66, %s68
      %p72 = scmp.eq.s32.totalorder %s32, 0
      %p73 = por %p71, %p72
      %p74 = scmp.ne.s32.totalorder %s66, %s68
      %p75 = scmp.eq.s32.totalorder %s37, 1
      %p76 = por %p74, %p75
      %p77 = scmp.ne.s32.totalorder %s68, %s69
      %p78 = scmp.eq.s32.totalorder %s37, 0
      %p79 = por %p77, %p78
      %p80 = scmp.ne.s32.totalorder %s68, %s69
      %p81 = scmp.eq.s32.totalorder %s38, 1
      %p82 = por %p80, %p81
      %p84 = scmp.ne.s32.totalorder %s69, %s83
      %p85 = scmp.eq.s32.totalorder %s38, 0
      %p86 = por %p84, %p85
      %s88 = sadd.s32 %s87, 1
      %p91 = scmp.eq.s32.totalorder %s32, 1
      %p92 = scmp.ne.s32.totalorder %s87, %s89
      %p93 = scmp.eq.s32.totalorder %s32, 0
      %p94 = por %p92, %p93
      %p95 = scmp.ne.s32.totalorder %s87, %s89
      %p96 = scmp.eq.s32.totalorder %s37, 1
      %p97 = por %p95, %p96
      %p98 = scmp.ne.s32.totalorder %s89, %s90
      %p99 = scmp.eq.s32.totalorder %s37, 0
      %p100 = por %p98, %p99
      %p101 = scmp.ne.s32.totalorder %s89, %s90
      %p102 = scmp.eq.s32.totalorder %s38, 1
      %p103 = por %p101, %p102
      %p105 = scmp.ne.s32.totalorder %s90, %s104
      %p106 = scmp.eq.s32.totalorder %s38, 0
      %p107 = por %p105, %p106
      %s109 = sadd.s32 %s108, 1
      %p112 = scmp.eq.s32.totalorder %s32, 1
      %p113 = scmp.ne.s32.totalorder %s108, %s110
      %p114 = scmp.eq.s32.totalorder %s32, 0
      %p115 = por %p113, %p114
      %p116 = scmp.ne.s32.totalorder %s108, %s110
      %p117 = scmp.eq.s32.totalorder %s37, 1
      %p118 = por %p116, %p117
      %p119 = scmp.ne.s32.totalorder %s110, %s111
      %p120 = scmp.eq.s32.totalorder %s37, 0
      %p121 = por %p119, %p120
      %p122 = scmp.ne.s32.totalorder %s110, %s111
      %p123 = scmp.eq.s32.totalorder %s38, 1
      %p124 = por %p122, %p123
      %p126 = scmp.ne.s32.totalorder %s111, %s125
      %p127 = scmp.eq.s32.totalorder %s38, 0
      %p128 = por %p126, %p127
      %s130 = sadd.s32 %s129, 1
      %p133 = scmp.eq.s32.totalorder %s32, 1
      %p134 = scmp.ne.s32.totalorder %s129, %s131
      %p135 = scmp.eq.s32.totalorder %s32, 0
      %p136 = por %p134, %p135
      %p137 = scmp.ne.s32.totalorder %s129, %s131
      %p138 = scmp.eq.s32.totalorder %s37, 1
      %p139 = por %p137, %p138
      %p140 = scmp.ne.s32.totalorder %s131, %s132
      %p141 = scmp.eq.s32.totalorder %s37, 0
      %p142 = por %p140, %p141
      %p143 = scmp.ne.s32.totalorder %s131, %s132
      %p144 = scmp.eq.s32.totalorder %s38, 1
      %p145 = por %p143, %p144
      %p147 = scmp.ne.s32.totalorder %s132, %s146
      %p148 = scmp.eq.s32.totalorder %s38, 0
      %p149 = por %p147, %p148
      %s151 = sadd.s32 %s150, 1
      %p154 = scmp.eq.s32.totalorder %s32, 1
      %p155 = scmp.ne.s32.totalorder %s150, %s152
      %p156 = scmp.eq.s32.totalorder %s32, 0
      %p157 = por %p155, %p156
      %p158 = scmp.ne.s32.totalorder %s150, %s152
      %p159 = scmp.eq.s32.totalorder %s37, 1
      %p160 = por %p158, %p159
      %p161 = scmp.ne.s32.totalorder %s152, %s153
      %p162 = scmp.eq.s32.totalorder %s37, 0
      %p163 = por %p161, %p162
      %p164 = scmp.ne.s32.totalorder %s152, %s153
      %p165 = scmp.eq.s32.totalorder %s38, 1
      %p166 = por %p164, %p165
      %p168 = scmp.ne.s32.totalorder %s153, %s167
      %p169 = scmp.eq.s32.totalorder %s38, 0
      %p170 = por %p168, %p169
      %s172 = sadd.s32 %s171, 1
      %p175 = scmp.eq.s32.totalorder %s32, 1
      %p176 = scmp.ne.s32.totalorder %s171, %s173
      %p177 = scmp.eq.s32.totalorder %s32, 0
      %p178 = por %p176, %p177
      %p179 = scmp.ne.s32.totalorder %s171, %s173
      %p180 = scmp.eq.s32.totalorder %s37, 1
      %p181 = por %p179, %p180
      %p182 = scmp.ne.s32.totalorder %s173, %s174
      %p183 = scmp.eq.s32.totalorder %s37, 0
      %p184 = por %p182, %p183
      %p185 = scmp.ne.s32.totalorder %s173, %s174
      %p186 = scmp.eq.s32.totalorder %s38, 1
      %p187 = por %p185, %p186
      %p189 = scmp.ne.s32.totalorder %s174, %s188
      %p190 = scmp.eq.s32.totalorder %s38, 0
      %p191 = por %p189, %p190
      %s193 = sadd.s32 %s192, 1
      %p196 = scmp.eq.s32.totalorder %s32, 1
      %p197 = scmp.ne.s32.totalorder %s192, %s194
      %p198 = scmp.eq.s32.totalorder %s32, 0
      %p199 = por %p197, %p198
      %p200 = scmp.ne.s32.totalorder %s192, %s194
      %p201 = scmp.eq.s32.totalorder %s37, 1
      %p202 = por %p200, %p201
      %p203 = scmp.ne.s32.totalorder %s194, %s195
      %p204 = scmp.eq.s32.totalorder %s37, 0
      %p205 = por %p203, %p204
      %p206 = scmp.ne.s32.totalorder %s194, %s195
      %p207 = scmp.eq.s32.totalorder %s38, 1
      %p208 = por %p206, %p207
      %p210 = scmp.ne.s32.totalorder %s195, %s209
      %p211 = scmp.eq.s32.totalorder %s38, 0
      %p212 = por %p210, %p211
      %s214 = sadd.s32 %s213, 1
      %p217 = scmp.eq.s32.totalorder %s32, 1
      %p218 = scmp.ne.s32.totalorder %s213, %s215
      %p219 = scmp.eq.s32.totalorder %s32, 0
      %p220 = por %p218, %p219
      %p221 = scmp.ne.s32.totalorder %s213, %s215
      %p222 = scmp.eq.s32.totalorder %s37, 1
      %p223 = por %p221, %p222
      %p224 = scmp.ne.s32.totalorder %s215, %s216
      %p225 = scmp.eq.s32.totalorder %s37, 0
      %p226 = por %p224, %p225
      %p227 = scmp.ne.s32.totalorder %s215, %s216
      %p228 = scmp.eq.s32.totalorder %s38, 1
      %p229 = por %p227, %p228
      %p231 = scmp.ne.s32.totalorder %s216, %s230
      %p232 = scmp.eq.s32.totalorder %s38, 0
      %p233 = por %p231, %p232
      %s235 = sadd.s32 %s234, 1
      %p238 = scmp.eq.s32.totalorder %s32, 1
      %p239 = scmp.ne.s32.totalorder %s234, %s236
      %p240 = scmp.eq.s32.totalorder %s32, 0
      %p241 = por %p239, %p240
      %p242 = scmp.ne.s32.totalorder %s234, %s236
      %p243 = scmp.eq.s32.totalorder %s37, 1
      %p244 = por %p242, %p243
      %p245 = scmp.ne.s32.totalorder %s236, %s237
      %p246 = scmp.eq.s32.totalorder %s37, 0
      %p247 = por %p245, %p246
      %p248 = scmp.ne.s32.totalorder %s236, %s237
      %p249 = scmp.eq.s32.totalorder %s38, 1
      %p250 = por %p248, %p249
      %p252 = scmp.ne.s32.totalorder %s237, %s251
      %p253 = scmp.eq.s32.totalorder %s38, 0
      %p254 = por %p252, %p253
      %s256 = sadd.s32 %s255, 1
      %p259 = scmp.eq.s32.totalorder %s32, 1
      %p260 = scmp.ne.s32.totalorder %s255, %s257
      %p261 = scmp.eq.s32.totalorder %s32, 0
      %p262 = por %p260, %p261
      %p263 = scmp.ne.s32.totalorder %s255, %s257
      %p264 = scmp.eq.s32.totalorder %s37, 1
      %p265 = por %p263, %p264
      %p266 = scmp.ne.s32.totalorder %s257, %s258
      %p267 = scmp.eq.s32.totalorder %s37, 0
      %p268 = por %p266, %p267
      %p269 = scmp.ne.s32.totalorder %s257, %s258
      %p270 = scmp.eq.s32.totalorder %s38, 1
      %p271 = por %p269, %p270
      %p273 = scmp.ne.s32.totalorder %s258, %s272
      %p274 = scmp.eq.s32.totalorder %s38, 0
      %p275 = por %p273, %p274
      %s277 = sadd.s32 %s276, 1
      %p280 = scmp.eq.s32.totalorder %s32, 1
      %p281 = scmp.ne.s32.totalorder %s276, %s278
      %p282 = scmp.eq.s32.totalorder %s32, 0
      %p283 = por %p281, %p282
      %p284 = scmp.ne.s32.totalorder %s276, %s278
      %p285 = scmp.eq.s32.totalorder %s37, 1
      %p286 = por %p284, %p285
      %p287 = scmp.ne.s32.totalorder %s278, %s279
      %p288 = scmp.eq.s32.totalorder %s37, 0
      %p289 = por %p287, %p288
      %p290 = scmp.ne.s32.totalorder %s278, %s279
      %p291 = scmp.eq.s32.totalorder %s38, 1
      %p292 = por %p290, %p291
      %p294 = scmp.ne.s32.totalorder %s279, %s293
      %p295 = scmp.eq.s32.totalorder %s38, 0
      %p296 = por %p294, %p295
      %s298 = sadd.s32 %s297, 1
      %p301 = scmp.eq.s32.totalorder %s32, 1
      %p302 = scmp.ne.s32.totalorder %s297, %s299
      %p303 = scmp.eq.s32.totalorder %s32, 0
      %p304 = por %p302, %p303
      %p305 = scmp.ne.s32.totalorder %s297, %s299
      %p306 = scmp.eq.s32.totalorder %s37, 1
      %p307 = por %p305, %p306
      %p308 = scmp.ne.s32.totalorder %s299, %s300
      %p309 = scmp.eq.s32.totalorder %s37, 0
      %p310 = por %p308, %p309
      %p311 = scmp.ne.s32.totalorder %s299, %s300
      %p312 = scmp.eq.s32.totalorder %s38, 1
      %p313 = por %p311, %p312
      %p315 = scmp.ne.s32.totalorder %s300, %s314
      %p316 = scmp.eq.s32.totalorder %s38, 0
      %p317 = por %p315, %p316
      %s319 = sadd.s32 %s318, 1
      %p322 = scmp.eq.s32.totalorder %s32, 1
      %p323 = scmp.ne.s32.totalorder %s318, %s320
      %p324 = scmp.eq.s32.totalorder %s32, 0
      %p325 = por %p323, %p324
      %p326 = scmp.ne.s32.totalorder %s318, %s320
      %p327 = scmp.eq.s32.totalorder %s37, 1
      %p328 = por %p326, %p327
      %p329 = scmp.ne.s32.totalorder %s320, %s321
      %p330 = scmp.eq.s32.totalorder %s37, 0
      %p331 = por %p329, %p330
      %p332 = scmp.ne.s32.totalorder %s320, %s321
      %p333 = scmp.eq.s32.totalorder %s38, 1
      %p334 = por %p332, %p333
      %p336 = scmp.ne.s32.totalorder %s321, %s335
      %p337 = scmp.eq.s32.totalorder %s38, 0
      %p338 = por %p336, %p337
      %s340 = sadd.s32 %s339, 1
      %p343 = scmp.eq.s32.totalorder %s32, 1
      %p344 = scmp.ne.s32.totalorder %s339, %s341
      %p345 = scmp.eq.s32.totalorder %s32, 0
      %p346 = por %p344, %p345
      %p347 = scmp.ne.s32.totalorder %s339, %s341
      %p348 = scmp.eq.s32.totalorder %s37, 1
      %p349 = por %p347, %p348
      %p350 = scmp.ne.s32.totalorder %s341, %s342
      %p351 = scmp.eq.s32.totalorder %s37, 0
      %p352 = por %p350, %p351
      %p353 = scmp.ne.s32.totalorder %s341, %s342
      %p354 = scmp.eq.s32.totalorder %s38, 1
      %p355 = por %p353, %p354
      %p357 = scmp.ne.s32.totalorder %s342, %s356
      %p358 = scmp.eq.s32.totalorder %s38, 0
      %p359 = por %p357, %p358
      %s361 = sadd.s32 %s360, 1
      %p364 = scmp.eq.s32.totalorder %s32, 1
      %p365 = scmp.ne.s32.totalorder %s360, %s362
      %p366 = scmp.eq.s32.totalorder %s32, 0
      %p367 = por %p365, %p366
      %p368 = scmp.ne.s32.totalorder %s360, %s362
      %p369 = scmp.eq.s32.totalorder %s37, 1
      %p370 = por %p368, %p369
      %p371 = scmp.ne.s32.totalorder %s362, %s363
      %p372 = scmp.eq.s32.totalorder %s37, 0
      %p373 = por %p371, %p372
      %p374 = scmp.ne.s32.totalorder %s362, %s363
      %p375 = scmp.eq.s32.totalorder %s38, 1
      %p376 = por %p374, %p375
      %p378 = scmp.ne.s32.totalorder %s363, %s377
      %p379 = scmp.eq.s32.totalorder %s38, 0
      %p380 = por %p378, %p379
      %s382 = sadd.s32 %s381, 1
      %p385 = scmp.eq.s32.totalorder %s32, 1
      %p386 = scmp.ne.s32.totalorder %s381, %s383
      %p387 = scmp.eq.s32.totalorder %s32, 0
      %p388 = por %p386, %p387
      %p389 = scmp.ne.s32.totalorder %s381, %s383
      %p390 = scmp.eq.s32.totalorder %s37, 1
      %p391 = por %p389, %p390
      %p392 = scmp.ne.s32.totalorder %s383, %s384
      %p393 = scmp.eq.s32.totalorder %s37, 0
      %p394 = por %p392, %p393
      %p395 = scmp.ne.s32.totalorder %s383, %s384
      %p396 = scmp.eq.s32.totalorder %s38, 1
      %p397 = por %p395, %p396
      %p399 = scmp.ne.s32.totalorder %s384, %s398
      %p400 = scmp.eq.s32.totalorder %s38, 0
      %p401 = por %p399, %p400
      %s403 = sadd.s32 %s402, 1
      %p406 = scmp.eq.s32.totalorder %s32, 1
      %p407 = scmp.ne.s32.totalorder %s402, %s404
      %p408 = scmp.eq.s32.totalorder %s32, 0
      %p409 = por %p407, %p408
      %p410 = scmp.ne.s32.totalorder %s402, %s404
      %p411 = scmp.eq.s32.totalorder %s37, 1
      %p412 = por %p410, %p411
      %p413 = scmp.ne.s32.totalorder %s404, %s405
      %p414 = scmp.eq.s32.totalorder %s37, 0
      %p415 = por %p413, %p414
      %p416 = scmp.ne.s32.totalorder %s404, %s405
      %p417 = scmp.eq.s32.totalorder %s38, 1
      %p418 = por %p416, %p417
      %p420 = scmp.ne.s32.totalorder %s405, %s419
      %p421 = scmp.eq.s32.totalorder %s38, 0
      %p422 = por %p420, %p421
      %s423 = ssub.s32 %s32, %s39
      %p424 = scmp.eq.s32.totalorder %s423, 0
      %s426 = sadd.s32 %s425, 1
      %s427 = scalar_select %p424, %s425, %s426
      %p430 = pneg %p424
      %p431 = scmp.eq.s32.totalorder %s32, 1
      %p432 = por %p430, %p431
      %p433 = scmp.ne.s32.totalorder %s425, %s428
      %p434 = scmp.eq.s32.totalorder %s32, 0
      %p435 = por %p433, %p434
      %p436 = scmp.ne.s32.totalorder %s425, %s428
      %p437 = scmp.eq.s32.totalorder %s37, 1
      %p438 = por %p436, %p437
      %p439 = scmp.ne.s32.totalorder %s428, %s429
      %p440 = scmp.eq.s32.totalorder %s37, 0
      %p441 = por %p439, %p440
      %p442 = scmp.ne.s32.totalorder %s428, %s429
      %p443 = scmp.eq.s32.totalorder %s38, 1
      %p444 = por %p442, %p443
      %p446 = scmp.ne.s32.totalorder %s429, %s445
      %p447 = scmp.eq.s32.totalorder %s38, 0
      %p448 = por %p446, %p447
      %s449 = ssub.s32 %s32, %s39
      %p450 = scmp.eq.s32.totalorder %s449, 0
      %s452 = sadd.s32 %s451, 1
      %s453 = scalar_select %p450, %s451, %s452
      %p456 = pneg %p450
      %p457 = scmp.eq.s32.totalorder %s32, 1
      %p458 = por %p456, %p457
      %p459 = scmp.ne.s32.totalorder %s451, %s454
      %p460 = scmp.eq.s32.totalorder %s32, 0
      %p461 = por %p459, %p460
      %p462 = scmp.ne.s32.totalorder %s451, %s454
      %p463 = scmp.eq.s32.totalorder %s37, 1
      %p464 = por %p462, %p463
      %p465 = scmp.ne.s32.totalorder %s454, %s455
      %p466 = scmp.eq.s32.totalorder %s37, 0
      %p467 = por %p465, %p466
      %p468 = scmp.ne.s32.totalorder %s454, %s455
      %p469 = scmp.eq.s32.totalorder %s38, 1
      %p470 = por %p468, %p469
      %p472 = scmp.ne.s32.totalorder %s455, %s471
      %p473 = scmp.eq.s32.totalorder %s38, 0
      %p474 = por %p472, %p473
      %p475 = scmp.le.s32.totalorder 1, %s32
      %p476 = scmp.lt.s32.totalorder %s32, 3
      %p477 = pnand %p475, %p476
      %p478 = pneg %p477
      // Predicated region
      $region9: #{gmac_encoder_forward.1} parent=5 // pred_check
        _
      $region10: #{gmac_encoder_forward.1} parent=5 // pred_check_branch
        %480 = sbr.rel (%p477) target = $region12
      $region11: #{gmac_encoder_forward.1} parent=5 // pred_region
        %s481 = ssub.s32 %s32, 1
        // Predicated region
        $region13: #{gmac_encoder_forward.1} parent=11 // pred_check
          %p482 = pneg %p79
        $region14: #{gmac_encoder_forward.1} parent=11 // pred_check_branch
          %484 = sbr.rel (%p482) target = $region16
        $region15: #{gmac_encoder_forward.1} parent=11 // pred_region
          _
        $region16: #{gmac_encoder_forward.1} parent=11 // pred_fallthru
          _
        // Predicated region
        $region17: #{gmac_encoder_forward.1} parent=11 // pred_check
          %p485 = pneg %p100
        $region18: #{gmac_encoder_forward.1} parent=11 // pred_check_branch
          %487 = sbr.rel (%p485) target = $region20
        $region19: #{gmac_encoder_forward.1} parent=11 // pred_region
          _
        $region20: #{gmac_encoder_forward.1} parent=11 // pred_fallthru
          _
        // Predicated region
        $region21: #{gmac_encoder_forward.1} parent=11 // pred_check
          %p488 = pneg %p121
        $region22: #{gmac_encoder_forward.1} parent=11 // pred_check_branch
          %490 = sbr.rel (%p488) target = $region24
        $region23: #{gmac_encoder_forward.1} parent=11 // pred_region
          _
        $region24: #{gmac_encoder_forward.1} parent=11 // pred_fallthru
          _
        // Predicated region
        $region25: #{gmac_encoder_forward.1} parent=11 // pred_check
          %p491 = pneg %p142
        $region26: #{gmac_encoder_forward.1} parent=11 // pred_check_branch
          %493 = sbr.rel (%p491) target = $region28
        $region27: #{gmac_encoder_forward.1} parent=11 // pred_region
          _
        $region28: #{gmac_encoder_forward.1} parent=11 // pred_fallthru
          _
        // Predicated region
        $region29: #{gmac_encoder_forward.1} parent=11 // pred_check
          %p494 = pneg %p163
        $region30: #{gmac_encoder_forward.1} parent=11 // pred_check_branch
          %496 = sbr.rel (%p494) target = $region32
        $region31: #{gmac_encoder_forward.1} parent=11 // pred_region
          _
        $region32: #{gmac_encoder_forward.1} parent=11 // pred_fallthru
          _
        // Predicated region
        $region33: #{gmac_encoder_forward.1} parent=11 // pred_check
          %p497 = pneg %p184
        $region34: #{gmac_encoder_forward.1} parent=11 // pred_check_branch
          %499 = sbr.rel (%p497) target = $region36
        $region35: #{gmac_encoder_forward.1} parent=11 // pred_region
          _
        $region36: #{gmac_encoder_forward.1} parent=11 // pred_fallthru
          _
        // Predicated region
        $region37: #{gmac_encoder_forward.1} parent=11 // pred_check
          %p500 = pneg %p205
        $region38: #{gmac_encoder_forward.1} parent=11 // pred_check_branch
          %502 = sbr.rel (%p500) target = $region40
        $region39: #{gmac_encoder_forward.1} parent=11 // pred_region
          _
        $region40: #{gmac_encoder_forward.1} parent=11 // pred_fallthru
          _
        // Predicated region
        $region41: #{gmac_encoder_forward.1} parent=11 // pred_check
          %p503 = pneg %p226
        $region42: #{gmac_encoder_forward.1} parent=11 // pred_check_branch
          %505 = sbr.rel (%p503) target = $region44
        $region43: #{gmac_encoder_forward.1} parent=11 // pred_region
          _
        $region44: #{gmac_encoder_forward.1} parent=11 // pred_fallthru
          _
        // Predicated region
        $region45: #{gmac_encoder_forward.1} parent=11 // pred_check
          %p506 = pneg %p247
        $region46: #{gmac_encoder_forward.1} parent=11 // pred_check_branch
          %508 = sbr.rel (%p506) target = $region48
        $region47: #{gmac_encoder_forward.1} parent=11 // pred_region
          _
        $region48: #{gmac_encoder_forward.1} parent=11 // pred_fallthru
          _
        // Predicated region
        $region49: #{gmac_encoder_forward.1} parent=11 // pred_check
          %p509 = pneg %p268
        $region50: #{gmac_encoder_forward.1} parent=11 // pred_check_branch
          %511 = sbr.rel (%p509) target = $region52
        $region51: #{gmac_encoder_forward.1} parent=11 // pred_region
          _
        $region52: #{gmac_encoder_forward.1} parent=11 // pred_fallthru
          _
        // Predicated region
        $region53: #{gmac_encoder_forward.1} parent=11 // pred_check
          %p512 = pneg %p289
        $region54: #{gmac_encoder_forward.1} parent=11 // pred_check_branch
          %514 = sbr.rel (%p512) target = $region56
        $region55: #{gmac_encoder_forward.1} parent=11 // pred_region
          _
        $region56: #{gmac_encoder_forward.1} parent=11 // pred_fallthru
          _
        // Predicated region
        $region57: #{gmac_encoder_forward.1} parent=11 // pred_check
          %p515 = pneg %p310
        $region58: #{gmac_encoder_forward.1} parent=11 // pred_check_branch
          %517 = sbr.rel (%p515) target = $region60
        $region59: #{gmac_encoder_forward.1} parent=11 // pred_region
          _
        $region60: #{gmac_encoder_forward.1} parent=11 // pred_fallthru
          _
        // Predicated region
        $region61: #{gmac_encoder_forward.1} parent=11 // pred_check
          %p518 = pneg %p331
        $region62: #{gmac_encoder_forward.1} parent=11 // pred_check_branch
          %520 = sbr.rel (%p518) target = $region64
        $region63: #{gmac_encoder_forward.1} parent=11 // pred_region
          _
        $region64: #{gmac_encoder_forward.1} parent=11 // pred_fallthru
          _
        // Predicated region
        $region65: #{gmac_encoder_forward.1} parent=11 // pred_check
          %p521 = pneg %p352
        $region66: #{gmac_encoder_forward.1} parent=11 // pred_check_branch
          %523 = sbr.rel (%p521) target = $region68
        $region67: #{gmac_encoder_forward.1} parent=11 // pred_region
          _
        $region68: #{gmac_encoder_forward.1} parent=11 // pred_fallthru
          _
        // Predicated region
        $region69: #{gmac_encoder_forward.1} parent=11 // pred_check
          %p524 = pneg %p373
        $region70: #{gmac_encoder_forward.1} parent=11 // pred_check_branch
          %526 = sbr.rel (%p524) target = $region72
        $region71: #{gmac_encoder_forward.1} parent=11 // pred_region
          _
        $region72: #{gmac_encoder_forward.1} parent=11 // pred_fallthru
          _
        // Predicated region
        $region73: #{gmac_encoder_forward.1} parent=11 // pred_check
          %p527 = pneg %p394
        $region74: #{gmac_encoder_forward.1} parent=11 // pred_check_branch
          %529 = sbr.rel (%p527) target = $region76
        $region75: #{gmac_encoder_forward.1} parent=11 // pred_region
          _
        $region76: #{gmac_encoder_forward.1} parent=11 // pred_fallthru
          _
        // Predicated region
        $region77: #{gmac_encoder_forward.1} parent=11 // pred_check
          %p530 = pneg %p415
        $region78: #{gmac_encoder_forward.1} parent=11 // pred_check_branch
          %532 = sbr.rel (%p530) target = $region80
        $region79: #{gmac_encoder_forward.1} parent=11 // pred_region
          _
        $region80: #{gmac_encoder_forward.1} parent=11 // pred_fallthru
          _
      $region12: #{gmac_encoder_forward.1} parent=5 // pred_fallthru
        _
      %p533 = scmp.lt.s32.totalorder %s32, 2
      // Predicated region
      $region81: #{gmac_encoder_forward.1} parent=5 // pred_check
        %p534 = pneg %p533
      $region82: #{gmac_encoder_forward.1} parent=5 // pred_check_branch
        %536 = sbr.rel (%p534) target = $region84
      $region83: #{gmac_encoder_forward.1} parent=5 // pred_region
        // Predicated region
        $region85: #{gmac_encoder_forward.1} parent=83 // pred_check
          %p537 = pneg %p52
        $region86: #{gmac_encoder_forward.1} parent=83 // pred_check_branch
          %539 = sbr.rel (%p537) target = $region88
        $region87: #{gmac_encoder_forward.1} parent=83 // pred_region
          %s540 = smul.u32 41, %s32
          %p541 = scmp.lt.s32.totalorder %s540, 81
          %s542 = scalar_select %p541, %s540, 81
          %s543 = smul.addr %s542, 4
          %s544 = scalar_lea.vmem %s0, %s543
          %s545 = smul.u32 41, %s32
        $region88: #{gmac_encoder_forward.1} parent=83 // pred_fallthru
          _
      $region84: #{gmac_encoder_forward.1} parent=5 // pred_fallthru
        _
      %p546 = scmp.le.s32.totalorder 1, %s32
      %p547 = scmp.lt.s32.totalorder %s32, 3
      %p548 = pnand %p546, %p547
      %p549 = pneg %p548
      // Predicated region
      $region89: #{gmac_encoder_forward.1} parent=5 // pred_check
        _
      $region90: #{gmac_encoder_forward.1} parent=5 // pred_check_branch
        %551 = sbr.rel (%p548) target = $region92
      $region91: #{gmac_encoder_forward.1} parent=5 // pred_region
        %s552 = ssub.s32 %s32, 1
        %s553 = smul.u32 41, %s37
        %p554 = scmp.lt.s32.totalorder %s553, 81
        %s555 = scalar_select %p554, %s553, 81
        %s556 = smul.addr %s555, 4
        %s557 = scalar_lea.vmem %s0, %s556
        %p558 = pneg %p58
        %p559 = pneg %p55
        %p560 = pneg %p79
        %p561 = pneg %p76
        %p562 = pneg %p100
        %p563 = pneg %p97
        %p564 = pneg %p121
        %p565 = pneg %p118
        %p566 = pneg %p142
        %p567 = pneg %p139
        %p568 = pneg %p163
        %p569 = pneg %p160
        %p570 = pneg %p184
        %p571 = pneg %p181
        %p572 = pneg %p205
        %p573 = pneg %p202
        %p574 = pneg %p226
        %p575 = pneg %p223
        %p576 = pneg %p247
        %p577 = pneg %p244
        %p578 = pneg %p268
        %p579 = pneg %p265
        %p580 = pneg %p289
        %p581 = pneg %p286
        %p582 = pneg %p310
        %p583 = pneg %p307
        %p584 = pneg %p331
        %p585 = pneg %p328
        %p586 = pneg %p352
        %p587 = pneg %p349
        %p588 = pneg %p373
        %p589 = pneg %p370
        %p590 = pneg %p394
        %p591 = pneg %p391
        %p592 = pneg %p415
        %p593 = pneg %p412
        %p594 = pneg %p441
        %p595 = pneg %p438
        %s596 = sand.u32 %s428, 1
        %s597 = scalar_lea.sflag [#allocation7], %s596
        %s598 = sand.u32 %s428, 1
        %s599 = scalar_lea.vmem [#allocation6], %s598
        %p600 = pneg %p467
        %p601 = pneg %p464
        %s602 = sand.u32 %s454, 1
        %s603 = scalar_lea.sflag [#allocation9], %s602
        %s604 = sand.u32 %s454, 1
        %s605 = scalar_lea.vmem [#allocation8], %s604
        %s606 = smul.u32 41, %s37
        %p607 = scmp.lt.s32.totalorder %s606, 81
        %s608 = scalar_select %p607, %s606, 81
        %s609 = smul.addr %s608, 4
        %s610 = scalar_lea.vmem %s0, %s609
        %s611 = smul.u32 41, %s37
        %v613 = vld [vmem:[%s610] sm:$0xf]
        %v614 = vld [vmem:[%s610 + $0x4] sm:$0xf]
        %v615 = vld [vmem:[%s610 + $0x8] sm:$0xf]
        %v616 = vld [vmem:[%s610 + $0xc] sm:$0xf]
        %v617 = vld [vmem:[%s610 + $0x10] sm:$0xf]
        %v618 = vld [vmem:[%s610 + $0x14] sm:$0xf]
        %v619 = vld [vmem:[%s610 + $0x18] sm:$0xf]
        %v620 = vld [vmem:[%s610 + $0x1c] sm:$0xf]
        %v621 = vld [vmem:[%s610 + $0x20] sm:$0xf]
        %v622 = vld [vmem:[%s610 + $0x24] sm:$0xf]
        %v623 = vld [vmem:[%s610 + $0x28] sm:$0xf]
        %v624 = vld [vmem:[%s610 + $0x2c] sm:$0xf]
        %v625 = vld [vmem:[%s610 + $0x30] sm:$0xf]
        %v626 = vld [vmem:[%s610 + $0x34] sm:$0xf]
        %v627 = vld [vmem:[%s610 + $0x38] sm:$0xf]
        %v628 = vld [vmem:[%s610 + $0x3c] sm:$0xf]
        %v629 = vld [vmem:[%s610 + $0x40] sm:$0xf]
        %v630 = vld [vmem:[%s610 + $0x44] sm:$0xf]
        %v631 = vld [vmem:[%s610 + $0x48] sm:$0xf]
        %v632 = vld [vmem:[%s610 + $0x4c] sm:$0xf]
        %v633 = vld [vmem:[%s610 + $0x50] sm:$0xf]
        %v634 = vld [vmem:[%s610 + $0x54] sm:$0xf]
        %v635 = vld [vmem:[%s610 + $0x58] sm:$0xf]
        %v636 = vld [vmem:[%s610 + $0x5c] sm:$0xf]
        %v637 = vld [vmem:[%s610 + $0x60] sm:$0xf]
        %v638 = vld [vmem:[%s610 + $0x64] sm:$0xf]
        %v639 = vld [vmem:[%s610 + $0x68] sm:$0xf]
        %v640 = vld [vmem:[%s610 + $0x6c] sm:$0xf]
        %v641 = vld [vmem:[%s610 + $0x70] sm:$0xf]
        %v642 = vld [vmem:[%s610 + $0x74] sm:$0xf]
        %v643 = vld [vmem:[%s610 + $0x78] sm:$0xf]
        %v644 = vld [vmem:[%s610 + $0x7c] sm:$0xf]
        %v645 = vld [vmem:[%s610 + $0x80] sm:$0xf]
        %v646 = vld [vmem:[%s610 + $0x84] sm:$0xf]
        %v647 = vld [vmem:[%s610 + $0x88] sm:$0xf]
        %v648 = vld [vmem:[%s610 + $0x8c] sm:$0xf]
        %v649 = vld [vmem:[%s610 + $0x90] sm:$0x1]
        %v650 = vld [vmem:[%s610] sm:$0xe]
        %v651 = vld [vmem:[%s610 + $0x8] sm:$0xe]
        %v652 = vld [vmem:[%s610 + $0x90] sm:$0xf]
        %v653 = vld [vmem:[%s610 + $0x94] sm:$0xf]
        %v654 = vld [vmem:[%s610 + $0x98] sm:$0x1]
        %v655 = vld [vmem:[%s610 + $0x98] sm:$0x3]
        %v656 = vld [vmem:[%s610 + $0x8] sm:$0xc]
        %v657 = vld [vmem:[%s610 + $0x10] sm:$0xc]
        %v658 = vld [vmem:[%s610 + $0x98] sm:$0xf]
        %v659 = vld [vmem:[%s610 + $0x9c] sm:$0xf]
        %v660 = vld [vmem:[%s610 + $0xa0] sm:$0x3]
        %v661 = vld [vmem:[%s610 + $0xa0] sm:$0x7]
        %v662 = vld [vmem:[%s610 + $0x10] sm:$0x8]
        %v699 = vunpack.c.l.b16 %v613
        %v700 = vunpack.c.l.b16 %v614
        %v701 = vunpack.c.l.b16 %v615
        %v702 = vunpack.c.l.b16 %v616
        %v703 = vunpack.c.l.b16 %v617
        %v704 = vunpack.c.l.b16 %v618
        %v705 = vunpack.c.l.b16 %v619
        %v706 = vunpack.c.l.b16 %v620
        %v707 = vunpack.c.l.b16 %v621
        %v708 = vunpack.c.l.b16 %v622
        %v709 = vunpack.c.l.b16 %v623
        %v710 = vunpack.c.l.b16 %v624
        %v711 = vunpack.c.l.b16 %v625
        %v712 = vunpack.c.l.b16 %v626
        %v713 = vunpack.c.l.b16 %v627
        %v714 = vunpack.c.l.b16 %v628
        %v715 = vunpack.c.l.b16 %v629
        %v716 = vunpack.c.l.b16 %v630
        %v717 = vunpack.c.l.b16 %v631
        %v718 = vunpack.c.l.b16 %v632
        %v719 = vunpack.c.l.b16 %v633
        %v720 = vunpack.c.l.b16 %v634
        %v721 = vunpack.c.l.b16 %v635
        %v722 = vunpack.c.l.b16 %v636
        %v723 = vunpack.c.l.b16 %v637
        %v724 = vunpack.c.l.b16 %v638
        %v725 = vunpack.c.l.b16 %v639
        %v726 = vunpack.c.l.b16 %v640
        %v727 = vunpack.c.l.b16 %v641
        %v728 = vunpack.c.l.b16 %v642
        %v729 = vunpack.c.l.b16 %v643
        %v730 = vunpack.c.l.b16 %v644
        %v731 = vunpack.c.l.b16 %v645
        %v732 = vunpack.c.l.b16 %v646
        %v733 = vunpack.c.l.b16 %v647
        %v734 = vunpack.c.l.b16 %v648
        %v735 = vpack.c.b16 %v700, %v699
        %v736 = vpack.c.b16 %v702, %v701
        %v737 = vpack.c.b16 %v704, %v703
        %v738 = vpack.c.b16 %v706, %v705
        %v739 = vpack.c.b16 %v708, %v707
        %v740 = vpack.c.b16 %v710, %v709
        %v741 = vpack.c.b16 %v712, %v711
        %v742 = vpack.c.b16 %v714, %v713
        %v743 = vpack.c.b16 %v716, %v715
        %v744 = vpack.c.b16 %v718, %v717
        %v745 = vpack.c.b16 %v720, %v719
        %v746 = vpack.c.b16 %v722, %v721
        %v747 = vpack.c.b16 %v724, %v723
        %v748 = vpack.c.b16 %v726, %v725
        %v749 = vpack.c.b16 %v728, %v727
        %v750 = vpack.c.b16 %v730, %v729
        %v751 = vpack.c.b16 %v732, %v731
        %v752 = vpack.c.b16 %v734, %v733
        %v754 = vunpack.c.l.b16 %v649
        %v755 = vpack.c.b16 %v754, %v754
        %vm756 = vsmask.f32 7424
        %v758 = vshrl.u32 %v735, 16
        %v760 = vshll.u32 %v735, 16
        %v762 = vrot.slane %v760, 1
        %v763 = vor.u32 %v758, %v762
        %v765 = vshll.u32 %v736, 16
        %v767 = vrot.slane %v765, 1
        %v768 = vsel %vm756, %v763, %v767
        %v769 = vshrl.u32 %v736, 16
        %v771 = vor.u32 %v769, %v767
        %v773 = vshll.u32 %v737, 16
        %v775 = vrot.slane %v773, 1
        %v776 = vsel %vm756, %v771, %v775
        %v777 = vshrl.u32 %v737, 16
        %v779 = vor.u32 %v777, %v775
        %v781 = vshll.u32 %v738, 16
        %v783 = vrot.slane %v781, 1
        %v784 = vsel %vm756, %v779, %v783
        %v785 = vshrl.u32 %v738, 16
        %v787 = vor.u32 %v785, %v783
        %v789 = vshll.u32 %v739, 16
        %v791 = vrot.slane %v789, 1
        %v792 = vsel %vm756, %v787, %v791
        %v793 = vshrl.u32 %v739, 16
        %v795 = vor.u32 %v793, %v791
        %v797 = vshll.u32 %v740, 16
        %v799 = vrot.slane %v797, 1
        %v800 = vsel %vm756, %v795, %v799
        %v801 = vshrl.u32 %v740, 16
        %v803 = vor.u32 %v801, %v799
        %v805 = vshll.u32 %v741, 16
        %v807 = vrot.slane %v805, 1
        %v808 = vsel %vm756, %v803, %v807
        %v809 = vshrl.u32 %v741, 16
        %v811 = vor.u32 %v809, %v807
        %v813 = vshll.u32 %v742, 16
        %v815 = vrot.slane %v813, 1
        %v816 = vsel %vm756, %v811, %v815
        %v817 = vshrl.u32 %v742, 16
        %v819 = vor.u32 %v817, %v815
        %v821 = vshll.u32 %v743, 16
        %v823 = vrot.slane %v821, 1
        %v824 = vsel %vm756, %v819, %v823
        %v825 = vshrl.u32 %v743, 16
        %v827 = vor.u32 %v825, %v823
        %v829 = vshll.u32 %v744, 16
        %v831 = vrot.slane %v829, 1
        %v832 = vsel %vm756, %v827, %v831
        %v833 = vshrl.u32 %v744, 16
        %v835 = vor.u32 %v833, %v831
        %v837 = vshll.u32 %v745, 16
        %v839 = vrot.slane %v837, 1
        %v840 = vsel %vm756, %v835, %v839
        %v841 = vshrl.u32 %v745, 16
        %v843 = vor.u32 %v841, %v839
        %v845 = vshll.u32 %v746, 16
        %v847 = vrot.slane %v845, 1
        %v848 = vsel %vm756, %v843, %v847
        %v849 = vshrl.u32 %v746, 16
        %v851 = vor.u32 %v849, %v847
        %v853 = vshll.u32 %v747, 16
        %v855 = vrot.slane %v853, 1
        %v856 = vsel %vm756, %v851, %v855
        %v857 = vshrl.u32 %v747, 16
        %v859 = vor.u32 %v857, %v855
        %v861 = vshll.u32 %v748, 16
        %v863 = vrot.slane %v861, 1
        %v864 = vsel %vm756, %v859, %v863
        %v865 = vshrl.u32 %v748, 16
        %v867 = vor.u32 %v865, %v863
        %v869 = vshll.u32 %v749, 16
        %v871 = vrot.slane %v869, 1
        %v872 = vsel %vm756, %v867, %v871
        %v873 = vshrl.u32 %v749, 16
        %v875 = vor.u32 %v873, %v871
        %v877 = vshll.u32 %v750, 16
        %v879 = vrot.slane %v877, 1
        %v880 = vsel %vm756, %v875, %v879
        %v881 = vshrl.u32 %v750, 16
        %v883 = vor.u32 %v881, %v879
        %v885 = vshll.u32 %v751, 16
        %v887 = vrot.slane %v885, 1
        %v888 = vsel %vm756, %v883, %v887
        %v889 = vshrl.u32 %v751, 16
        %v891 = vor.u32 %v889, %v887
        %v893 = vshll.u32 %v752, 16
        %v895 = vrot.slane %v893, 1
        %v896 = vsel %vm756, %v891, %v895
        %v897 = vshrl.u32 %v752, 16
        %v899 = vor.u32 %v897, %v895
        %v901 = vshll.u32 %v755, 16
        %v903 = vrot.slane %v901, 1
        %v904 = vsel %vm756, %v899, %v903
        %905 = vrot.lane.b32.xlu0 %v768, 3
        %v906 = vpop.permute.xlu0 %905
        %907 = vrot.lane.b32.xlu0 %v776, 3
        %v908 = vpop.permute.xlu0 %907
        %909 = vrot.lane.b32.xlu0 %v784, 3
        %v910 = vpop.permute.xlu0 %909
        %911 = vrot.lane.b32.xlu0 %v792, 3
        %v912 = vpop.permute.xlu0 %911
        %913 = vrot.lane.b32.xlu0 %v800, 3
        %v914 = vpop.permute.xlu0 %913
        %915 = vrot.lane.b32.xlu0 %v808, 3
        %v916 = vpop.permute.xlu0 %915
        %917 = vrot.lane.b32.xlu0 %v816, 3
        %v918 = vpop.permute.xlu0 %917
        %919 = vrot.lane.b32.xlu0 %v824, 3
        %v920 = vpop.permute.xlu0 %919
        %921 = vrot.lane.b32.xlu0 %v832, 3
        %v922 = vpop.permute.xlu0 %921
        %923 = vrot.lane.b32.xlu0 %v840, 3
        %v924 = vpop.permute.xlu0 %923
        %925 = vrot.lane.b32.xlu0 %v848, 3
        %v926 = vpop.permute.xlu0 %925
        %927 = vrot.lane.b32.xlu0 %v856, 3
        %v928 = vpop.permute.xlu0 %927
        %929 = vrot.lane.b32.xlu0 %v864, 3
        %v930 = vpop.permute.xlu0 %929
        %931 = vrot.lane.b32.xlu0 %v872, 3
        %v932 = vpop.permute.xlu0 %931
        %933 = vrot.lane.b32.xlu0 %v880, 3
        %v934 = vpop.permute.xlu0 %933
        %935 = vrot.lane.b32.xlu0 %v888, 3
        %v936 = vpop.permute.xlu0 %935
        %937 = vrot.lane.b32.xlu0 %v896, 3
        %v938 = vpop.permute.xlu0 %937
        %939 = vrot.lane.b32.xlu0 %v904, 3
        %v940 = vpop.permute.xlu0 %939
        %v942 = vunpack.c.l.b16 %v650
        %v943 = vpack.c.b16 %v700, %v942
        %vm944 = vcmask 1046528
        %v945 = vrot.slane %v943, 1
        %v946 = vrot.slane %v736, 1
        %v947 = vsel %vm944, %v945, %v946
        %v948 = vrot.slane %v737, 1
        %v949 = vsel %vm944, %v946, %v948
        %v950 = vrot.slane %v738, 1
        %v951 = vsel %vm944, %v948, %v950
        %v952 = vrot.slane %v739, 1
        %v953 = vsel %vm944, %v950, %v952
        %v954 = vrot.slane %v740, 1
        %v955 = vsel %vm944, %v952, %v954
        %v956 = vrot.slane %v741, 1
        %v957 = vsel %vm944, %v954, %v956
        %v958 = vrot.slane %v742, 1
        %v959 = vsel %vm944, %v956, %v958
        %v960 = vrot.slane %v743, 1
        %v961 = vsel %vm944, %v958, %v960
        %v962 = vrot.slane %v744, 1
        %v963 = vsel %vm944, %v960, %v962
        %v964 = vrot.slane %v745, 1
        %v965 = vsel %vm944, %v962, %v964
        %v966 = vrot.slane %v746, 1
        %v967 = vsel %vm944, %v964, %v966
        %v968 = vrot.slane %v747, 1
        %v969 = vsel %vm944, %v966, %v968
        %v970 = vrot.slane %v748, 1
        %v971 = vsel %vm944, %v968, %v970
        %v972 = vrot.slane %v749, 1
        %v973 = vsel %vm944, %v970, %v972
        %v974 = vrot.slane %v750, 1
        %v975 = vsel %vm944, %v972, %v974
        %v976 = vrot.slane %v751, 1
        %v977 = vsel %vm944, %v974, %v976
        %v978 = vrot.slane %v752, 1
        %v979 = vsel %vm944, %v976, %v978
        %v980 = vrot.slane %v755, 1
        %v981 = vsel %vm944, %v978, %v980
        %982 = vrot.lane.b32.xlu0 %v947, 6
        %v983 = vpop.permute.xlu0 %982
        %984 = vrot.lane.b32.xlu0 %v949, 6
        %v985 = vpop.permute.xlu0 %984
        %986 = vrot.lane.b32.xlu0 %v951, 6
        %v987 = vpop.permute.xlu0 %986
        %988 = vrot.lane.b32.xlu0 %v953, 6
        %v989 = vpop.permute.xlu0 %988
        %990 = vrot.lane.b32.xlu0 %v955, 6
        %v991 = vpop.permute.xlu0 %990
        %992 = vrot.lane.b32.xlu0 %v957, 6
        %v993 = vpop.permute.xlu0 %992
        %994 = vrot.lane.b32.xlu0 %v959, 6
        %v995 = vpop.permute.xlu0 %994
        %996 = vrot.lane.b32.xlu0 %v961, 6
        %v997 = vpop.permute.xlu0 %996
        %998 = vrot.lane.b32.xlu0 %v963, 6
        %v999 = vpop.permute.xlu0 %998
        %1000 = vrot.lane.b32.xlu0 %v965, 6
        %v1001 = vpop.permute.xlu0 %1000
        %1002 = vrot.lane.b32.xlu0 %v967, 6
        %v1003 = vpop.permute.xlu0 %1002
        %1004 = vrot.lane.b32.xlu0 %v969, 6
        %v1005 = vpop.permute.xlu0 %1004
        %1006 = vrot.lane.b32.xlu0 %v971, 6
        %v1007 = vpop.permute.xlu0 %1006
        %1008 = vrot.lane.b32.xlu0 %v973, 6
        %v1009 = vpop.permute.xlu0 %1008
        %1010 = vrot.lane.b32.xlu0 %v975, 6
        %v1011 = vpop.permute.xlu0 %1010
        %1012 = vrot.lane.b32.xlu0 %v977, 6
        %v1013 = vpop.permute.xlu0 %1012
        %1014 = vrot.lane.b32.xlu0 %v979, 6
        %v1015 = vpop.permute.xlu0 %1014
        %1016 = vrot.lane.b32.xlu0 %v981, 6
        %v1017 = vpop.permute.xlu0 %1016
        %v1022 = vunpack.c.l.b16 %v651
        %v1023 = vunpack.c.l.b16 %v652
        %v1024 = vunpack.c.l.b16 %v653
        %v1025 = vunpack.c.l.b16 %v654
        %v1026 = vpack.c.b16 %v702, %v1022
        %v1027 = vpack.c.b16 %v1024, %v1023
        %v1028 = vpack.c.b16 %v1025, %v1025
        %v1029 = vrot.slane %v1026, 1
        %v1030 = vsel %vm944, %v1029, %v948
        %v1031 = vrot.slane %v1027, 1
        %v1032 = vsel %vm944, %v978, %v1031
        %v1033 = vrot.slane %v1028, 1
        %v1034 = vsel %vm944, %v1031, %v1033
        %1035 = vrot.lane.b32.xlu0 %v1030, 9
        %v1036 = vpop.permute.xlu0 %1035
        %1037 = vrot.lane.b32.xlu0 %v951, 9
        %v1038 = vpop.permute.xlu0 %1037
        %1039 = vrot.lane.b32.xlu0 %v953, 9
        %v1040 = vpop.permute.xlu0 %1039
        %1041 = vrot.lane.b32.xlu0 %v955, 9
        %v1042 = vpop.permute.xlu0 %1041
        %1043 = vrot.lane.b32.xlu0 %v957, 9
        %v1044 = vpop.permute.xlu0 %1043
        %1045 = vrot.lane.b32.xlu0 %v959, 9
        %v1046 = vpop.permute.xlu0 %1045
        %1047 = vrot.lane.b32.xlu0 %v961, 9
        %v1048 = vpop.permute.xlu0 %1047
        %1049 = vrot.lane.b32.xlu0 %v963, 9
        %v1050 = vpop.permute.xlu0 %1049
        %1051 = vrot.lane.b32.xlu0 %v965, 9
        %v1052 = vpop.permute.xlu0 %1051
        %1053 = vrot.lane.b32.xlu0 %v967, 9
        %v1054 = vpop.permute.xlu0 %1053
        %1055 = vrot.lane.b32.xlu0 %v969, 9
        %v1056 = vpop.permute.xlu0 %1055
        %1057 = vrot.lane.b32.xlu0 %v971, 9
        %v1058 = vpop.permute.xlu0 %1057
        %1059 = vrot.lane.b32.xlu0 %v973, 9
        %v1060 = vpop.permute.xlu0 %1059
        %1061 = vrot.lane.b32.xlu0 %v975, 9
        %v1062 = vpop.permute.xlu0 %1061
        %1063 = vrot.lane.b32.xlu0 %v977, 9
        %v1064 = vpop.permute.xlu0 %1063
        %1065 = vrot.lane.b32.xlu0 %v979, 9
        %v1066 = vpop.permute.xlu0 %1065
        %1067 = vrot.lane.b32.xlu0 %v1032, 9
        %v1068 = vpop.permute.xlu0 %1067
        %1069 = vrot.lane.b32.xlu0 %v1034, 9
        %v1070 = vpop.permute.xlu0 %1069
        %v1072 = vunpack.c.l.b16 %v655
        %v1073 = vpack.c.b16 %v1072, %v1072
        %vm1074 = vsmask.f32 6400
        %v1076 = vshrl.u32 %v1026, 16
        %v1078 = vrot.slane %v1076, 1
        %v1079 = vshll.u32 %v1026, 16
        %v1081 = vrot.slane %v1079, 2
        %v1082 = vor.u32 %v1078, %v1081
        %v1083 = vrot.slane %v777, 1
        %v1084 = vrot.slane %v773, 2
        %v1085 = vor.u32 %v1083, %v1084
        %v1086 = vsel %vm1074, %v1082, %v1085
        %v1087 = vrot.slane %v785, 1
        %v1088 = vrot.slane %v781, 2
        %v1089 = vor.u32 %v1087, %v1088
        %v1090 = vsel %vm1074, %v1085, %v1089
        %v1091 = vrot.slane %v793, 1
        %v1092 = vrot.slane %v789, 2
        %v1093 = vor.u32 %v1091, %v1092
        %v1094 = vsel %vm1074, %v1089, %v1093
        %v1095 = vrot.slane %v801, 1
        %v1096 = vrot.slane %v797, 2
        %v1097 = vor.u32 %v1095, %v1096
        %v1098 = vsel %vm1074, %v1093, %v1097
        %v1099 = vrot.slane %v809, 1
        %v1100 = vrot.slane %v805, 2
        %v1101 = vor.u32 %v1099, %v1100
        %v1102 = vsel %vm1074, %v1097, %v1101
        %v1103 = vrot.slane %v817, 1
        %v1104 = vrot.slane %v813, 2
        %v1105 = vor.u32 %v1103, %v1104
        %v1106 = vsel %vm1074, %v1101, %v1105
        %v1107 = vrot.slane %v825, 1
        %v1108 = vrot.slane %v821, 2
        %v1109 = vor.u32 %v1107, %v1108
        %v1110 = vsel %vm1074, %v1105, %v1109
        %v1111 = vrot.slane %v833, 1
        %v1112 = vrot.slane %v829, 2
        %v1113 = vor.u32 %v1111, %v1112
        %v1114 = vsel %vm1074, %v1109, %v1113
        %v1115 = vrot.slane %v841, 1
        %v1116 = vrot.slane %v837, 2
        %v1117 = vor.u32 %v1115, %v1116
        %v1118 = vsel %vm1074, %v1113, %v1117
        %v1119 = vrot.slane %v849, 1
        %v1120 = vrot.slane %v845, 2
        %v1121 = vor.u32 %v1119, %v1120
        %v1122 = vsel %vm1074, %v1117, %v1121
        %v1123 = vrot.slane %v857, 1
        %v1124 = vrot.slane %v853, 2
        %v1125 = vor.u32 %v1123, %v1124
        %v1126 = vsel %vm1074, %v1121, %v1125
        %v1127 = vrot.slane %v865, 1
        %v1128 = vrot.slane %v861, 2
        %v1129 = vor.u32 %v1127, %v1128
        %v1130 = vsel %vm1074, %v1125, %v1129
        %v1131 = vrot.slane %v873, 1
        %v1132 = vrot.slane %v869, 2
        %v1133 = vor.u32 %v1131, %v1132
        %v1134 = vsel %vm1074, %v1129, %v1133
        %v1135 = vrot.slane %v881, 1
        %v1136 = vrot.slane %v877, 2
        %v1137 = vor.u32 %v1135, %v1136
        %v1138 = vsel %vm1074, %v1133, %v1137
        %v1139 = vrot.slane %v889, 1
        %v1140 = vrot.slane %v885, 2
        %v1141 = vor.u32 %v1139, %v1140
        %v1142 = vsel %vm1074, %v1137, %v1141
        %v1143 = vrot.slane %v897, 1
        %v1144 = vrot.slane %v893, 2
        %v1145 = vor.u32 %v1143, %v1144
        %v1146 = vsel %vm1074, %v1141, %v1145
        %v1148 = vshrl.u32 %v1027, 16
        %v1150 = vrot.slane %v1148, 1
        %v1151 = vshll.u32 %v1027, 16
        %v1153 = vrot.slane %v1151, 2
        %v1154 = vor.u32 %v1150, %v1153
        %v1155 = vsel %vm1074, %v1145, %v1154
        %v1157 = vshrl.u32 %v1073, 16
        %v1159 = vrot.slane %v1157, 1
        %v1160 = vshll.u32 %v1073, 16
        %v1162 = vrot.slane %v1160, 2
        %v1163 = vor.u32 %v1159, %v1162
        %v1164 = vsel %vm1074, %v1154, %v1163
        %1165 = vrot.lane.b32.xlu0 %v1086, 12
        %v1166 = vpop.permute.xlu0 %1165
        %1167 = vrot.lane.b32.xlu0 %v1090, 12
        %v1168 = vpop.permute.xlu0 %1167
        %1169 = vrot.lane.b32.xlu0 %v1094, 12
        %v1170 = vpop.permute.xlu0 %1169
        %1171 = vrot.lane.b32.xlu0 %v1098, 12
        %v1172 = vpop.permute.xlu0 %1171
        %1173 = vrot.lane.b32.xlu0 %v1102, 12
        %v1174 = vpop.permute.xlu0 %1173
        %1175 = vrot.lane.b32.xlu0 %v1106, 12
        %v1176 = vpop.permute.xlu0 %1175
        %1177 = vrot.lane.b32.xlu0 %v1110, 12
        %v1178 = vpop.permute.xlu0 %1177
        %1179 = vrot.lane.b32.xlu0 %v1114, 12
        %v1180 = vpop.permute.xlu0 %1179
        %1181 = vrot.lane.b32.xlu0 %v1118, 12
        %v1182 = vpop.permute.xlu0 %1181
        %1183 = vrot.lane.b32.xlu0 %v1122, 12
        %v1184 = vpop.permute.xlu0 %1183
        %1185 = vrot.lane.b32.xlu0 %v1126, 12
        %v1186 = vpop.permute.xlu0 %1185
        %1187 = vrot.lane.b32.xlu0 %v1130, 12
        %v1188 = vpop.permute.xlu0 %1187
        %1189 = vrot.lane.b32.xlu0 %v1134, 12
        %v1190 = vpop.permute.xlu0 %1189
        %1191 = vrot.lane.b32.xlu0 %v1138, 12
        %v1192 = vpop.permute.xlu0 %1191
        %1193 = vrot.lane.b32.xlu0 %v1142, 12
        %v1194 = vpop.permute.xlu0 %1193
        %1195 = vrot.lane.b32.xlu0 %v1146, 12
        %v1196 = vpop.permute.xlu0 %1195
        %1197 = vrot.lane.b32.xlu0 %v1155, 12
        %v1198 = vpop.permute.xlu0 %1197
        %1199 = vrot.lane.b32.xlu0 %v1164, 12
        %v1200 = vpop.permute.xlu0 %1199
        %v1202 = vunpack.c.l.b16 %v656
        %v1203 = vpack.c.b16 %v702, %v1202
        %vm1204 = vcmask 1045504
        %v1205 = vrot.slane %v1203, 2
        %v1206 = vrot.slane %v737, 2
        %v1207 = vsel %vm1204, %v1205, %v1206
        %v1208 = vrot.slane %v738, 2
        %v1209 = vsel %vm1204, %v1206, %v1208
        %v1210 = vrot.slane %v739, 2
        %v1211 = vsel %vm1204, %v1208, %v1210
        %v1212 = vrot.slane %v740, 2
        %v1213 = vsel %vm1204, %v1210, %v1212
        %v1214 = vrot.slane %v741, 2
        %v1215 = vsel %vm1204, %v1212, %v1214
        %v1216 = vrot.slane %v742, 2
        %v1217 = vsel %vm1204, %v1214, %v1216
        %v1218 = vrot.slane %v743, 2
        %v1219 = vsel %vm1204, %v1216, %v1218
        %v1220 = vrot.slane %v744, 2
        %v1221 = vsel %vm1204, %v1218, %v1220
        %v1222 = vrot.slane %v745, 2
        %v1223 = vsel %vm1204, %v1220, %v1222
        %v1224 = vrot.slane %v746, 2
        %v1225 = vsel %vm1204, %v1222, %v1224
        %v1226 = vrot.slane %v747, 2
        %v1227 = vsel %vm1204, %v1224, %v1226
        %v1228 = vrot.slane %v748, 2
        %v1229 = vsel %vm1204, %v1226, %v1228
        %v1230 = vrot.slane %v749, 2
        %v1231 = vsel %vm1204, %v1228, %v1230
        %v1232 = vrot.slane %v750, 2
        %v1233 = vsel %vm1204, %v1230, %v1232
        %v1234 = vrot.slane %v751, 2
        %v1235 = vsel %vm1204, %v1232, %v1234
        %v1236 = vrot.slane %v752, 2
        %v1237 = vsel %vm1204, %v1234, %v1236
        %v1238 = vrot.slane %v1027, 2
        %v1239 = vsel %vm1204, %v1236, %v1238
        %v1240 = vrot.slane %v1073, 2
        %v1241 = vsel %vm1204, %v1238, %v1240
        %1242 = vrot.lane.b32.xlu0 %v1207, 15
        %v1243 = vpop.permute.xlu0 %1242
        %1244 = vrot.lane.b32.xlu0 %v1209, 15
        %v1245 = vpop.permute.xlu0 %1244
        %1246 = vrot.lane.b32.xlu0 %v1211, 15
        %v1247 = vpop.permute.xlu0 %1246
        %1248 = vrot.lane.b32.xlu0 %v1213, 15
        %v1249 = vpop.permute.xlu0 %1248
        %1250 = vrot.lane.b32.xlu0 %v1215, 15
        %v1251 = vpop.permute.xlu0 %1250
        %1252 = vrot.lane.b32.xlu0 %v1217, 15
        %v1253 = vpop.permute.xlu0 %1252
        %1254 = vrot.lane.b32.xlu0 %v1219, 15
        %v1255 = vpop.permute.xlu0 %1254
        %1256 = vrot.lane.b32.xlu0 %v1221, 15
        %v1257 = vpop.permute.xlu0 %1256
        %1258 = vrot.lane.b32.xlu0 %v1223, 15
        %v1259 = vpop.permute.xlu0 %1258
        %1260 = vrot.lane.b32.xlu0 %v1225, 15
        %v1261 = vpop.permute.xlu0 %1260
        %1262 = vrot.lane.b32.xlu0 %v1227, 15
        %v1263 = vpop.permute.xlu0 %1262
        %1264 = vrot.lane.b32.xlu0 %v1229, 15
        %v1265 = vpop.permute.xlu0 %1264
        %1266 = vrot.lane.b32.xlu0 %v1231, 15
        %v1267 = vpop.permute.xlu0 %1266
        %1268 = vrot.lane.b32.xlu0 %v1233, 15
        %v1269 = vpop.permute.xlu0 %1268
        %1270 = vrot.lane.b32.xlu0 %v1235, 15
        %v1271 = vpop.permute.xlu0 %1270
        %1272 = vrot.lane.b32.xlu0 %v1237, 15
        %v1273 = vpop.permute.xlu0 %1272
        %1274 = vrot.lane.b32.xlu0 %v1239, 15
        %v1275 = vpop.permute.xlu0 %1274
        %1276 = vrot.lane.b32.xlu0 %v1241, 15
        %v1277 = vpop.permute.xlu0 %1276
        %v1282 = vunpack.c.l.b16 %v657
        %v1283 = vunpack.c.l.b16 %v658
        %v1284 = vunpack.c.l.b16 %v659
        %v1285 = vunpack.c.l.b16 %v660
        %v1286 = vpack.c.b16 %v704, %v1282
        %v1287 = vpack.c.b16 %v1284, %v1283
        %v1288 = vpack.c.b16 %v1285, %v1285
        %v1289 = vrot.slane %v1286, 2
        %v1290 = vsel %vm1204, %v1289, %v1208
        %v1291 = vrot.slane %v1287, 2
        %v1292 = vsel %vm1204, %v1238, %v1291
        %v1293 = vrot.slane %v1288, 2
        %v1294 = vsel %vm1204, %v1291, %v1293
        %1295 = vrot.lane.b32.xlu0 %v1290, 18
        %v1296 = vpop.permute.xlu0 %1295
        %1297 = vrot.lane.b32.xlu0 %v1211, 18
        %v1298 = vpop.permute.xlu0 %1297
        %1299 = vrot.lane.b32.xlu0 %v1213, 18
        %v1300 = vpop.permute.xlu0 %1299
        %1301 = vrot.lane.b32.xlu0 %v1215, 18
        %v1302 = vpop.permute.xlu0 %1301
        %1303 = vrot.lane.b32.xlu0 %v1217, 18
        %v1304 = vpop.permute.xlu0 %1303
        %1305 = vrot.lane.b32.xlu0 %v1219, 18
        %v1306 = vpop.permute.xlu0 %1305
        %1307 = vrot.lane.b32.xlu0 %v1221, 18
        %v1308 = vpop.permute.xlu0 %1307
        %1309 = vrot.lane.b32.xlu0 %v1223, 18
        %v1310 = vpop.permute.xlu0 %1309
        %1311 = vrot.lane.b32.xlu0 %v1225, 18
        %v1312 = vpop.permute.xlu0 %1311
        %1313 = vrot.lane.b32.xlu0 %v1227, 18
        %v1314 = vpop.permute.xlu0 %1313
        %1315 = vrot.lane.b32.xlu0 %v1229, 18
        %v1316 = vpop.permute.xlu0 %1315
        %1317 = vrot.lane.b32.xlu0 %v1231, 18
        %v1318 = vpop.permute.xlu0 %1317
        %1319 = vrot.lane.b32.xlu0 %v1233, 18
        %v1320 = vpop.permute.xlu0 %1319
        %1321 = vrot.lane.b32.xlu0 %v1235, 18
        %v1322 = vpop.permute.xlu0 %1321
        %1323 = vrot.lane.b32.xlu0 %v1237, 18
        %v1324 = vpop.permute.xlu0 %1323
        %1325 = vrot.lane.b32.xlu0 %v1239, 18
        %v1326 = vpop.permute.xlu0 %1325
        %1327 = vrot.lane.b32.xlu0 %v1292, 18
        %v1328 = vpop.permute.xlu0 %1327
        %1329 = vrot.lane.b32.xlu0 %v1294, 18
        %v1330 = vpop.permute.xlu0 %1329
        %v1332 = vunpack.c.l.b16 %v661
        %v1333 = vpack.c.b16 %v1332, %v1332
        %vm1334 = vsmask.f32 5376
        %v1336 = vshrl.u32 %v1286, 16
        %v1338 = vrot.slane %v1336, 2
        %v1339 = vshll.u32 %v1286, 16
        %v1341 = vrot.slane %v1339, 3
        %v1342 = vor.u32 %v1338, %v1341
        %v1343 = vrot.slane %v785, 2
        %v1344 = vrot.slane %v781, 3
        %v1345 = vor.u32 %v1343, %v1344
        %v1346 = vsel %vm1334, %v1342, %v1345
        %v1347 = vrot.slane %v793, 2
        %v1348 = vrot.slane %v789, 3
        %v1349 = vor.u32 %v1347, %v1348
        %v1350 = vsel %vm1334, %v1345, %v1349
        %v1351 = vrot.slane %v801, 2
        %v1352 = vrot.slane %v797, 3
        %v1353 = vor.u32 %v1351, %v1352
        %v1354 = vsel %vm1334, %v1349, %v1353
        %v1355 = vrot.slane %v809, 2
        %v1356 = vrot.slane %v805, 3
        %v1357 = vor.u32 %v1355, %v1356
        %v1358 = vsel %vm1334, %v1353, %v1357
        %v1359 = vrot.slane %v817, 2
        %v1360 = vrot.slane %v813, 3
        %v1361 = vor.u32 %v1359, %v1360
        %v1362 = vsel %vm1334, %v1357, %v1361
        %v1363 = vrot.slane %v825, 2
        %v1364 = vrot.slane %v821, 3
        %v1365 = vor.u32 %v1363, %v1364
        %v1366 = vsel %vm1334, %v1361, %v1365
        %v1367 = vrot.slane %v833, 2
        %v1368 = vrot.slane %v829, 3
        %v1369 = vor.u32 %v1367, %v1368
        %v1370 = vsel %vm1334, %v1365, %v1369
        %v1371 = vrot.slane %v841, 2
        %v1372 = vrot.slane %v837, 3
        %v1373 = vor.u32 %v1371, %v1372
        %v1374 = vsel %vm1334, %v1369, %v1373
        %v1375 = vrot.slane %v849, 2
        %v1376 = vrot.slane %v845, 3
        %v1377 = vor.u32 %v1375, %v1376
        %v1378 = vsel %vm1334, %v1373, %v1377
        %v1379 = vrot.slane %v857, 2
        %v1380 = vrot.slane %v853, 3
        %v1381 = vor.u32 %v1379, %v1380
        %v1382 = vsel %vm1334, %v1377, %v1381
        %v1383 = vrot.slane %v865, 2
        %v1384 = vrot.slane %v861, 3
        %v1385 = vor.u32 %v1383, %v1384
        %v1386 = vsel %vm1334, %v1381, %v1385
        %v1387 = vrot.slane %v873, 2
        %v1388 = vrot.slane %v869, 3
        %v1389 = vor.u32 %v1387, %v1388
        %v1390 = vsel %vm1334, %v1385, %v1389
        %v1391 = vrot.slane %v881, 2
        %v1392 = vrot.slane %v877, 3
        %v1393 = vor.u32 %v1391, %v1392
        %v1394 = vsel %vm1334, %v1389, %v1393
        %v1395 = vrot.slane %v889, 2
        %v1396 = vrot.slane %v885, 3
        %v1397 = vor.u32 %v1395, %v1396
        %v1398 = vsel %vm1334, %v1393, %v1397
        %v1399 = vrot.slane %v897, 2
        %v1400 = vrot.slane %v893, 3
        %v1401 = vor.u32 %v1399, %v1400
        %v1402 = vsel %vm1334, %v1397, %v1401
        %v1403 = vrot.slane %v1148, 2
        %v1404 = vrot.slane %v1151, 3
        %v1405 = vor.u32 %v1403, %v1404
        %v1406 = vsel %vm1334, %v1401, %v1405
        %v1408 = vshrl.u32 %v1287, 16
        %v1410 = vrot.slane %v1408, 2
        %v1411 = vshll.u32 %v1287, 16
        %v1413 = vrot.slane %v1411, 3
        %v1414 = vor.u32 %v1410, %v1413
        %v1415 = vsel %vm1334, %v1405, %v1414
        %v1417 = vshrl.u32 %v1333, 16
        %v1419 = vrot.slane %v1417, 2
        %v1420 = vshll.u32 %v1333, 16
        %v1422 = vrot.slane %v1420, 3
        %v1423 = vor.u32 %v1419, %v1422
        %v1424 = vsel %vm1334, %v1414, %v1423
        %1425 = vrot.lane.b32.xlu0 %v1346, 21
        %v1426 = vpop.permute.xlu0 %1425
        %1427 = vrot.lane.b32.xlu0 %v1350, 21
        %v1428 = vpop.permute.xlu0 %1427
        %1429 = vrot.lane.b32.xlu0 %v1354, 21
        %v1430 = vpop.permute.xlu0 %1429
        %1431 = vrot.lane.b32.xlu0 %v1358, 21
        %v1432 = vpop.permute.xlu0 %1431
        %1433 = vrot.lane.b32.xlu0 %v1362, 21
        %v1434 = vpop.permute.xlu0 %1433
        %1435 = vrot.lane.b32.xlu0 %v1366, 21
        %v1436 = vpop.permute.xlu0 %1435
        %1437 = vrot.lane.b32.xlu0 %v1370, 21
        %v1438 = vpop.permute.xlu0 %1437
        %1439 = vrot.lane.b32.xlu0 %v1374, 21
        %v1440 = vpop.permute.xlu0 %1439
        %1441 = vrot.lane.b32.xlu0 %v1378, 21
        %v1442 = vpop.permute.xlu0 %1441
        %1443 = vrot.lane.b32.xlu0 %v1382, 21
        %v1444 = vpop.permute.xlu0 %1443
        %1445 = vrot.lane.b32.xlu0 %v1386, 21
        %v1446 = vpop.permute.xlu0 %1445
        %1447 = vrot.lane.b32.xlu0 %v1390, 21
        %v1448 = vpop.permute.xlu0 %1447
        %1449 = vrot.lane.b32.xlu0 %v1394, 21
        %v1450 = vpop.permute.xlu0 %1449
        %1451 = vrot.lane.b32.xlu0 %v1398, 21
        %v1452 = vpop.permute.xlu0 %1451
        %1453 = vrot.lane.b32.xlu0 %v1402, 21
        %v1454 = vpop.permute.xlu0 %1453
        %1455 = vrot.lane.b32.xlu0 %v1406, 21
        %v1456 = vpop.permute.xlu0 %1455
        %1457 = vrot.lane.b32.xlu0 %v1415, 21
        %v1458 = vpop.permute.xlu0 %1457
        %1459 = vrot.lane.b32.xlu0 %v1424, 21
        %v1460 = vpop.permute.xlu0 %1459
        %v1462 = vunpack.c.l.b16 %v662
        %v1463 = vpack.c.b16 %v704, %v1462
        %vm1464 = vcmask 1044480
        %v1465 = vrot.slane %v1463, 3
        %v1466 = vrot.slane %v738, 3
        %v1467 = vsel %vm1464, %v1465, %v1466
        %v1468 = vrot.slane %v739, 3
        %v1469 = vsel %vm1464, %v1466, %v1468
        %v1470 = vrot.slane %v740, 3
        %v1471 = vsel %vm1464, %v1468, %v1470
        %v1472 = vrot.slane %v741, 3
        %v1473 = vsel %vm1464, %v1470, %v1472
        %v1474 = vrot.slane %v742, 3
        %v1475 = vsel %vm1464, %v1472, %v1474
        %v1476 = vrot.slane %v743, 3
        %v1477 = vsel %vm1464, %v1474, %v1476
        %v1478 = vrot.slane %v744, 3
        %v1479 = vsel %vm1464, %v1476, %v1478
        %v1480 = vrot.slane %v745, 3
        %v1481 = vsel %vm1464, %v1478, %v1480
        %v1482 = vrot.slane %v746, 3
        %v1483 = vsel %vm1464, %v1480, %v1482
        %v1484 = vrot.slane %v747, 3
        %v1485 = vsel %vm1464, %v1482, %v1484
        %v1486 = vrot.slane %v748, 3
        %v1487 = vsel %vm1464, %v1484, %v1486
        %v1488 = vrot.slane %v749, 3
        %v1489 = vsel %vm1464, %v1486, %v1488
        %v1490 = vrot.slane %v750, 3
        %v1491 = vsel %vm1464, %v1488, %v1490
        %v1492 = vrot.slane %v751, 3
        %v1493 = vsel %vm1464, %v1490, %v1492
        %v1494 = vrot.slane %v752, 3
        %v1495 = vsel %vm1464, %v1492, %v1494
        %v1496 = vrot.slane %v1027, 3
        %v1497 = vsel %vm1464, %v1494, %v1496
        %v1498 = vrot.slane %v1287, 3
        %v1499 = vsel %vm1464, %v1496, %v1498
        %v1500 = vrot.slane %v1333, 3
        %v1501 = vsel %vm1464, %v1498, %v1500
        %1502 = vrot.lane.b32.xlu0 %v1467, 24
        %v1503 = vpop.permute.xlu0 %1502
        %1504 = vrot.lane.b32.xlu0 %v1469, 24
        %v1505 = vpop.permute.xlu0 %1504
        %1506 = vrot.lane.b32.xlu0 %v1471, 24
        %v1507 = vpop.permute.xlu0 %1506
        %1508 = vrot.lane.b32.xlu0 %v1473, 24
        %v1509 = vpop.permute.xlu0 %1508
        %1510 = vrot.lane.b32.xlu0 %v1475, 24
        %v1511 = vpop.permute.xlu0 %1510
        %1512 = vrot.lane.b32.xlu0 %v1477, 24
        %v1513 = vpop.permute.xlu0 %1512
        %1514 = vrot.lane.b32.xlu0 %v1479, 24
        %v1515 = vpop.permute.xlu0 %1514
        %1516 = vrot.lane.b32.xlu0 %v1481, 24
        %v1517 = vpop.permute.xlu0 %1516
        %1518 = vrot.lane.b32.xlu0 %v1483, 24
        %v1519 = vpop.permute.xlu0 %1518
        %1520 = vrot.lane.b32.xlu0 %v1485, 24
        %v1521 = vpop.permute.xlu0 %1520
        %1522 = vrot.lane.b32.xlu0 %v1487, 24
        %v1523 = vpop.permute.xlu0 %1522
        %1524 = vrot.lane.b32.xlu0 %v1489, 24
        %v1525 = vpop.permute.xlu0 %1524
        %1526 = vrot.lane.b32.xlu0 %v1491, 24
        %v1527 = vpop.permute.xlu0 %1526
        %1528 = vrot.lane.b32.xlu0 %v1493, 24
        %v1529 = vpop.permute.xlu0 %1528
        %1530 = vrot.lane.b32.xlu0 %v1495, 24
        %v1531 = vpop.permute.xlu0 %1530
        %1532 = vrot.lane.b32.xlu0 %v1497, 24
        %v1533 = vpop.permute.xlu0 %1532
        %1534 = vrot.lane.b32.xlu0 %v1499, 24
        %v1535 = vpop.permute.xlu0 %1534
        %1536 = vrot.lane.b32.xlu0 %v1501, 24
        %v1537 = vpop.permute.xlu0 %1536
        %vm1538 = vcmask 23552
        %v1540 = vsel %vm1538, %v735, %v906
        %v1542 = vsel %vm1538, %v736, %v908
        %v1544 = vsel %vm1538, %v737, %v910
        %v1546 = vsel %vm1538, %v738, %v912
        %v1548 = vsel %vm1538, %v739, %v914
        %v1550 = vsel %vm1538, %v740, %v916
        %v1552 = vsel %vm1538, %v741, %v918
        %v1554 = vsel %vm1538, %v742, %v920
        %v1556 = vsel %vm1538, %v743, %v922
        %v1558 = vsel %vm1538, %v744, %v924
        %v1560 = vsel %vm1538, %v745, %v926
        %v1562 = vsel %vm1538, %v746, %v928
        %v1564 = vsel %vm1538, %v747, %v930
        %v1566 = vsel %vm1538, %v748, %v932
        %v1568 = vsel %vm1538, %v749, %v934
        %v1570 = vsel %vm1538, %v750, %v936
        %v1572 = vsel %vm1538, %v751, %v938
        %v1574 = vsel %vm1538, %v752, %v940
        %vm1575 = vcmask 48128
        %v1577 = vsel %vm1575, %v1540, %v983
        %v1579 = vsel %vm1575, %v1542, %v985
        %v1581 = vsel %vm1575, %v1544, %v987
        %v1583 = vsel %vm1575, %v1546, %v989
        %v1585 = vsel %vm1575, %v1548, %v991
        %v1587 = vsel %vm1575, %v1550, %v993
        %v1589 = vsel %vm1575, %v1552, %v995
        %v1591 = vsel %vm1575, %v1554, %v997
        %v1593 = vsel %vm1575, %v1556, %v999
        %v1595 = vsel %vm1575, %v1558, %v1001
        %v1597 = vsel %vm1575, %v1560, %v1003
        %v1599 = vsel %vm1575, %v1562, %v1005
        %v1601 = vsel %vm1575, %v1564, %v1007
        %v1603 = vsel %vm1575, %v1566, %v1009
        %v1605 = vsel %vm1575, %v1568, %v1011
        %v1607 = vsel %vm1575, %v1570, %v1013
        %v1609 = vsel %vm1575, %v1572, %v1015
        %v1611 = vsel %vm1575, %v1574, %v1017
        %vm1612 = vcmask 72704
        %v1614 = vsel %vm1612, %v1577, %v1036
        %v1616 = vsel %vm1612, %v1579, %v1038
        %v1618 = vsel %vm1612, %v1581, %v1040
        %v1620 = vsel %vm1612, %v1583, %v1042
        %v1622 = vsel %vm1612, %v1585, %v1044
        %v1624 = vsel %vm1612, %v1587, %v1046
        %v1626 = vsel %vm1612, %v1589, %v1048
        %v1628 = vsel %vm1612, %v1591, %v1050
        %v1630 = vsel %vm1612, %v1593, %v1052
        %v1632 = vsel %vm1612, %v1595, %v1054
        %v1634 = vsel %vm1612, %v1597, %v1056
        %v1636 = vsel %vm1612, %v1599, %v1058
        %v1638 = vsel %vm1612, %v1601, %v1060
        %v1640 = vsel %vm1612, %v1603, %v1062
        %v1642 = vsel %vm1612, %v1605, %v1064
        %v1644 = vsel %vm1612, %v1607, %v1066
        %v1646 = vsel %vm1612, %v1609, %v1068
        %v1648 = vsel %vm1612, %v1611, %v1070
        %vm1649 = vcmask 97280
        %v1651 = vsel %vm1649, %v1614, %v1166
        %v1653 = vsel %vm1649, %v1616, %v1168
        %v1655 = vsel %vm1649, %v1618, %v1170
        %v1657 = vsel %vm1649, %v1620, %v1172
        %v1659 = vsel %vm1649, %v1622, %v1174
        %v1661 = vsel %vm1649, %v1624, %v1176
        %v1663 = vsel %vm1649, %v1626, %v1178
        %v1665 = vsel %vm1649, %v1628, %v1180
        %v1667 = vsel %vm1649, %v1630, %v1182
        %v1669 = vsel %vm1649, %v1632, %v1184
        %v1671 = vsel %vm1649, %v1634, %v1186
        %v1673 = vsel %vm1649, %v1636, %v1188
        %v1675 = vsel %vm1649, %v1638, %v1190
        %v1677 = vsel %vm1649, %v1640, %v1192
        %v1679 = vsel %vm1649, %v1642, %v1194
        %v1681 = vsel %vm1649, %v1644, %v1196
        %v1683 = vsel %vm1649, %v1646, %v1198
        %v1685 = vsel %vm1649, %v1648, %v1200
        %vm1686 = vcmask 121856
        %v1688 = vsel %vm1686, %v1651, %v1243
        %v1690 = vsel %vm1686, %v1653, %v1245
        %v1692 = vsel %vm1686, %v1655, %v1247
        %v1694 = vsel %vm1686, %v1657, %v1249
        %v1696 = vsel %vm1686, %v1659, %v1251
        %v1698 = vsel %vm1686, %v1661, %v1253
        %v1700 = vsel %vm1686, %v1663, %v1255
        %v1702 = vsel %vm1686, %v1665, %v1257
        %v1704 = vsel %vm1686, %v1667, %v1259
        %v1706 = vsel %vm1686, %v1669, %v1261
        %v1708 = vsel %vm1686, %v1671, %v1263
        %v1710 = vsel %vm1686, %v1673, %v1265
        %v1712 = vsel %vm1686, %v1675, %v1267
        %v1714 = vsel %vm1686, %v1677, %v1269
        %v1716 = vsel %vm1686, %v1679, %v1271
        %v1718 = vsel %vm1686, %v1681, %v1273
        %v1720 = vsel %vm1686, %v1683, %v1275
        %v1722 = vsel %vm1686, %v1685, %v1277
        %vm1723 = vcmask 146432
        %v1725 = vsel %vm1723, %v1688, %v1296
        %v1727 = vsel %vm1723, %v1690, %v1298
        %v1729 = vsel %vm1723, %v1692, %v1300
        %v1731 = vsel %vm1723, %v1694, %v1302
        %v1733 = vsel %vm1723, %v1696, %v1304
        %v1735 = vsel %vm1723, %v1698, %v1306
        %v1737 = vsel %vm1723, %v1700, %v1308
        %v1739 = vsel %vm1723, %v1702, %v1310
        %v1741 = vsel %vm1723, %v1704, %v1312
        %v1743 = vsel %vm1723, %v1706, %v1314
        %v1745 = vsel %vm1723, %v1708, %v1316
        %v1747 = vsel %vm1723, %v1710, %v1318
        %v1749 = vsel %vm1723, %v1712, %v1320
        %v1751 = vsel %vm1723, %v1714, %v1322
        %v1753 = vsel %vm1723, %v1716, %v1324
        %v1755 = vsel %vm1723, %v1718, %v1326
        %v1757 = vsel %vm1723, %v1720, %v1328
        %v1759 = vsel %vm1723, %v1722, %v1330
        %vm1760 = vcmask 171008
        %v1762 = vsel %vm1760, %v1725, %v1426
        %v1764 = vsel %vm1760, %v1727, %v1428
        %v1766 = vsel %vm1760, %v1729, %v1430
        %v1768 = vsel %vm1760, %v1731, %v1432
        %v1770 = vsel %vm1760, %v1733, %v1434
        %v1772 = vsel %vm1760, %v1735, %v1436
        %v1774 = vsel %vm1760, %v1737, %v1438
        %v1776 = vsel %vm1760, %v1739, %v1440
        %v1778 = vsel %vm1760, %v1741, %v1442
        %v1780 = vsel %vm1760, %v1743, %v1444
        %v1782 = vsel %vm1760, %v1745, %v1446
        %v1784 = vsel %vm1760, %v1747, %v1448
        %v1786 = vsel %vm1760, %v1749, %v1450
        %v1788 = vsel %vm1760, %v1751, %v1452
        %v1790 = vsel %vm1760, %v1753, %v1454
        %v1792 = vsel %vm1760, %v1755, %v1456
        %v1794 = vsel %vm1760, %v1757, %v1458
        %v1796 = vsel %vm1760, %v1759, %v1460
        %vm1797 = vcmask 195584
        %v1799 = vsel %vm1797, %v1762, %v1503
        %v1801 = vsel %vm1797, %v1764, %v1505
        %v1803 = vsel %vm1797, %v1766, %v1507
        %v1805 = vsel %vm1797, %v1768, %v1509
        %v1807 = vsel %vm1797, %v1770, %v1511
        %v1809 = vsel %vm1797, %v1772, %v1513
        %v1811 = vsel %vm1797, %v1774, %v1515
        %v1813 = vsel %vm1797, %v1776, %v1517
        %v1815 = vsel %vm1797, %v1778, %v1519
        %v1817 = vsel %vm1797, %v1780, %v1521
        %v1819 = vsel %vm1797, %v1782, %v1523
        %v1821 = vsel %vm1797, %v1784, %v1525
        %v1823 = vsel %vm1797, %v1786, %v1527
        %v1825 = vsel %vm1797, %v1788, %v1529
        %v1827 = vsel %vm1797, %v1790, %v1531
        %v1829 = vsel %vm1797, %v1792, %v1533
        %v1831 = vsel %vm1797, %v1794, %v1535
        %v1833 = vsel %vm1797, %v1796, %v1537
        %v1834 = vld [vmem:[%s1] sm:$0xf]
        %v1835 = vld [vmem:[%s1 + $0x4] sm:$0xf]
        %v1836 = vld [vmem:[%s1 + $0x8] sm:$0xf]
        %v1837 = vld [vmem:[%s1 + $0xc] sm:$0x3]
        %v1838 = vld [vmem:[%s2] sm:$0x1]
        %v1840 = vperm.slane %v1838, 0
        %v1846 = vunpack.c.l.b16 %v1834
        %v1847 = vunpack.c.l.b16 %v1835
        %v1848 = vunpack.c.l.b16 %v1836
        %v1849 = vunpack.c.l.b16 %v1837
        %v1850 = vpack.c.b16 %v1847, %v1846
        %v1851 = vpack.c.b16 %v1849, %v1848
        %vm1853 = vcmask 220160
        %v1854 = vsel %vm1853, %v1799, 0
        %v1856 = vsel %vm1853, %v1801, 0
        %v1858 = vsel %vm1853, %v1803, 0
        %v1860 = vsel %vm1853, %v1805, 0
        %v1862 = vsel %vm1853, %v1807, 0
        %v1864 = vsel %vm1853, %v1809, 0
        %v1866 = vsel %vm1853, %v1811, 0
        %v1868 = vsel %vm1853, %v1813, 0
        %v1870 = vsel %vm1853, %v1815, 0
        %v1872 = vsel %vm1853, %v1817, 0
        %v1874 = vsel %vm1853, %v1819, 0
        %v1876 = vsel %vm1853, %v1821, 0
        %v1878 = vsel %vm1853, %v1823, 0
        %v1880 = vsel %vm1853, %v1825, 0
        %v1882 = vsel %vm1853, %v1827, 0
        %v1884 = vsel %vm1853, %v1829, 0
        %v1886 = vsel %vm1853, %v1831, 0
        %v1888 = vsel %vm1853, %v1833, 0
        %vm1890 = vcmask 1044480
        %vm1891 = vcmask 1045504
        %v1892 = vsel %vm1890, 4294967295, 65535
        %v1893 = vsel %vm1891, %v1892, 0
        %v1895 = vand.u32 %v1851, %v1893
        %1897 = vmatpush.bf16.msra.mxu0 0
        %1898 = vmatpush.bf16.msra.mxu0 0
        %1899 = vmatpush.bf16.msra.mxu0 0
        %1900 = vmatpush.bf16.msra.mxu0 0
        %1901 = vmatpush.bf16.msra.mxu0 0
        %1902 = vmatpush.bf16.msra.mxu0 0
        %1903 = vmatpush.bf16.msra.mxu0 %v1895
        %1904 = vmatpush.bf16.msra.mxu0 %v1850
        %1905 = vmatmul.bf16.gmra.mxu0 %v1854
        %v1906 = vpop.f32.mrf.mxu0
        %v1907 = vadd.f32 %v1840, %v1906
        %v1908 = vpop.f32.mrf.mxu0
        %v1909 = vadd.f32 %v1840, %v1908
        %1910 = vmatmul.bf16.gmra.mxu0 %v1856
        %v1911 = vpop.f32.mrf.mxu0
        %v1912 = vadd.f32 %v1840, %v1911
        %v1913 = vpop.f32.mrf.mxu0
        %v1914 = vadd.f32 %v1840, %v1913
        %1915 = vmatmul.bf16.gmra.mxu0 %v1858
        %v1916 = vpop.f32.mrf.mxu0
        %v1917 = vadd.f32 %v1840, %v1916
        %v1918 = vpop.f32.mrf.mxu0
        %v1919 = vadd.f32 %v1840, %v1918
        %1920 = vmatmul.bf16.gmra.mxu0 %v1860
        %v1921 = vpop.f32.mrf.mxu0
        %v1922 = vadd.f32 %v1840, %v1921
        %v1923 = vpop.f32.mrf.mxu0
        %v1924 = vadd.f32 %v1840, %v1923
        %1925 = vmatmul.bf16.gmra.mxu0 %v1862
        %v1926 = vpop.f32.mrf.mxu0
        %v1927 = vadd.f32 %v1840, %v1926
        %v1928 = vpop.f32.mrf.mxu0
        %v1929 = vadd.f32 %v1840, %v1928
        %1930 = vmatmul.bf16.gmra.mxu0 %v1864
        %v1931 = vpop.f32.mrf.mxu0
        %v1932 = vadd.f32 %v1840, %v1931
        %v1933 = vpop.f32.mrf.mxu0
        %v1934 = vadd.f32 %v1840, %v1933
        %1935 = vmatmul.bf16.gmra.mxu0 %v1866
        %v1936 = vpop.f32.mrf.mxu0
        %v1937 = vadd.f32 %v1840, %v1936
        %v1938 = vpop.f32.mrf.mxu0
        %v1939 = vadd.f32 %v1840, %v1938
        %1940 = vmatmul.bf16.gmra.mxu0 %v1868
        %v1941 = vpop.f32.mrf.mxu0
        %v1942 = vadd.f32 %v1840, %v1941
        %v1943 = vpop.f32.mrf.mxu0
        %v1944 = vadd.f32 %v1840, %v1943
        %1945 = vmatmul.bf16.gmra.mxu0 %v1870
        %v1946 = vpop.f32.mrf.mxu0
        %v1947 = vadd.f32 %v1840, %v1946
        %v1948 = vpop.f32.mrf.mxu0
        %v1949 = vadd.f32 %v1840, %v1948
        %1950 = vmatmul.bf16.gmra.mxu0 %v1872
        %v1951 = vpop.f32.mrf.mxu0
        %v1952 = vadd.f32 %v1840, %v1951
        %v1953 = vpop.f32.mrf.mxu0
        %v1954 = vadd.f32 %v1840, %v1953
        %1955 = vmatmul.bf16.gmra.mxu0 %v1874
        %v1956 = vpop.f32.mrf.mxu0
        %v1957 = vadd.f32 %v1840, %v1956
        %v1958 = vpop.f32.mrf.mxu0
        %v1959 = vadd.f32 %v1840, %v1958
        %1960 = vmatmul.bf16.gmra.mxu0 %v1876
        %v1961 = vpop.f32.mrf.mxu0
        %v1962 = vadd.f32 %v1840, %v1961
        %v1963 = vpop.f32.mrf.mxu0
        %v1964 = vadd.f32 %v1840, %v1963
        %1965 = vmatmul.bf16.gmra.mxu0 %v1878
        %v1966 = vpop.f32.mrf.mxu0
        %v1967 = vadd.f32 %v1840, %v1966
        %v1968 = vpop.f32.mrf.mxu0
        %v1969 = vadd.f32 %v1840, %v1968
        %1970 = vmatmul.bf16.gmra.mxu0 %v1880
        %v1971 = vpop.f32.mrf.mxu0
        %v1972 = vadd.f32 %v1840, %v1971
        %v1973 = vpop.f32.mrf.mxu0
        %v1974 = vadd.f32 %v1840, %v1973
        %1975 = vmatmul.bf16.gmra.mxu0 %v1882
        %v1976 = vpop.f32.mrf.mxu0
        %v1977 = vadd.f32 %v1840, %v1976
        %v1978 = vpop.f32.mrf.mxu0
        %v1979 = vadd.f32 %v1840, %v1978
        %1980 = vmatmul.bf16.gmra.mxu0 %v1884
        %v1981 = vpop.f32.mrf.mxu0
        %v1982 = vadd.f32 %v1840, %v1981
        %v1983 = vpop.f32.mrf.mxu0
        %v1984 = vadd.f32 %v1840, %v1983
        %1985 = vmatmul.bf16.gmra.mxu0 %v1886
        %v1986 = vpop.f32.mrf.mxu0
        %v1987 = vadd.f32 %v1840, %v1986
        %v1988 = vpop.f32.mrf.mxu0
        %v1989 = vadd.f32 %v1840, %v1988
        %1990 = vmatmul.bf16.gmra.mxu0 %v1888
        %v1991 = vpop.f32.mrf.mxu0
        %v1992 = vadd.f32 %v1840, %v1991
        %v1993 = vpop.f32.mrf.mxu0
        %v1994 = vadd.f32 %v1840, %v1993
        %1995 = vdwg.mxu0
        %v1996 = vmul.f32 %v1907, %v1907
        %v1997 = vmul.f32 %v1909, %v1909
        %v1998 = vmul.f32 %v1912, %v1912
        %v1999 = vmul.f32 %v1914, %v1914
        %v2000 = vmul.f32 %v1917, %v1917
        %v2001 = vmul.f32 %v1919, %v1919
        %v2002 = vmul.f32 %v1922, %v1922
        %v2003 = vmul.f32 %v1924, %v1924
        %v2004 = vmul.f32 %v1927, %v1927
        %v2005 = vmul.f32 %v1929, %v1929
        %v2006 = vmul.f32 %v1932, %v1932
        %v2007 = vmul.f32 %v1934, %v1934
        %v2008 = vmul.f32 %v1937, %v1937
        %v2009 = vmul.f32 %v1939, %v1939
        %v2010 = vmul.f32 %v1942, %v1942
        %v2011 = vmul.f32 %v1944, %v1944
        %v2012 = vmul.f32 %v1947, %v1947
        %v2013 = vmul.f32 %v1949, %v1949
        %v2014 = vmul.f32 %v1952, %v1952
        %v2015 = vmul.f32 %v1954, %v1954
        %v2016 = vmul.f32 %v1957, %v1957
        %v2017 = vmul.f32 %v1959, %v1959
        %v2018 = vmul.f32 %v1962, %v1962
        %v2019 = vmul.f32 %v1964, %v1964
        %v2020 = vmul.f32 %v1967, %v1967
        %v2021 = vmul.f32 %v1969, %v1969
        %v2022 = vmul.f32 %v1972, %v1972
        %v2023 = vmul.f32 %v1974, %v1974
        %v2024 = vmul.f32 %v1977, %v1977
        %v2025 = vmul.f32 %v1979, %v1979
        %v2026 = vmul.f32 %v1982, %v1982
        %v2027 = vmul.f32 %v1984, %v1984
        %v2028 = vmul.f32 %v1987, %v1987
        %v2029 = vmul.f32 %v1989, %v1989
        %v2030 = vmul.f32 %v1992, %v1992
        %v2031 = vmul.f32 %v1994, %v1994
        %v2032 = vmul.f32 %v1907, %v1996
        %v2033 = vmul.f32 %v1909, %v1997
        %v2034 = vmul.f32 %v1912, %v1998
        %v2035 = vmul.f32 %v1914, %v1999
        %v2036 = vmul.f32 %v1917, %v2000
        %v2037 = vmul.f32 %v1919, %v2001
        %v2038 = vmul.f32 %v1922, %v2002
        %v2039 = vmul.f32 %v1924, %v2003
        %v2040 = vmul.f32 %v1927, %v2004
        %v2041 = vmul.f32 %v1929, %v2005
        %v2042 = vmul.f32 %v1932, %v2006
        %v2043 = vmul.f32 %v1934, %v2007
        %v2044 = vmul.f32 %v1937, %v2008
        %v2045 = vmul.f32 %v1939, %v2009
        %v2046 = vmul.f32 %v1942, %v2010
        %v2047 = vmul.f32 %v1944, %v2011
        %v2048 = vmul.f32 %v1947, %v2012
        %v2049 = vmul.f32 %v1949, %v2013
        %v2050 = vmul.f32 %v1952, %v2014
        %v2051 = vmul.f32 %v1954, %v2015
        %v2052 = vmul.f32 %v1957, %v2016
        %v2053 = vmul.f32 %v1959, %v2017
        %v2054 = vmul.f32 %v1962, %v2018
        %v2055 = vmul.f32 %v1964, %v2019
        %v2056 = vmul.f32 %v1967, %v2020
        %v2057 = vmul.f32 %v1969, %v2021
        %v2058 = vmul.f32 %v1972, %v2022
        %v2059 = vmul.f32 %v1974, %v2023
        %v2060 = vmul.f32 %v1977, %v2024
        %v2061 = vmul.f32 %v1979, %v2025
        %v2062 = vmul.f32 %v1982, %v2026
        %v2063 = vmul.f32 %v1984, %v2027
        %v2064 = vmul.f32 %v1987, %v2028
        %v2065 = vmul.f32 %v1989, %v2029
        %v2066 = vmul.f32 %v1992, %v2030
        %v2067 = vmul.f32 %v1994, %v2031
        %v2068 = vmul.f32 %v2032, 0.044715
        %v2069 = vmul.f32 %v2033, 0.044715
        %v2070 = vmul.f32 %v2034, 0.044715
        %v2071 = vmul.f32 %v2035, 0.044715
        %v2072 = vmul.f32 %v2036, 0.044715
        %v2073 = vmul.f32 %v2037, 0.044715
        %v2074 = vmul.f32 %v2038, 0.044715
        %v2075 = vmul.f32 %v2039, 0.044715
        %v2076 = vmul.f32 %v2040, 0.044715
        %v2077 = vmul.f32 %v2041, 0.044715
        %v2078 = vmul.f32 %v2042, 0.044715
        %v2079 = vmul.f32 %v2043, 0.044715
        %v2080 = vmul.f32 %v2044, 0.044715
        %v2081 = vmul.f32 %v2045, 0.044715
        %v2082 = vmul.f32 %v2046, 0.044715
        %v2083 = vmul.f32 %v2047, 0.044715
        %v2084 = vmul.f32 %v2048, 0.044715
        %v2085 = vmul.f32 %v2049, 0.044715
        %v2086 = vmul.f32 %v2050, 0.044715
        %v2087 = vmul.f32 %v2051, 0.044715
        %v2088 = vmul.f32 %v2052, 0.044715
        %v2089 = vmul.f32 %v2053, 0.044715
        %v2090 = vmul.f32 %v2054, 0.044715
        %v2091 = vmul.f32 %v2055, 0.044715
        %v2092 = vmul.f32 %v2056, 0.044715
        %v2093 = vmul.f32 %v2057, 0.044715
        %v2094 = vmul.f32 %v2058, 0.044715
        %v2095 = vmul.f32 %v2059, 0.044715
        %v2096 = vmul.f32 %v2060, 0.044715
        %v2097 = vmul.f32 %v2061, 0.044715
        %v2098 = vmul.f32 %v2062, 0.044715
        %v2099 = vmul.f32 %v2063, 0.044715
        %v2100 = vmul.f32 %v2064, 0.044715
        %v2101 = vmul.f32 %v2065, 0.044715
        %v2102 = vmul.f32 %v2066, 0.044715
        %v2103 = vmul.f32 %v2067, 0.044715
        %v2104 = vadd.f32 %v1907, %v2068
        %v2105 = vadd.f32 %v1909, %v2069
        %v2106 = vadd.f32 %v1912, %v2070
        %v2107 = vadd.f32 %v1914, %v2071
        %v2108 = vadd.f32 %v1917, %v2072
        %v2109 = vadd.f32 %v1919, %v2073
        %v2110 = vadd.f32 %v1922, %v2074
        %v2111 = vadd.f32 %v1924, %v2075
        %v2112 = vadd.f32 %v1927, %v2076
        %v2113 = vadd.f32 %v1929, %v2077
        %v2114 = vadd.f32 %v1932, %v2078
        %v2115 = vadd.f32 %v1934, %v2079
        %v2116 = vadd.f32 %v1937, %v2080
        %v2117 = vadd.f32 %v1939, %v2081
        %v2118 = vadd.f32 %v1942, %v2082
        %v2119 = vadd.f32 %v1944, %v2083
        %v2120 = vadd.f32 %v1947, %v2084
        %v2121 = vadd.f32 %v1949, %v2085
        %v2122 = vadd.f32 %v1952, %v2086
        %v2123 = vadd.f32 %v1954, %v2087
        %v2124 = vadd.f32 %v1957, %v2088
        %v2125 = vadd.f32 %v1959, %v2089
        %v2126 = vadd.f32 %v1962, %v2090
        %v2127 = vadd.f32 %v1964, %v2091
        %v2128 = vadd.f32 %v1967, %v2092
        %v2129 = vadd.f32 %v1969, %v2093
        %v2130 = vadd.f32 %v1972, %v2094
        %v2131 = vadd.f32 %v1974, %v2095
        %v2132 = vadd.f32 %v1977, %v2096
        %v2133 = vadd.f32 %v1979, %v2097
        %v2134 = vadd.f32 %v1982, %v2098
        %v2135 = vadd.f32 %v1984, %v2099
        %v2136 = vadd.f32 %v1987, %v2100
        %v2137 = vadd.f32 %v1989, %v2101
        %v2138 = vadd.f32 %v1992, %v2102
        %v2139 = vadd.f32 %v1994, %v2103
        %v2140 = vmul.f32 %v2104, 0.7978846
        %v2141 = vmul.f32 %v2105, 0.7978846
        %v2142 = vmul.f32 %v2106, 0.7978846
        %v2143 = vmul.f32 %v2107, 0.7978846
        %v2144 = vmul.f32 %v2108, 0.7978846
        %v2145 = vmul.f32 %v2109, 0.7978846
        %v2146 = vmul.f32 %v2110, 0.7978846
        %v2147 = vmul.f32 %v2111, 0.7978846
        %v2148 = vmul.f32 %v2112, 0.7978846
        %v2149 = vmul.f32 %v2113, 0.7978846
        %v2150 = vmul.f32 %v2114, 0.7978846
        %v2151 = vmul.f32 %v2115, 0.7978846
        %v2152 = vmul.f32 %v2116, 0.7978846
        %v2153 = vmul.f32 %v2117, 0.7978846
        %v2154 = vmul.f32 %v2118, 0.7978846
        %v2155 = vmul.f32 %v2119, 0.7978846
        %v2156 = vmul.f32 %v2120, 0.7978846
        %v2157 = vmul.f32 %v2121, 0.7978846
        %v2158 = vmul.f32 %v2122, 0.7978846
        %v2159 = vmul.f32 %v2123, 0.7978846
        %v2160 = vmul.f32 %v2124, 0.7978846
        %v2161 = vmul.f32 %v2125, 0.7978846
        %v2162 = vmul.f32 %v2126, 0.7978846
        %v2163 = vmul.f32 %v2127, 0.7978846
        %v2164 = vmul.f32 %v2128, 0.7978846
        %v2165 = vmul.f32 %v2129, 0.7978846
        %v2166 = vmul.f32 %v2130, 0.7978846
        %v2167 = vmul.f32 %v2131, 0.7978846
        %v2168 = vmul.f32 %v2132, 0.7978846
        %v2169 = vmul.f32 %v2133, 0.7978846
        %v2170 = vmul.f32 %v2134, 0.7978846
        %v2171 = vmul.f32 %v2135, 0.7978846
        %v2172 = vmul.f32 %v2136, 0.7978846
        %v2173 = vmul.f32 %v2137, 0.7978846
        %v2174 = vmul.f32 %v2138, 0.7978846
        %v2175 = vmul.f32 %v2139, 0.7978846
        %v2176 = vtanh.pop %v2140
        %v2177 = vtanh.pop %v2141
        %v2178 = vtanh.pop %v2142
        %v2179 = vtanh.pop %v2143
        %v2180 = vtanh.pop %v2144
        %v2181 = vtanh.pop %v2145
        %v2182 = vtanh.pop %v2146
        %v2183 = vtanh.pop %v2147
        %v2184 = vtanh.pop %v2148
        %v2185 = vtanh.pop %v2149
        %v2186 = vtanh.pop %v2150
        %v2187 = vtanh.pop %v2151
        %v2188 = vtanh.pop %v2152
        %v2189 = vtanh.pop %v2153
        %v2190 = vtanh.pop %v2154
        %v2191 = vtanh.pop %v2155
        %v2192 = vtanh.pop %v2156
        %v2193 = vtanh.pop %v2157
        %v2194 = vtanh.pop %v2158
        %v2195 = vtanh.pop %v2159
        %v2196 = vtanh.pop %v2160
        %v2197 = vtanh.pop %v2161
        %v2198 = vtanh.pop %v2162
        %v2199 = vtanh.pop %v2163
        %v2200 = vtanh.pop %v2164
        %v2201 = vtanh.pop %v2165
        %v2202 = vtanh.pop %v2166
        %v2203 = vtanh.pop %v2167
        %v2204 = vtanh.pop %v2168
        %v2205 = vtanh.pop %v2169
        %v2206 = vtanh.pop %v2170
        %v2207 = vtanh.pop %v2171
        %v2208 = vtanh.pop %v2172
        %v2209 = vtanh.pop %v2173
        %v2210 = vtanh.pop %v2174
        %v2211 = vtanh.pop %v2175
        %v2212 = vadd.f32 %v2176, 1.0
        %v2213 = vadd.f32 %v2177, 1.0
        %v2214 = vadd.f32 %v2178, 1.0
        %v2215 = vadd.f32 %v2179, 1.0
        %v2216 = vadd.f32 %v2180, 1.0
        %v2217 = vadd.f32 %v2181, 1.0
        %v2218 = vadd.f32 %v2182, 1.0
        %v2219 = vadd.f32 %v2183, 1.0
        %v2220 = vadd.f32 %v2184, 1.0
        %v2221 = vadd.f32 %v2185, 1.0
        %v2222 = vadd.f32 %v2186, 1.0
        %v2223 = vadd.f32 %v2187, 1.0
        %v2224 = vadd.f32 %v2188, 1.0
        %v2225 = vadd.f32 %v2189, 1.0
        %v2226 = vadd.f32 %v2190, 1.0
        %v2227 = vadd.f32 %v2191, 1.0
        %v2228 = vadd.f32 %v2192, 1.0
        %v2229 = vadd.f32 %v2193, 1.0
        %v2230 = vadd.f32 %v2194, 1.0
        %v2231 = vadd.f32 %v2195, 1.0
        %v2232 = vadd.f32 %v2196, 1.0
        %v2233 = vadd.f32 %v2197, 1.0
        %v2234 = vadd.f32 %v2198, 1.0
        %v2235 = vadd.f32 %v2199, 1.0
        %v2236 = vadd.f32 %v2200, 1.0
        %v2237 = vadd.f32 %v2201, 1.0
        %v2238 = vadd.f32 %v2202, 1.0
        %v2239 = vadd.f32 %v2203, 1.0
        %v2240 = vadd.f32 %v2204, 1.0
        %v2241 = vadd.f32 %v2205, 1.0
        %v2242 = vadd.f32 %v2206, 1.0
        %v2243 = vadd.f32 %v2207, 1.0
        %v2244 = vadd.f32 %v2208, 1.0
        %v2245 = vadd.f32 %v2209, 1.0
        %v2246 = vadd.f32 %v2210, 1.0
        %v2247 = vadd.f32 %v2211, 1.0
        %v2248 = vmul.f32 %v2212, 0.5
        %v2249 = vmul.f32 %v2213, 0.5
        %v2250 = vmul.f32 %v2214, 0.5
        %v2251 = vmul.f32 %v2215, 0.5
        %v2252 = vmul.f32 %v2216, 0.5
        %v2253 = vmul.f32 %v2217, 0.5
        %v2254 = vmul.f32 %v2218, 0.5
        %v2255 = vmul.f32 %v2219, 0.5
        %v2256 = vmul.f32 %v2220, 0.5
        %v2257 = vmul.f32 %v2221, 0.5
        %v2258 = vmul.f32 %v2222, 0.5
        %v2259 = vmul.f32 %v2223, 0.5
        %v2260 = vmul.f32 %v2224, 0.5
        %v2261 = vmul.f32 %v2225, 0.5
        %v2262 = vmul.f32 %v2226, 0.5
        %v2263 = vmul.f32 %v2227, 0.5
        %v2264 = vmul.f32 %v2228, 0.5
        %v2265 = vmul.f32 %v2229, 0.5
        %v2266 = vmul.f32 %v2230, 0.5
        %v2267 = vmul.f32 %v2231, 0.5
        %v2268 = vmul.f32 %v2232, 0.5
        %v2269 = vmul.f32 %v2233, 0.5
        %v2270 = vmul.f32 %v2234, 0.5
        %v2271 = vmul.f32 %v2235, 0.5
        %v2272 = vmul.f32 %v2236, 0.5
        %v2273 = vmul.f32 %v2237, 0.5
        %v2274 = vmul.f32 %v2238, 0.5
        %v2275 = vmul.f32 %v2239, 0.5
        %v2276 = vmul.f32 %v2240, 0.5
        %v2277 = vmul.f32 %v2241, 0.5
        %v2278 = vmul.f32 %v2242, 0.5
        %v2279 = vmul.f32 %v2243, 0.5
        %v2280 = vmul.f32 %v2244, 0.5
        %v2281 = vmul.f32 %v2245, 0.5
        %v2282 = vmul.f32 %v2246, 0.5
        %v2283 = vmul.f32 %v2247, 0.5
        %v2284 = vmul.f32 %v1907, %v2248
        %v2285 = vmul.f32 %v1909, %v2249
        %v2286 = vmul.f32 %v1912, %v2250
        %v2287 = vmul.f32 %v1914, %v2251
        %v2288 = vmul.f32 %v1917, %v2252
        %v2289 = vmul.f32 %v1919, %v2253
        %v2290 = vmul.f32 %v1922, %v2254
        %v2291 = vmul.f32 %v1924, %v2255
        %v2292 = vmul.f32 %v1927, %v2256
        %v2293 = vmul.f32 %v1929, %v2257
        %v2294 = vmul.f32 %v1932, %v2258
        %v2295 = vmul.f32 %v1934, %v2259
        %v2296 = vmul.f32 %v1937, %v2260
        %v2297 = vmul.f32 %v1939, %v2261
        %v2298 = vmul.f32 %v1942, %v2262
        %v2299 = vmul.f32 %v1944, %v2263
        %v2300 = vmul.f32 %v1947, %v2264
        %v2301 = vmul.f32 %v1949, %v2265
        %v2302 = vmul.f32 %v1952, %v2266
        %v2303 = vmul.f32 %v1954, %v2267
        %v2304 = vmul.f32 %v1957, %v2268
        %v2305 = vmul.f32 %v1959, %v2269
        %v2306 = vmul.f32 %v1962, %v2270
        %v2307 = vmul.f32 %v1964, %v2271
        %v2308 = vmul.f32 %v1967, %v2272
        %v2309 = vmul.f32 %v1969, %v2273
        %v2310 = vmul.f32 %v1972, %v2274
        %v2311 = vmul.f32 %v1974, %v2275
        %v2312 = vmul.f32 %v1977, %v2276
        %v2313 = vmul.f32 %v1979, %v2277
        %v2314 = vmul.f32 %v1982, %v2278
        %v2315 = vmul.f32 %v1984, %v2279
        %v2316 = vmul.f32 %v1987, %v2280
        %v2317 = vmul.f32 %v1989, %v2281
        %v2318 = vmul.f32 %v1992, %v2282
        %v2319 = vmul.f32 %v1994, %v2283
        %vm2354 = vcmask 1046528
        %v2355 = vrot.slane %v2284, 1
        %v2356 = vrot.slane %v2285, 1
        %v2357 = vsel %vm2354, %v2355, %v2356
        %v2358 = vrot.slane %v2286, 1
        %v2359 = vsel %vm2354, %v2356, %v2358
        %v2360 = vrot.slane %v2287, 1
        %v2361 = vsel %vm2354, %v2358, %v2360
        %v2362 = vrot.slane %v2288, 1
        %v2363 = vsel %vm2354, %v2360, %v2362
        %v2364 = vrot.slane %v2289, 1
        %v2365 = vsel %vm2354, %v2362, %v2364
        %v2366 = vrot.slane %v2290, 1
        %v2367 = vsel %vm2354, %v2364, %v2366
        %v2368 = vrot.slane %v2291, 1
        %v2369 = vsel %vm2354, %v2366, %v2368
        %v2370 = vrot.slane %v2292, 1
        %v2371 = vsel %vm2354, %v2368, %v2370
        %v2372 = vrot.slane %v2293, 1
        %v2373 = vsel %vm2354, %v2370, %v2372
        %v2374 = vrot.slane %v2294, 1
        %v2375 = vsel %vm2354, %v2372, %v2374
        %v2376 = vrot.slane %v2295, 1
        %v2377 = vsel %vm2354, %v2374, %v2376
        %v2378 = vrot.slane %v2296, 1
        %v2379 = vsel %vm2354, %v2376, %v2378
        %v2380 = vrot.slane %v2297, 1
        %v2381 = vsel %vm2354, %v2378, %v2380
        %v2382 = vrot.slane %v2298, 1
        %v2383 = vsel %vm2354, %v2380, %v2382
        %v2384 = vrot.slane %v2299, 1
        %v2385 = vsel %vm2354, %v2382, %v2384
        %v2386 = vrot.slane %v2300, 1
        %v2387 = vsel %vm2354, %v2384, %v2386
        %v2388 = vrot.slane %v2301, 1
        %v2389 = vsel %vm2354, %v2386, %v2388
        %v2390 = vrot.slane %v2302, 1
        %v2391 = vsel %vm2354, %v2388, %v2390
        %v2392 = vrot.slane %v2303, 1
        %v2393 = vsel %vm2354, %v2390, %v2392
        %v2394 = vrot.slane %v2304, 1
        %v2395 = vsel %vm2354, %v2392, %v2394
        %v2396 = vrot.slane %v2305, 1
        %v2397 = vsel %vm2354, %v2394, %v2396
        %v2398 = vrot.slane %v2306, 1
        %v2399 = vsel %vm2354, %v2396, %v2398
        %v2400 = vrot.slane %v2307, 1
        %v2401 = vsel %vm2354, %v2398, %v2400
        %v2402 = vrot.slane %v2308, 1
        %v2403 = vsel %vm2354, %v2400, %v2402
        %v2404 = vrot.slane %v2309, 1
        %v2405 = vsel %vm2354, %v2402, %v2404
        %v2406 = vrot.slane %v2310, 1
        %v2407 = vsel %vm2354, %v2404, %v2406
        %v2408 = vrot.slane %v2311, 1
        %v2409 = vsel %vm2354, %v2406, %v2408
        %v2410 = vrot.slane %v2312, 1
        %v2411 = vsel %vm2354, %v2408, %v2410
        %v2412 = vrot.slane %v2313, 1
        %v2413 = vsel %vm2354, %v2410, %v2412
        %v2414 = vrot.slane %v2314, 1
        %v2415 = vsel %vm2354, %v2412, %v2414
        %v2416 = vrot.slane %v2315, 1
        %v2417 = vsel %vm2354, %v2414, %v2416
        %v2418 = vrot.slane %v2316, 1
        %v2419 = vsel %vm2354, %v2416, %v2418
        %v2420 = vrot.slane %v2317, 1
        %v2421 = vsel %vm2354, %v2418, %v2420
        %v2456 = vmax.f32 %v2284, %v2357
        %v2457 = vmax.f32 %v2285, %v2359
        %v2458 = vmax.f32 %v2286, %v2361
        %v2459 = vmax.f32 %v2287, %v2363
        %v2460 = vmax.f32 %v2288, %v2365
        %v2461 = vmax.f32 %v2289, %v2367
        %v2462 = vmax.f32 %v2290, %v2369
        %v2463 = vmax.f32 %v2291, %v2371
        %v2464 = vmax.f32 %v2292, %v2373
        %v2465 = vmax.f32 %v2293, %v2375
        %v2466 = vmax.f32 %v2294, %v2377
        %v2467 = vmax.f32 %v2295, %v2379
        %v2468 = vmax.f32 %v2296, %v2381
        %v2469 = vmax.f32 %v2297, %v2383
        %v2470 = vmax.f32 %v2298, %v2385
        %v2471 = vmax.f32 %v2299, %v2387
        %v2472 = vmax.f32 %v2300, %v2389
        %v2473 = vmax.f32 %v2301, %v2391
        %v2474 = vmax.f32 %v2302, %v2393
        %v2475 = vmax.f32 %v2303, %v2395
        %v2476 = vmax.f32 %v2304, %v2397
        %v2477 = vmax.f32 %v2305, %v2399
        %v2478 = vmax.f32 %v2306, %v2401
        %v2479 = vmax.f32 %v2307, %v2403
        %v2480 = vmax.f32 %v2308, %v2405
        %v2481 = vmax.f32 %v2309, %v2407
        %v2482 = vmax.f32 %v2310, %v2409
        %v2483 = vmax.f32 %v2311, %v2411
        %v2484 = vmax.f32 %v2312, %v2413
        %v2485 = vmax.f32 %v2313, %v2415
        %v2486 = vmax.f32 %v2314, %v2417
        %v2487 = vmax.f32 %v2315, %v2419
        %v2488 = vmax.f32 %v2316, %v2421
        %v2489 = vmax.f32 %v2317, %v2420
        %v2492 = vrot.slane %v2318, 1
        %v2493 = vsel %vm2354, %v2420, %v2492
        %v2494 = vrot.slane %v2319, 1
        %v2495 = vsel %vm2354, %v2492, %v2494
        %v2499 = vmax.f32 %v2317, %v2493
        %v2500 = vmax.f32 %v2318, %v2495
        %v2501 = vmax.f32 %v2319, %v2494
        %v2536 = vrot.slane %v2458, 2
        %v2537 = vrot.slane %v2459, 2
        %v2538 = vsel %vm1891, %v2536, %v2537
        %v2539 = vrot.slane %v2460, 2
        %v2540 = vsel %vm1891, %v2537, %v2539
        %v2541 = vrot.slane %v2461, 2
        %v2542 = vsel %vm1891, %v2539, %v2541
        %v2543 = vrot.slane %v2462, 2
        %v2544 = vsel %vm1891, %v2541, %v2543
        %v2545 = vrot.slane %v2463, 2
        %v2546 = vsel %vm1891, %v2543, %v2545
        %v2547 = vrot.slane %v2464, 2
        %v2548 = vsel %vm1891, %v2545, %v2547
        %v2549 = vrot.slane %v2465, 2
        %v2550 = vsel %vm1891, %v2547, %v2549
        %v2551 = vrot.slane %v2466, 2
        %v2552 = vsel %vm1891, %v2549, %v2551
        %v2553 = vrot.slane %v2467, 2
        %v2554 = vsel %vm1891, %v2551, %v2553
        %v2555 = vrot.slane %v2468, 2
        %v2556 = vsel %vm1891, %v2553, %v2555
        %v2557 = vrot.slane %v2469, 2
        %v2558 = vsel %vm1891, %v2555, %v2557
        %v2559 = vrot.slane %v2470, 2
        %v2560 = vsel %vm1891, %v2557, %v2559
        %v2561 = vrot.slane %v2471, 2
        %v2562 = vsel %vm1891, %v2559, %v2561
        %v2563 = vrot.slane %v2472, 2
        %v2564 = vsel %vm1891, %v2561, %v2563
        %v2565 = vrot.slane %v2473, 2
        %v2566 = vsel %vm1891, %v2563, %v2565
        %v2567 = vrot.slane %v2474, 2
        %v2568 = vsel %vm1891, %v2565, %v2567
        %v2569 = vrot.slane %v2475, 2
        %v2570 = vsel %vm1891, %v2567, %v2569
        %v2571 = vrot.slane %v2476, 2
        %v2572 = vsel %vm1891, %v2569, %v2571
        %v2573 = vrot.slane %v2477, 2
        %v2574 = vsel %vm1891, %v2571, %v2573
        %v2575 = vrot.slane %v2478, 2
        %v2576 = vsel %vm1891, %v2573, %v2575
        %v2577 = vrot.slane %v2479, 2
        %v2578 = vsel %vm1891, %v2575, %v2577
        %v2579 = vrot.slane %v2480, 2
        %v2580 = vsel %vm1891, %v2577, %v2579
        %v2581 = vrot.slane %v2481, 2
        %v2582 = vsel %vm1891, %v2579, %v2581
        %v2583 = vrot.slane %v2482, 2
        %v2584 = vsel %vm1891, %v2581, %v2583
        %v2585 = vrot.slane %v2483, 2
        %v2586 = vsel %vm1891, %v2583, %v2585
        %v2587 = vrot.slane %v2484, 2
        %v2588 = vsel %vm1891, %v2585, %v2587
        %v2589 = vrot.slane %v2485, 2
        %v2590 = vsel %vm1891, %v2587, %v2589
        %v2591 = vrot.slane %v2486, 2
        %v2592 = vsel %vm1891, %v2589, %v2591
        %v2593 = vrot.slane %v2487, 2
        %v2594 = vsel %vm1891, %v2591, %v2593
        %v2595 = vrot.slane %v2488, 2
        %v2596 = vsel %vm1891, %v2593, %v2595
        %v2597 = vrot.slane %v2499, 2
        %v2598 = vsel %vm1891, %v2595, %v2597
        %v2599 = vrot.slane %v2500, 2
        %v2600 = vsel %vm1891, %v2597, %v2599
        %v2601 = vrot.slane %v2501, 2
        %v2602 = vsel %vm1891, %v2599, %v2601
        %v2637 = vmax.f32 %v2456, %v2538
        %v2638 = vmax.f32 %v2457, %v2540
        %v2639 = vmax.f32 %v2458, %v2542
        %v2640 = vmax.f32 %v2459, %v2544
        %v2641 = vmax.f32 %v2460, %v2546
        %v2642 = vmax.f32 %v2461, %v2548
        %v2643 = vmax.f32 %v2462, %v2550
        %v2644 = vmax.f32 %v2463, %v2552
        %v2645 = vmax.f32 %v2464, %v2554
        %v2646 = vmax.f32 %v2465, %v2556
        %v2647 = vmax.f32 %v2466, %v2558
        %v2648 = vmax.f32 %v2467, %v2560
        %v2649 = vmax.f32 %v2468, %v2562
        %v2650 = vmax.f32 %v2469, %v2564
        %v2651 = vmax.f32 %v2470, %v2566
        %v2652 = vmax.f32 %v2471, %v2568
        %v2653 = vmax.f32 %v2472, %v2570
        %v2654 = vmax.f32 %v2473, %v2572
        %v2655 = vmax.f32 %v2474, %v2574
        %v2656 = vmax.f32 %v2475, %v2576
        %v2657 = vmax.f32 %v2476, %v2578
        %v2658 = vmax.f32 %v2477, %v2580
        %v2659 = vmax.f32 %v2478, %v2582
        %v2660 = vmax.f32 %v2479, %v2584
        %v2661 = vmax.f32 %v2480, %v2586
        %v2662 = vmax.f32 %v2481, %v2588
        %v2663 = vmax.f32 %v2482, %v2590
        %v2664 = vmax.f32 %v2483, %v2592
        %v2665 = vmax.f32 %v2484, %v2594
        %v2666 = vmax.f32 %v2485, %v2596
        %v2667 = vmax.f32 %v2486, %v2598
        %v2668 = vmax.f32 %v2487, %v2600
        %v2669 = vmax.f32 %v2488, %v2602
        %v2670 = vmax.f32 %v2489, %v2601
        %v2671 = vld [vmem:[%s3] sm:$0xff]
        %v2672 = vld [vmem:[%s3 + $0x8] sm:$0xf]
        %v2673 = vld [vmem:[%s3 + $0xc] sm:$0xff]
        %v2674 = vld [vmem:[%s3 + $0x14] sm:$0xf]
        %v2675 = vld [vmem:[%s3 + $0x18] sm:$0xff]
        %v2676 = vld [vmem:[%s3 + $0x20] sm:$0xf]
        %v2677 = vld [vmem:[%s3 + $0x24] sm:$0xff]
        %v2678 = vld [vmem:[%s3 + $0x2c] sm:$0xf]
        %v2679 = vld [vmem:[%s3 + $0x30] sm:$0xff]
        %v2680 = vld [vmem:[%s3 + $0x38] sm:$0xf]
        %v2681 = vld [vmem:[%s3 + $0x3c] sm:$0xff]
        %v2682 = vld [vmem:[%s3 + $0x44] sm:$0xf]
        %v2683 = vld [vmem:[%s3 + $0x48] sm:$0xff]
        %v2684 = vld [vmem:[%s3 + $0x50] sm:$0xf]
        %v2685 = vld [vmem:[%s3 + $0x54] sm:$0xff]
        %v2686 = vld [vmem:[%s3 + $0x5c] sm:$0xf]
        %v2687 = vld [vmem:[%s3 + $0x60] sm:$0xff]
        %v2688 = vld [vmem:[%s3 + $0x68] sm:$0xf]
        %v2689 = vld [vmem:[%s3 + $0x6c] sm:$0xff]
        %v2690 = vld [vmem:[%s3 + $0x74] sm:$0xf]
        %v2691 = vld [vmem:[%s3 + $0x78] sm:$0xff]
        %v2692 = vld [vmem:[%s3 + $0x80] sm:$0xf]
        %v2693 = vld [vmem:[%s3 + $0x84] sm:$0xff]
        %v2694 = vld [vmem:[%s3 + $0x8c] sm:$0xf]
        %v2695 = vld [vmem:[%s3 + $0x90] sm:$0xff]
        %v2696 = vld [vmem:[%s3 + $0x98] sm:$0xf]
        %v2697 = vpack.c.bf16 %v2638, %v2637
        %v2698 = vpack.c.bf16 %v2640, %v2639
        %v2699 = vpack.c.bf16 %v2642, %v2641
        %v2700 = vpack.c.bf16 %v2644, %v2643
        %v2701 = vpack.c.bf16 %v2646, %v2645
        %v2702 = vpack.c.bf16 %v2648, %v2647
        %v2703 = vpack.c.bf16 %v2650, %v2649
        %v2704 = vpack.c.bf16 %v2652, %v2651
        %v2705 = vpack.c.bf16 %v2654, %v2653
        %v2706 = vpack.c.bf16 %v2656, %v2655
        %v2707 = vpack.c.bf16 %v2658, %v2657
        %v2708 = vpack.c.bf16 %v2660, %v2659
        %v2709 = vpack.c.bf16 %v2662, %v2661
        %v2710 = vpack.c.bf16 %v2664, %v2663
        %v2711 = vpack.c.bf16 %v2666, %v2665
        %v2712 = vpack.c.bf16 %v2668, %v2667
        %v2713 = vpack.c.bf16 %v2670, %v2669
        %v2740 = vunpack.c.l.b16 %v2671
        %v2741 = vunpack.c.h.b16 %v2671
        %v2742 = vunpack.c.l.b16 %v2672
        %v2743 = vunpack.c.l.b16 %v2673
        %v2744 = vunpack.c.h.b16 %v2673
        %v2745 = vunpack.c.l.b16 %v2674
        %v2746 = vunpack.c.l.b16 %v2675
        %v2747 = vunpack.c.h.b16 %v2675
        %v2748 = vunpack.c.l.b16 %v2676
        %v2749 = vunpack.c.l.b16 %v2677
        %v2750 = vunpack.c.h.b16 %v2677
        %v2751 = vunpack.c.l.b16 %v2678
        %v2752 = vunpack.c.l.b16 %v2679
        %v2753 = vunpack.c.h.b16 %v2679
        %v2754 = vunpack.c.l.b16 %v2680
        %v2755 = vunpack.c.l.b16 %v2681
        %v2756 = vunpack.c.h.b16 %v2681
        %v2757 = vunpack.c.l.b16 %v2682
        %v2758 = vunpack.c.l.b16 %v2683
        %v2759 = vunpack.c.h.b16 %v2683
        %v2760 = vunpack.c.l.b16 %v2684
        %v2761 = vunpack.c.l.b16 %v2685
        %v2762 = vunpack.c.h.b16 %v2685
        %v2763 = vunpack.c.l.b16 %v2686
        %v2764 = vunpack.c.l.b16 %v2687
        %v2765 = vunpack.c.h.b16 %v2687
        %v2766 = vunpack.c.l.b16 %v2688
        %v2767 = vunpack.c.l.b16 %v2689
        %v2768 = vunpack.c.h.b16 %v2689
        %v2769 = vunpack.c.l.b16 %v2690
        %v2770 = vunpack.c.l.b16 %v2691
        %v2771 = vunpack.c.h.b16 %v2691
        %v2772 = vunpack.c.l.b16 %v2692
        %v2773 = vunpack.c.l.b16 %v2693
        %v2774 = vunpack.c.h.b16 %v2693
        %v2775 = vunpack.c.l.b16 %v2694
        %v2776 = vunpack.c.l.b16 %v2695
        %v2777 = vunpack.c.h.b16 %v2695
        %v2778 = vunpack.c.l.b16 %v2696
        %v2779 = vpack.c.b16 %v2743, %v2740
        %v2780 = vpack.c.b16 %v2744, %v2741
        %v2781 = vpack.c.b16 %v2745, %v2742
        %v2782 = vpack.c.b16 %v2749, %v2746
        %v2783 = vpack.c.b16 %v2750, %v2747
        %v2784 = vpack.c.b16 %v2751, %v2748
        %v2785 = vpack.c.b16 %v2755, %v2752
        %v2786 = vpack.c.b16 %v2756, %v2753
        %v2787 = vpack.c.b16 %v2757, %v2754
        %v2788 = vpack.c.b16 %v2761, %v2758
        %v2789 = vpack.c.b16 %v2762, %v2759
        %v2790 = vpack.c.b16 %v2763, %v2760
        %v2791 = vpack.c.b16 %v2767, %v2764
        %v2792 = vpack.c.b16 %v2768, %v2765
        %v2793 = vpack.c.b16 %v2769, %v2766
        %v2794 = vpack.c.b16 %v2773, %v2770
        %v2795 = vpack.c.b16 %v2774, %v2771
        %v2796 = vpack.c.b16 %v2775, %v2772
        %v2797 = vpack.c.b16 %v2776, %v2776
        %v2798 = vpack.c.b16 %v2777, %v2777
        %v2799 = vpack.c.b16 %v2778, %v2778
        %vm2814 = vcmask 105472
        %v2816 = vsel %vm2814, %v2781, 0
        %v2819 = vsel %vm2814, %v2784, 0
        %v2822 = vsel %vm2814, %v2787, 0
        %v2825 = vsel %vm2814, %v2790, 0
        %v2828 = vsel %vm2814, %v2793, 0
        %v2831 = vsel %vm2814, %v2796, 0
        %v2834 = vsel %vm2814, %v2799, 0
        %v2836 = vsel %vm1891, 4294967295, 65535
        %v2837 = vsel %vm2354, %v2836, 0
        %v2839 = vand.u32 %v2713, %v2837
        %2841 = vmatpush.bf16.msra.mxu0 %v2704
        %2842 = vmatpush.bf16.msra.mxu0 %v2703
        %2843 = vmatpush.bf16.msra.mxu0 %v2702
        %2844 = vmatpush.bf16.msra.mxu0 %v2701
        %2845 = vmatpush.bf16.msra.mxu0 %v2700
        %2846 = vmatpush.bf16.msra.mxu0 %v2699
        %2847 = vmatpush.bf16.msra.mxu0 %v2698
        %2848 = vmatpush.bf16.msra.mxu0 %v2697
        %2849 = vmatmul.bf16.gmra.mxu0 %v2779
        %v2850 = vpop.f32.mrf.mxu0
        %v2851 = vadd.f32 0.0, %v2850
        %v2852 = vpop.f32.mrf.mxu0
        %v2853 = vadd.f32 0.0, %v2852
        %2854 = vmatmul.bf16.gmra.mxu0 %v2782
        %v2855 = vpop.f32.mrf.mxu0
        %v2856 = vadd.f32 0.0, %v2855
        %v2857 = vpop.f32.mrf.mxu0
        %v2858 = vadd.f32 0.0, %v2857
        %2859 = vmatmul.bf16.gmra.mxu0 %v2785
        %v2860 = vpop.f32.mrf.mxu0
        %v2861 = vadd.f32 0.0, %v2860
        %v2862 = vpop.f32.mrf.mxu0
        %v2863 = vadd.f32 0.0, %v2862
        %2864 = vmatmul.bf16.gmra.mxu0 %v2788
        %v2865 = vpop.f32.mrf.mxu0
        %v2866 = vadd.f32 0.0, %v2865
        %v2867 = vpop.f32.mrf.mxu0
        %v2868 = vadd.f32 0.0, %v2867
        %2869 = vmatmul.bf16.gmra.mxu0 %v2791
        %v2870 = vpop.f32.mrf.mxu0
        %v2871 = vadd.f32 0.0, %v2870
        %v2872 = vpop.f32.mrf.mxu0
        %v2873 = vadd.f32 0.0, %v2872
        %2874 = vmatmul.bf16.gmra.mxu0 %v2794
        %v2875 = vpop.f32.mrf.mxu0
        %v2876 = vadd.f32 0.0, %v2875
        %v2877 = vpop.f32.mrf.mxu0
        %v2878 = vadd.f32 0.0, %v2877
        %2879 = vmatmul.bf16.gmra.mxu0 %v2797
        %v2880 = vpop.f32.mrf.mxu0
        %v2881 = vadd.f32 0.0, %v2880
        %v2882 = vpop.f32.mrf.mxu0
        %2883 = vdwg.mxu0
        %2884 = vmatpush.bf16.msra.mxu0 %v2712
        %2885 = vmatpush.bf16.msra.mxu0 %v2711
        %2886 = vmatpush.bf16.msra.mxu0 %v2710
        %2887 = vmatpush.bf16.msra.mxu0 %v2709
        %2888 = vmatpush.bf16.msra.mxu0 %v2708
        %2889 = vmatpush.bf16.msra.mxu0 %v2707
        %2890 = vmatpush.bf16.msra.mxu0 %v2706
        %2891 = vmatpush.bf16.msra.mxu0 %v2705
        %2892 = vmatmul.bf16.gmra.mxu0 %v2780
        %v2893 = vpop.f32.mrf.mxu0
        %v2894 = vadd.f32 %v2851, %v2893
        %v2895 = vpop.f32.mrf.mxu0
        %v2896 = vadd.f32 %v2853, %v2895
        %2897 = vmatmul.bf16.gmra.mxu0 %v2783
        %v2898 = vpop.f32.mrf.mxu0
        %v2899 = vadd.f32 %v2856, %v2898
        %v2900 = vpop.f32.mrf.mxu0
        %v2901 = vadd.f32 %v2858, %v2900
        %2902 = vmatmul.bf16.gmra.mxu0 %v2786
        %v2903 = vpop.f32.mrf.mxu0
        %v2904 = vadd.f32 %v2861, %v2903
        %v2905 = vpop.f32.mrf.mxu0
        %v2906 = vadd.f32 %v2863, %v2905
        %2907 = vmatmul.bf16.gmra.mxu0 %v2789
        %v2908 = vpop.f32.mrf.mxu0
        %v2909 = vadd.f32 %v2866, %v2908
        %v2910 = vpop.f32.mrf.mxu0
        %v2911 = vadd.f32 %v2868, %v2910
        %2912 = vmatmul.bf16.gmra.mxu0 %v2792
        %v2913 = vpop.f32.mrf.mxu0
        %v2914 = vadd.f32 %v2871, %v2913
        %v2915 = vpop.f32.mrf.mxu0
        %v2916 = vadd.f32 %v2873, %v2915
        %2917 = vmatmul.bf16.gmra.mxu0 %v2795
        %v2918 = vpop.f32.mrf.mxu0
        %v2919 = vadd.f32 %v2876, %v2918
        %v2920 = vpop.f32.mrf.mxu0
        %v2921 = vadd.f32 %v2878, %v2920
        %2922 = vmatmul.bf16.gmra.mxu0 %v2798
        %v2923 = vpop.f32.mrf.mxu0
        %v2924 = vadd.f32 %v2881, %v2923
        %v2925 = vpop.f32.mrf.mxu0
        %2926 = vdwg.mxu0
        %2927 = vmatpush.bf16.msra.mxu0 0
        %2928 = vmatpush.bf16.msra.mxu0 0
        %2929 = vmatpush.bf16.msra.mxu0 0
        %2930 = vmatpush.bf16.msra.mxu0 0
        %2931 = vmatpush.bf16.msra.mxu0 0
        %2932 = vmatpush.bf16.msra.mxu0 0
        %2933 = vmatpush.bf16.msra.mxu0 0
        %2934 = vmatpush.bf16.msra.mxu0 %v2839
        %2935 = vmatmul.bf16.gmra.mxu0 %v2816
        %v2936 = vpop.f32.mrf.mxu0
        %v2937 = vadd.f32 %v2894, %v2936
        %v2938 = vpop.f32.mrf.mxu0
        %v2939 = vadd.f32 %v2896, %v2938
        %2940 = vmatmul.bf16.gmra.mxu0 %v2819
        %v2941 = vpop.f32.mrf.mxu0
        %v2942 = vadd.f32 %v2899, %v2941
        %v2943 = vpop.f32.mrf.mxu0
        %v2944 = vadd.f32 %v2901, %v2943
        %2945 = vmatmul.bf16.gmra.mxu0 %v2822
        %v2946 = vpop.f32.mrf.mxu0
        %v2947 = vadd.f32 %v2904, %v2946
        %v2948 = vpop.f32.mrf.mxu0
        %v2949 = vadd.f32 %v2906, %v2948
        %2950 = vmatmul.bf16.gmra.mxu0 %v2825
        %v2951 = vpop.f32.mrf.mxu0
        %v2952 = vadd.f32 %v2909, %v2951
        %v2953 = vpop.f32.mrf.mxu0
        %v2954 = vadd.f32 %v2911, %v2953
        %2955 = vmatmul.bf16.gmra.mxu0 %v2828
        %v2956 = vpop.f32.mrf.mxu0
        %v2957 = vadd.f32 %v2914, %v2956
        %v2958 = vpop.f32.mrf.mxu0
        %v2959 = vadd.f32 %v2916, %v2958
        %2960 = vmatmul.bf16.gmra.mxu0 %v2831
        %v2961 = vpop.f32.mrf.mxu0
        %v2962 = vadd.f32 %v2919, %v2961
        %v2963 = vpop.f32.mrf.mxu0
        %v2964 = vadd.f32 %v2921, %v2963
        %2965 = vmatmul.bf16.gmra.mxu0 %v2834
        %v2966 = vpop.f32.mrf.mxu0
        %v2967 = vadd.f32 %v2924, %v2966
        %v2968 = vpop.f32.mrf.mxu0
        %2969 = vdwg.mxu0
        %v2970 = vpack.c.bf16 %v2937, %v2937
        %v2971 = vpack.c.bf16 %v2939, %v2939
        %v2972 = vpack.c.bf16 %v2942, %v2942
        %v2973 = vpack.c.bf16 %v2944, %v2944
        %v2974 = vpack.c.bf16 %v2947, %v2947
        %v2975 = vpack.c.bf16 %v2949, %v2949
        %v2976 = vpack.c.bf16 %v2952, %v2952
        %v2977 = vpack.c.bf16 %v2954, %v2954
        %v2978 = vpack.c.bf16 %v2957, %v2957
        %v2979 = vpack.c.bf16 %v2959, %v2959
        %v2980 = vpack.c.bf16 %v2962, %v2962
        %v2981 = vpack.c.bf16 %v2964, %v2964
        %v2982 = vpack.c.bf16 %v2967, %v2967
        %vm2983 = vcmask 27648
        %2984 = vst.msk [vmem:[#allocation2] sm:$0xf] %vm2983, %v2970
        %2985 = vst.msk [vmem:[#allocation2 + $0x4] sm:$0xf] %vm2983, %v2971
        %2986 = vst.msk [vmem:[#allocation2 + $0x8] sm:$0xf] %vm2983, %v2972
        %2987 = vst.msk [vmem:[#allocation2 + $0xc] sm:$0xf] %vm2983, %v2973
        %2988 = vst.msk [vmem:[#allocation2 + $0x10] sm:$0xf] %vm2983, %v2974
        %2989 = vst.msk [vmem:[#allocation2 + $0x14] sm:$0xf] %vm2983, %v2975
        %2990 = vst.msk [vmem:[#allocation2 + $0x18] sm:$0xf] %vm2983, %v2976
        %2991 = vst.msk [vmem:[#allocation2 + $0x1c] sm:$0xf] %vm2983, %v2977
        %2992 = vst.msk [vmem:[#allocation2 + $0x20] sm:$0xf] %vm2983, %v2978
        %2993 = vst.msk [vmem:[#allocation2 + $0x24] sm:$0xf] %vm2983, %v2979
        %2994 = vst.msk [vmem:[#allocation2 + $0x28] sm:$0xf] %vm2983, %v2980
        %2995 = vst.msk [vmem:[#allocation2 + $0x2c] sm:$0xf] %vm2983, %v2981
        %2996 = vst.msk [vmem:[#allocation2 + $0x30] sm:$0xf] %vm2983, %v2982
        %v2997 = vld [vmem:[#allocation2] sm:$0xf]
        %v2998 = vld [vmem:[#allocation2 + $0x4] sm:$0xf]
        %v2999 = vld [vmem:[#allocation2 + $0x8] sm:$0xf]
        %v3000 = vld [vmem:[#allocation2 + $0xc] sm:$0xf]
        %v3001 = vld [vmem:[#allocation2 + $0x10] sm:$0xf]
        %v3002 = vld [vmem:[#allocation2 + $0x14] sm:$0xf]
        %v3003 = vld [vmem:[#allocation2 + $0x18] sm:$0xf]
        %v3004 = vld [vmem:[#allocation2 + $0x1c] sm:$0xf]
        %v3005 = vld [vmem:[#allocation2 + $0x20] sm:$0xf]
        %v3006 = vld [vmem:[#allocation2 + $0x24] sm:$0xf]
        %v3007 = vld [vmem:[#allocation2 + $0x28] sm:$0x1]
        %v3008 = vld [vmem:[#allocation2] sm:$0xe]
        %v3009 = vld [vmem:[#allocation2 + $0x4] sm:$0xe]
        %v3010 = vld [vmem:[#allocation2 + $0x28] sm:$0xf]
        %v3011 = vld [vmem:[#allocation2 + $0x2c] sm:$0x1]
        %v3012 = vld [vmem:[#allocation2 + $0x2c] sm:$0x3]
        %v3013 = vld [vmem:[#allocation2 + $0x4] sm:$0xc]
        %v3014 = vld [vmem:[#allocation2 + $0x8] sm:$0xc]
        %v3015 = vld [vmem:[#allocation2 + $0x2c] sm:$0xf]
        %v3016 = vld [vmem:[#allocation2 + $0x30] sm:$0x3]
        %v3017 = vld [vmem:[#allocation2 + $0x30] sm:$0x7]
        %v3018 = vld [vmem:[#allocation2 + $0x8] sm:$0x8]
        %v3029 = vunpack.c.l.b16 %v2997
        %v3030 = vunpack.c.l.b16 %v2998
        %v3031 = vunpack.c.l.b16 %v2999
        %v3032 = vunpack.c.l.b16 %v3000
        %v3033 = vunpack.c.l.b16 %v3001
        %v3034 = vunpack.c.l.b16 %v3002
        %v3035 = vunpack.c.l.b16 %v3003
        %v3036 = vunpack.c.l.b16 %v3004
        %v3037 = vunpack.c.l.b16 %v3005
        %v3038 = vunpack.c.l.b16 %v3006
        %v3039 = vpack.c.b16 %v3030, %v3029
        %v3040 = vpack.c.b16 %v3032, %v3031
        %v3041 = vpack.c.b16 %v3034, %v3033
        %v3042 = vpack.c.b16 %v3036, %v3035
        %v3043 = vpack.c.b16 %v3038, %v3037
        %v3045 = vunpack.c.l.b16 %v3007
        %v3046 = vpack.c.b16 %v3045, %v3045
        %v3048 = vshrl.u32 %v3039, 16
        %v3050 = vshll.u32 %v3039, 16
        %v3052 = vrot.slane %v3050, 1
        %v3053 = vor.u32 %v3048, %v3052
        %v3055 = vshll.u32 %v3040, 16
        %v3057 = vrot.slane %v3055, 1
        %v3058 = vsel %vm756, %v3053, %v3057
        %v3059 = vshrl.u32 %v3040, 16
        %v3061 = vor.u32 %v3059, %v3057
        %v3063 = vshll.u32 %v3041, 16
        %v3065 = vrot.slane %v3063, 1
        %v3066 = vsel %vm756, %v3061, %v3065
        %v3067 = vshrl.u32 %v3041, 16
        %v3069 = vor.u32 %v3067, %v3065
        %v3071 = vshll.u32 %v3042, 16
        %v3073 = vrot.slane %v3071, 1
        %v3074 = vsel %vm756, %v3069, %v3073
        %v3075 = vshrl.u32 %v3042, 16
        %v3077 = vor.u32 %v3075, %v3073
        %v3079 = vshll.u32 %v3043, 16
        %v3081 = vrot.slane %v3079, 1
        %v3082 = vsel %vm756, %v3077, %v3081
        %v3083 = vshrl.u32 %v3043, 16
        %v3085 = vor.u32 %v3083, %v3081
        %v3087 = vshll.u32 %v3046, 16
        %v3089 = vrot.slane %v3087, 1
        %v3090 = vsel %vm756, %v3085, %v3089
        %3091 = vrot.lane.b32.xlu0 %v3058, 4
        %v3092 = vpop.permute.xlu0 %3091
        %3093 = vrot.lane.b32.xlu0 %v3066, 4
        %v3094 = vpop.permute.xlu0 %3093
        %3095 = vrot.lane.b32.xlu0 %v3074, 4
        %v3096 = vpop.permute.xlu0 %3095
        %3097 = vrot.lane.b32.xlu0 %v3082, 4
        %v3098 = vpop.permute.xlu0 %3097
        %3099 = vrot.lane.b32.xlu0 %v3090, 4
        %v3100 = vpop.permute.xlu0 %3099
        %v3102 = vunpack.c.l.b16 %v3008
        %v3103 = vpack.c.b16 %v3030, %v3102
        %v3104 = vrot.slane %v3103, 1
        %v3105 = vrot.slane %v3040, 1
        %v3106 = vsel %vm944, %v3104, %v3105
        %v3107 = vrot.slane %v3041, 1
        %v3108 = vsel %vm944, %v3105, %v3107
        %v3109 = vrot.slane %v3042, 1
        %v3110 = vsel %vm944, %v3107, %v3109
        %v3111 = vrot.slane %v3043, 1
        %v3112 = vsel %vm944, %v3109, %v3111
        %v3113 = vrot.slane %v3046, 1
        %v3114 = vsel %vm944, %v3111, %v3113
        %3115 = vrot.lane.b32.xlu0 %v3106, 8
        %v3116 = vpop.permute.xlu0 %3115
        %3117 = vrot.lane.b32.xlu0 %v3108, 8
        %v3118 = vpop.permute.xlu0 %3117
        %3119 = vrot.lane.b32.xlu0 %v3110, 8
        %v3120 = vpop.permute.xlu0 %3119
        %3121 = vrot.lane.b32.xlu0 %v3112, 8
        %v3122 = vpop.permute.xlu0 %3121
        %3123 = vrot.lane.b32.xlu0 %v3114, 8
        %v3124 = vpop.permute.xlu0 %3123
        %v3128 = vunpack.c.l.b16 %v3009
        %v3129 = vunpack.c.l.b16 %v3010
        %v3130 = vunpack.c.l.b16 %v3011
        %v3131 = vpack.c.b16 %v3031, %v3128
        %v3132 = vpack.c.b16 %v3033, %v3032
        %v3133 = vpack.c.b16 %v3035, %v3034
        %v3134 = vpack.c.b16 %v3037, %v3036
        %v3135 = vpack.c.b16 %v3129, %v3038
        %v3136 = vpack.c.b16 %v3130, %v3130
        %v3137 = vrot.slane %v3131, 1
        %v3138 = vrot.slane %v3132, 1
        %v3139 = vsel %vm944, %v3137, %v3138
        %v3140 = vrot.slane %v3133, 1
        %v3141 = vsel %vm944, %v3138, %v3140
        %v3142 = vrot.slane %v3134, 1
        %v3143 = vsel %vm944, %v3140, %v3142
        %v3144 = vrot.slane %v3135, 1
        %v3145 = vsel %vm944, %v3142, %v3144
        %v3146 = vrot.slane %v3136, 1
        %v3147 = vsel %vm944, %v3144, %v3146
        %3148 = vrot.lane.b32.xlu0 %v3139, 12
        %v3149 = vpop.permute.xlu0 %3148
        %3150 = vrot.lane.b32.xlu0 %v3141, 12
        %v3151 = vpop.permute.xlu0 %3150
        %3152 = vrot.lane.b32.xlu0 %v3143, 12
        %v3153 = vpop.permute.xlu0 %3152
        %3154 = vrot.lane.b32.xlu0 %v3145, 12
        %v3155 = vpop.permute.xlu0 %3154
        %3156 = vrot.lane.b32.xlu0 %v3147, 12
        %v3157 = vpop.permute.xlu0 %3156
        %v3159 = vunpack.c.l.b16 %v3012
        %v3160 = vpack.c.b16 %v3159, %v3159
        %v3162 = vshrl.u32 %v3131, 16
        %v3164 = vrot.slane %v3162, 1
        %v3165 = vshll.u32 %v3131, 16
        %v3167 = vrot.slane %v3165, 2
        %v3168 = vor.u32 %v3164, %v3167
        %v3170 = vshrl.u32 %v3132, 16
        %v3172 = vrot.slane %v3170, 1
        %v3173 = vshll.u32 %v3132, 16
        %v3175 = vrot.slane %v3173, 2
        %v3176 = vor.u32 %v3172, %v3175
        %v3177 = vsel %vm1074, %v3168, %v3176
        %v3179 = vshrl.u32 %v3133, 16
        %v3181 = vrot.slane %v3179, 1
        %v3182 = vshll.u32 %v3133, 16
        %v3184 = vrot.slane %v3182, 2
        %v3185 = vor.u32 %v3181, %v3184
        %v3186 = vsel %vm1074, %v3176, %v3185
        %v3188 = vshrl.u32 %v3134, 16
        %v3190 = vrot.slane %v3188, 1
        %v3191 = vshll.u32 %v3134, 16
        %v3193 = vrot.slane %v3191, 2
        %v3194 = vor.u32 %v3190, %v3193
        %v3195 = vsel %vm1074, %v3185, %v3194
        %v3197 = vshrl.u32 %v3135, 16
        %v3199 = vrot.slane %v3197, 1
        %v3200 = vshll.u32 %v3135, 16
        %v3202 = vrot.slane %v3200, 2
        %v3203 = vor.u32 %v3199, %v3202
        %v3204 = vsel %vm1074, %v3194, %v3203
        %v3206 = vshrl.u32 %v3160, 16
        %v3208 = vrot.slane %v3206, 1
        %v3209 = vshll.u32 %v3160, 16
        %v3211 = vrot.slane %v3209, 2
        %v3212 = vor.u32 %v3208, %v3211
        %v3213 = vsel %vm1074, %v3203, %v3212
        %3214 = vrot.lane.b32.xlu0 %v3177, 16
        %v3215 = vpop.permute.xlu0 %3214
        %3216 = vrot.lane.b32.xlu0 %v3186, 16
        %v3217 = vpop.permute.xlu0 %3216
        %3218 = vrot.lane.b32.xlu0 %v3195, 16
        %v3219 = vpop.permute.xlu0 %3218
        %3220 = vrot.lane.b32.xlu0 %v3204, 16
        %v3221 = vpop.permute.xlu0 %3220
        %3222 = vrot.lane.b32.xlu0 %v3213, 16
        %v3223 = vpop.permute.xlu0 %3222
        %v3225 = vunpack.c.l.b16 %v3013
        %v3226 = vpack.c.b16 %v3031, %v3225
        %v3227 = vrot.slane %v3226, 2
        %v3228 = vrot.slane %v3132, 2
        %v3229 = vsel %vm1204, %v3227, %v3228
        %v3230 = vrot.slane %v3133, 2
        %v3231 = vsel %vm1204, %v3228, %v3230
        %v3232 = vrot.slane %v3134, 2
        %v3233 = vsel %vm1204, %v3230, %v3232
        %v3234 = vrot.slane %v3135, 2
        %v3235 = vsel %vm1204, %v3232, %v3234
        %v3236 = vrot.slane %v3160, 2
        %v3237 = vsel %vm1204, %v3234, %v3236
        %3238 = vrot.lane.b32.xlu0 %v3229, 20
        %v3239 = vpop.permute.xlu0 %3238
        %3240 = vrot.lane.b32.xlu0 %v3231, 20
        %v3241 = vpop.permute.xlu0 %3240
        %3242 = vrot.lane.b32.xlu0 %v3233, 20
        %v3243 = vpop.permute.xlu0 %3242
        %3244 = vrot.lane.b32.xlu0 %v3235, 20
        %v3245 = vpop.permute.xlu0 %3244
        %3246 = vrot.lane.b32.xlu0 %v3237, 20
        %v3247 = vpop.permute.xlu0 %3246
        %v3251 = vunpack.c.l.b16 %v3014
        %v3252 = vunpack.c.l.b16 %v3015
        %v3253 = vunpack.c.l.b16 %v3016
        %v3254 = vpack.c.b16 %v3032, %v3251
        %v3255 = vpack.c.b16 %v3252, %v3129
        %v3256 = vpack.c.b16 %v3253, %v3253
        %v3257 = vrot.slane %v3254, 2
        %v3258 = vrot.slane %v3041, 2
        %v3259 = vsel %vm1204, %v3257, %v3258
        %v3260 = vrot.slane %v3042, 2
        %v3261 = vsel %vm1204, %v3258, %v3260
        %v3262 = vrot.slane %v3043, 2
        %v3263 = vsel %vm1204, %v3260, %v3262
        %v3264 = vrot.slane %v3255, 2
        %v3265 = vsel %vm1204, %v3262, %v3264
        %v3266 = vrot.slane %v3256, 2
        %v3267 = vsel %vm1204, %v3264, %v3266
        %3268 = vrot.lane.b32.xlu0 %v3259, 24
        %v3269 = vpop.permute.xlu0 %3268
        %3270 = vrot.lane.b32.xlu0 %v3261, 24
        %v3271 = vpop.permute.xlu0 %3270
        %3272 = vrot.lane.b32.xlu0 %v3263, 24
        %v3273 = vpop.permute.xlu0 %3272
        %3274 = vrot.lane.b32.xlu0 %v3265, 24
        %v3275 = vpop.permute.xlu0 %3274
        %3276 = vrot.lane.b32.xlu0 %v3267, 24
        %v3277 = vpop.permute.xlu0 %3276
        %v3279 = vunpack.c.l.b16 %v3017
        %v3280 = vpack.c.b16 %v3279, %v3279
        %v3282 = vshrl.u32 %v3254, 16
        %v3284 = vrot.slane %v3282, 2
        %v3285 = vshll.u32 %v3254, 16
        %v3287 = vrot.slane %v3285, 3
        %v3288 = vor.u32 %v3284, %v3287
        %v3289 = vrot.slane %v3067, 2
        %v3290 = vrot.slane %v3063, 3
        %v3291 = vor.u32 %v3289, %v3290
        %v3292 = vsel %vm1334, %v3288, %v3291
        %v3293 = vrot.slane %v3075, 2
        %v3294 = vrot.slane %v3071, 3
        %v3295 = vor.u32 %v3293, %v3294
        %v3296 = vsel %vm1334, %v3291, %v3295
        %v3297 = vrot.slane %v3083, 2
        %v3298 = vrot.slane %v3079, 3
        %v3299 = vor.u32 %v3297, %v3298
        %v3300 = vsel %vm1334, %v3295, %v3299
        %v3302 = vshrl.u32 %v3255, 16
        %v3304 = vrot.slane %v3302, 2
        %v3305 = vshll.u32 %v3255, 16
        %v3307 = vrot.slane %v3305, 3
        %v3308 = vor.u32 %v3304, %v3307
        %v3309 = vsel %vm1334, %v3299, %v3308
        %v3311 = vshrl.u32 %v3280, 16
        %v3313 = vrot.slane %v3311, 2
        %v3314 = vshll.u32 %v3280, 16
        %v3316 = vrot.slane %v3314, 3
        %v3317 = vor.u32 %v3313, %v3316
        %v3318 = vsel %vm1334, %v3308, %v3317
        %3319 = vrot.lane.b32.xlu0 %v3292, 28
        %v3320 = vpop.permute.xlu0 %3319
        %3321 = vrot.lane.b32.xlu0 %v3296, 28
        %v3322 = vpop.permute.xlu0 %3321
        %3323 = vrot.lane.b32.xlu0 %v3300, 28
        %v3324 = vpop.permute.xlu0 %3323
        %3325 = vrot.lane.b32.xlu0 %v3309, 28
        %v3326 = vpop.permute.xlu0 %3325
        %3327 = vrot.lane.b32.xlu0 %v3318, 28
        %v3328 = vpop.permute.xlu0 %3327
        %v3330 = vunpack.c.l.b16 %v3018
        %v3331 = vpack.c.b16 %v3032, %v3330
        %v3332 = vrot.slane %v3331, 3
        %v3333 = vrot.slane %v3041, 3
        %v3334 = vsel %vm1464, %v3332, %v3333
        %v3335 = vrot.slane %v3042, 3
        %v3336 = vsel %vm1464, %v3333, %v3335
        %v3337 = vrot.slane %v3043, 3
        %v3338 = vsel %vm1464, %v3335, %v3337
        %v3339 = vrot.slane %v3255, 3
        %v3340 = vsel %vm1464, %v3337, %v3339
        %v3341 = vrot.slane %v3280, 3
        %v3342 = vsel %vm1464, %v3339, %v3341
        %3343 = vrot.lane.b32.xlu0 %v3334, 32
        %v3344 = vpop.permute.xlu0 %3343
        %3345 = vrot.lane.b32.xlu0 %v3336, 32
        %v3346 = vpop.permute.xlu0 %3345
        %3347 = vrot.lane.b32.xlu0 %v3338, 32
        %v3348 = vpop.permute.xlu0 %3347
        %3349 = vrot.lane.b32.xlu0 %v3340, 32
        %v3350 = vpop.permute.xlu0 %3349
        %3351 = vrot.lane.b32.xlu0 %v3342, 32
        %v3352 = vpop.permute.xlu0 %3351
        %vm3353 = vcmask 31744
        %v3355 = vsel %vm3353, %v3039, %v3092
        %v3357 = vsel %vm3353, %v3040, %v3094
        %v3359 = vsel %vm3353, %v3041, %v3096
        %v3361 = vsel %vm3353, %v3042, %v3098
        %v3363 = vsel %vm3353, %v3043, %v3100
        %vm3364 = vcmask 64512
        %v3366 = vsel %vm3364, %v3355, %v3116
        %v3368 = vsel %vm3364, %v3357, %v3118
        %v3370 = vsel %vm3364, %v3359, %v3120
        %v3372 = vsel %vm3364, %v3361, %v3122
        %v3374 = vsel %vm3364, %v3363, %v3124
        %v3376 = vsel %vm1649, %v3366, %v3149
        %v3378 = vsel %vm1649, %v3368, %v3151
        %v3380 = vsel %vm1649, %v3370, %v3153
        %v3382 = vsel %vm1649, %v3372, %v3155
        %v3384 = vsel %vm1649, %v3374, %v3157
        %vm3385 = vcmask 130048
        %v3387 = vsel %vm3385, %v3376, %v3215
        %v3389 = vsel %vm3385, %v3378, %v3217
        %v3391 = vsel %vm3385, %v3380, %v3219
        %v3393 = vsel %vm3385, %v3382, %v3221
        %v3395 = vsel %vm3385, %v3384, %v3223
        %vm3396 = vcmask 162816
        %v3398 = vsel %vm3396, %v3387, %v3239
        %v3400 = vsel %vm3396, %v3389, %v3241
        %v3402 = vsel %vm3396, %v3391, %v3243
        %v3404 = vsel %vm3396, %v3393, %v3245
        %v3406 = vsel %vm3396, %v3395, %v3247
        %v3408 = vsel %vm1797, %v3398, %v3269
        %v3410 = vsel %vm1797, %v3400, %v3271
        %v3412 = vsel %vm1797, %v3402, %v3273
        %v3414 = vsel %vm1797, %v3404, %v3275
        %v3416 = vsel %vm1797, %v3406, %v3277
        %vm3417 = vcmask 228352
        %v3419 = vsel %vm3417, %v3408, %v3320
        %v3421 = vsel %vm3417, %v3410, %v3322
        %v3423 = vsel %vm3417, %v3412, %v3324
        %v3425 = vsel %vm3417, %v3414, %v3326
        %v3427 = vsel %vm3417, %v3416, %v3328
        %vm3428 = vcmask 261120
        %v3430 = vsel %vm3428, %v3419, %v3344
        %v3432 = vsel %vm3428, %v3421, %v3346
        %v3434 = vsel %vm3428, %v3423, %v3348
        %v3436 = vsel %vm3428, %v3425, %v3350
        %v3438 = vsel %vm3428, %v3427, %v3352
        %v3439 = vld [vmem:[%s4] sm:$0xf]
        %v3440 = vld [vmem:[%s4 + $0x4] sm:$0xf]
        %v3441 = vld [vmem:[%s4 + $0x8] sm:$0xf]
        %v3442 = vld [vmem:[%s4 + $0xc] sm:$0xf]
        %v3443 = vld [vmem:[%s4 + $0x10] sm:$0x3]
        %v3444 = vld [vmem:[%s5] sm:$0x1]
        %v3446 = vperm.slane %v3444, 0
        %v3453 = vunpack.c.l.b16 %v3439
        %v3454 = vunpack.c.l.b16 %v3440
        %v3455 = vunpack.c.l.b16 %v3441
        %v3456 = vunpack.c.l.b16 %v3442
        %v3457 = vunpack.c.l.b16 %v3443
        %v3458 = vpack.c.b16 %v3454, %v3453
        %v3459 = vpack.c.b16 %v3456, %v3455
        %v3460 = vpack.c.b16 %v3457, %v3457
        %vm3463 = vcmask 293888
        %v3464 = vsel %vm3463, %v3430, 0
        %v3466 = vsel %vm3463, %v3432, 0
        %v3468 = vsel %vm3463, %v3434, 0
        %v3470 = vsel %vm3463, %v3436, 0
        %v3472 = vsel %vm3463, %v3438, 0
        %vm3474 = vcmask 1041408
        %v3476 = vsel %vm3474, %v3460, 0
        %3478 = vmatpush.bf16.msra.mxu0 0
        %3479 = vmatpush.bf16.msra.mxu0 0
        %3480 = vmatpush.bf16.msra.mxu0 0
        %3481 = vmatpush.bf16.msra.mxu0 0
        %3482 = vmatpush.bf16.msra.mxu0 0
        %3483 = vmatpush.bf16.msra.mxu0 %v3476
        %3484 = vmatpush.bf16.msra.mxu0 %v3459
        %3485 = vmatpush.bf16.msra.mxu0 %v3458
        %3486 = vmatmul.bf16.gmra.mxu0 %v3464
        %v3487 = vpop.f32.mrf.mxu0
        %v3488 = vadd.f32 %v3446, %v3487
        %v3489 = vpop.f32.mrf.mxu0
        %v3490 = vadd.f32 %v3446, %v3489
        %3491 = vmatmul.bf16.gmra.mxu0 %v3466
        %v3492 = vpop.f32.mrf.mxu0
        %v3493 = vadd.f32 %v3446, %v3492
        %v3494 = vpop.f32.mrf.mxu0
        %v3495 = vadd.f32 %v3446, %v3494
        %3496 = vmatmul.bf16.gmra.mxu0 %v3468
        %v3497 = vpop.f32.mrf.mxu0
        %v3498 = vadd.f32 %v3446, %v3497
        %v3499 = vpop.f32.mrf.mxu0
        %v3500 = vadd.f32 %v3446, %v3499
        %3501 = vmatmul.bf16.gmra.mxu0 %v3470
        %v3502 = vpop.f32.mrf.mxu0
        %v3503 = vadd.f32 %v3446, %v3502
        %v3504 = vpop.f32.mrf.mxu0
        %v3505 = vadd.f32 %v3446, %v3504
        %3506 = vmatmul.bf16.gmra.mxu0 %v3472
        %v3507 = vpop.f32.mrf.mxu0
        %v3508 = vadd.f32 %v3446, %v3507
        %v3509 = vpop.f32.mrf.mxu0
        %v3510 = vadd.f32 %v3446, %v3509
        %3511 = vdwg.mxu0
        %v3512 = vmul.f32 %v3488, %v3488
        %v3513 = vmul.f32 %v3490, %v3490
        %v3514 = vmul.f32 %v3493, %v3493
        %v3515 = vmul.f32 %v3495, %v3495
        %v3516 = vmul.f32 %v3498, %v3498
        %v3517 = vmul.f32 %v3500, %v3500
        %v3518 = vmul.f32 %v3503, %v3503
        %v3519 = vmul.f32 %v3505, %v3505
        %v3520 = vmul.f32 %v3508, %v3508
        %v3521 = vmul.f32 %v3510, %v3510
        %v3522 = vmul.f32 %v3488, %v3512
        %v3523 = vmul.f32 %v3490, %v3513
        %v3524 = vmul.f32 %v3493, %v3514
        %v3525 = vmul.f32 %v3495, %v3515
        %v3526 = vmul.f32 %v3498, %v3516
        %v3527 = vmul.f32 %v3500, %v3517
        %v3528 = vmul.f32 %v3503, %v3518
        %v3529 = vmul.f32 %v3505, %v3519
        %v3530 = vmul.f32 %v3508, %v3520
        %v3531 = vmul.f32 %v3510, %v3521
        %v3532 = vmul.f32 %v3522, 0.044715
        %v3533 = vmul.f32 %v3523, 0.044715
        %v3534 = vmul.f32 %v3524, 0.044715
        %v3535 = vmul.f32 %v3525, 0.044715
        %v3536 = vmul.f32 %v3526, 0.044715
        %v3537 = vmul.f32 %v3527, 0.044715
        %v3538 = vmul.f32 %v3528, 0.044715
        %v3539 = vmul.f32 %v3529, 0.044715
        %v3540 = vmul.f32 %v3530, 0.044715
        %v3541 = vmul.f32 %v3531, 0.044715
        %v3542 = vadd.f32 %v3488, %v3532
        %v3543 = vadd.f32 %v3490, %v3533
        %v3544 = vadd.f32 %v3493, %v3534
        %v3545 = vadd.f32 %v3495, %v3535
        %v3546 = vadd.f32 %v3498, %v3536
        %v3547 = vadd.f32 %v3500, %v3537
        %v3548 = vadd.f32 %v3503, %v3538
        %v3549 = vadd.f32 %v3505, %v3539
        %v3550 = vadd.f32 %v3508, %v3540
        %v3551 = vadd.f32 %v3510, %v3541
        %v3552 = vmul.f32 %v3542, 0.7978846
        %v3553 = vmul.f32 %v3543, 0.7978846
        %v3554 = vmul.f32 %v3544, 0.7978846
        %v3555 = vmul.f32 %v3545, 0.7978846
        %v3556 = vmul.f32 %v3546, 0.7978846
        %v3557 = vmul.f32 %v3547, 0.7978846
        %v3558 = vmul.f32 %v3548, 0.7978846
        %v3559 = vmul.f32 %v3549, 0.7978846
        %v3560 = vmul.f32 %v3550, 0.7978846
        %v3561 = vmul.f32 %v3551, 0.7978846
        %v3562 = vtanh.pop %v3552
        %v3563 = vtanh.pop %v3553
        %v3564 = vtanh.pop %v3554
        %v3565 = vtanh.pop %v3555
        %v3566 = vtanh.pop %v3556
        %v3567 = vtanh.pop %v3557
        %v3568 = vtanh.pop %v3558
        %v3569 = vtanh.pop %v3559
        %v3570 = vtanh.pop %v3560
        %v3571 = vtanh.pop %v3561
        %v3572 = vadd.f32 %v3562, 1.0
        %v3573 = vadd.f32 %v3563, 1.0
        %v3574 = vadd.f32 %v3564, 1.0
        %v3575 = vadd.f32 %v3565, 1.0
        %v3576 = vadd.f32 %v3566, 1.0
        %v3577 = vadd.f32 %v3567, 1.0
        %v3578 = vadd.f32 %v3568, 1.0
        %v3579 = vadd.f32 %v3569, 1.0
        %v3580 = vadd.f32 %v3570, 1.0
        %v3581 = vadd.f32 %v3571, 1.0
        %v3582 = vmul.f32 %v3572, 0.5
        %v3583 = vmul.f32 %v3573, 0.5
        %v3584 = vmul.f32 %v3574, 0.5
        %v3585 = vmul.f32 %v3575, 0.5
        %v3586 = vmul.f32 %v3576, 0.5
        %v3587 = vmul.f32 %v3577, 0.5
        %v3588 = vmul.f32 %v3578, 0.5
        %v3589 = vmul.f32 %v3579, 0.5
        %v3590 = vmul.f32 %v3580, 0.5
        %v3591 = vmul.f32 %v3581, 0.5
        %v3592 = vmul.f32 %v3488, %v3582
        %v3593 = vmul.f32 %v3490, %v3583
        %v3594 = vmul.f32 %v3493, %v3584
        %v3595 = vmul.f32 %v3495, %v3585
        %v3596 = vmul.f32 %v3498, %v3586
        %v3597 = vmul.f32 %v3500, %v3587
        %v3598 = vmul.f32 %v3503, %v3588
        %v3599 = vmul.f32 %v3505, %v3589
        %v3600 = vmul.f32 %v3508, %v3590
        %v3601 = vmul.f32 %v3510, %v3591
        %v3602 = vld [vmem:[%s6] sm:$0xf]
        %v3603 = vld [vmem:[%s6 + $0x4] sm:$0xf]
        %v3604 = vld [vmem:[%s6 + $0x8] sm:$0xf]
        %v3605 = vld [vmem:[%s6 + $0xc] sm:$0xf]
        %v3606 = vld [vmem:[%s6 + $0x10] sm:$0xf]
        %v3607 = vld [vmem:[%s6 + $0x14] sm:$0xf]
        %v3608 = vld [vmem:[%s6 + $0x18] sm:$0xf]
        %v3609 = vld [vmem:[%s6 + $0x1c] sm:$0xf]
        %v3610 = vld [vmem:[%s6 + $0x20] sm:$0xf]
        %v3611 = vld [vmem:[%s6 + $0x24] sm:$0xf]
        %v3612 = vld [vmem:[%s6 + $0x28] sm:$0xf]
        %v3613 = vld [vmem:[%s6 + $0x2c] sm:$0xf]
        %v3614 = vld [vmem:[%s6 + $0x30] sm:$0xf]
        %v3615 = vpack.c.bf16 %v3593, %v3592
        %v3616 = vpack.c.bf16 %v3595, %v3594
        %v3617 = vpack.c.bf16 %v3597, %v3596
        %v3618 = vpack.c.bf16 %v3599, %v3598
        %v3619 = vpack.c.bf16 %v3601, %v3600
        %v3633 = vunpack.c.l.b16 %v3602
        %v3634 = vunpack.c.l.b16 %v3603
        %v3635 = vunpack.c.l.b16 %v3604
        %v3636 = vunpack.c.l.b16 %v3605
        %v3637 = vunpack.c.l.b16 %v3606
        %v3638 = vunpack.c.l.b16 %v3607
        %v3639 = vunpack.c.l.b16 %v3608
        %v3640 = vunpack.c.l.b16 %v3609
        %v3641 = vunpack.c.l.b16 %v3610
        %v3642 = vunpack.c.l.b16 %v3611
        %v3643 = vunpack.c.l.b16 %v3612
        %v3644 = vunpack.c.l.b16 %v3613
        %v3645 = vunpack.c.l.b16 %v3614
        %v3646 = vpack.c.b16 %v3634, %v3633
        %v3647 = vpack.c.b16 %v3636, %v3635
        %v3648 = vpack.c.b16 %v3638, %v3637
        %v3649 = vpack.c.b16 %v3640, %v3639
        %v3650 = vpack.c.b16 %v3642, %v3641
        %v3651 = vpack.c.b16 %v3644, %v3643
        %v3652 = vpack.c.b16 %v3645, %v3645
        %vm3653 = vcmask 654336
        %v3655 = vsel %vm3653, %v3646, 0
        %v3658 = vsel %vm3653, %v3647, 0
        %v3661 = vsel %vm3653, %v3648, 0
        %v3664 = vsel %vm3653, %v3649, 0
        %v3667 = vsel %vm3653, %v3650, 0
        %v3670 = vsel %vm3653, %v3651, 0
        %v3673 = vsel %vm3653, %v3652, 0
        %3675 = vmatpush.bf16.msra.mxu0 0
        %3676 = vmatpush.bf16.msra.mxu0 0
        %3677 = vmatpush.bf16.msra.mxu0 0
        %3678 = vmatpush.bf16.msra.mxu0 %v3619
        %3679 = vmatpush.bf16.msra.mxu0 %v3618
        %3680 = vmatpush.bf16.msra.mxu0 %v3617
        %3681 = vmatpush.bf16.msra.mxu0 %v3616
        %3682 = vmatpush.bf16.msra.mxu0 %v3615
        %3683 = vmatmul.bf16.gmra.mxu0 %v3655
        %v3684 = vpop.f32.mrf.mxu0
        %v3685 = vadd.f32 0.0, %v3684
        %v3686 = vpop.f32.mrf.mxu0
        %v3687 = vadd.f32 0.0, %v3686
        %3688 = vmatmul.bf16.gmra.mxu0 %v3658
        %v3689 = vpop.f32.mrf.mxu0
        %v3690 = vadd.f32 0.0, %v3689
        %v3691 = vpop.f32.mrf.mxu0
        %v3692 = vadd.f32 0.0, %v3691
        %3693 = vmatmul.bf16.gmra.mxu0 %v3661
        %v3694 = vpop.f32.mrf.mxu0
        %v3695 = vadd.f32 0.0, %v3694
        %v3696 = vpop.f32.mrf.mxu0
        %v3697 = vadd.f32 0.0, %v3696
        %3698 = vmatmul.bf16.gmra.mxu0 %v3664
        %v3699 = vpop.f32.mrf.mxu0
        %v3700 = vadd.f32 0.0, %v3699
        %v3701 = vpop.f32.mrf.mxu0
        %v3702 = vadd.f32 0.0, %v3701
        %3703 = vmatmul.bf16.gmra.mxu0 %v3667
        %v3704 = vpop.f32.mrf.mxu0
        %v3705 = vadd.f32 0.0, %v3704
        %v3706 = vpop.f32.mrf.mxu0
        %v3707 = vadd.f32 0.0, %v3706
        %3708 = vmatmul.bf16.gmra.mxu0 %v3670
        %v3709 = vpop.f32.mrf.mxu0
        %v3710 = vadd.f32 0.0, %v3709
        %v3711 = vpop.f32.mrf.mxu0
        %v3712 = vadd.f32 0.0, %v3711
        %3713 = vmatmul.bf16.gmra.mxu0 %v3673
        %v3714 = vpop.f32.mrf.mxu0
        %v3715 = vadd.f32 0.0, %v3714
        %v3716 = vpop.f32.mrf.mxu0
        %3717 = vdwg.mxu0
        %v3718 = vpack.c.bf16 %v3685, %v3685
        %v3719 = vpack.c.bf16 %v3687, %v3687
        %v3720 = vpack.c.bf16 %v3690, %v3690
        %v3721 = vpack.c.bf16 %v3692, %v3692
        %v3722 = vpack.c.bf16 %v3695, %v3695
        %v3723 = vpack.c.bf16 %v3697, %v3697
        %v3724 = vpack.c.bf16 %v3700, %v3700
        %v3725 = vpack.c.bf16 %v3702, %v3702
        %v3726 = vpack.c.bf16 %v3705, %v3705
        %v3727 = vpack.c.bf16 %v3707, %v3707
        %v3728 = vpack.c.bf16 %v3710, %v3710
        %v3729 = vpack.c.bf16 %v3712, %v3712
        %v3730 = vpack.c.bf16 %v3715, %v3715
        %vm3731 = vcmask 60416
        %3732 = vst.msk [vmem:[#allocation3] sm:$0xf] %vm3731, %v3718
        %3733 = vst.msk [vmem:[#allocation3 + $0x4] sm:$0xf] %vm3731, %v3719
        %3734 = vst.msk [vmem:[#allocation3 + $0x8] sm:$0xf] %vm3731, %v3720
        %3735 = vst.msk [vmem:[#allocation3 + $0xc] sm:$0xf] %vm3731, %v3721
        %3736 = vst.msk [vmem:[#allocation3 + $0x10] sm:$0xf] %vm3731, %v3722
        %3737 = vst.msk [vmem:[#allocation3 + $0x14] sm:$0xf] %vm3731, %v3723
        %3738 = vst.msk [vmem:[#allocation3 + $0x18] sm:$0xf] %vm3731, %v3724
        %3739 = vst.msk [vmem:[#allocation3 + $0x1c] sm:$0xf] %vm3731, %v3725
        %3740 = vst.msk [vmem:[#allocation3 + $0x20] sm:$0xf] %vm3731, %v3726
        %3741 = vst.msk [vmem:[#allocation3 + $0x24] sm:$0xf] %vm3731, %v3727
        %3742 = vst.msk [vmem:[#allocation3 + $0x28] sm:$0xf] %vm3731, %v3728
        %3743 = vst.msk [vmem:[#allocation3 + $0x2c] sm:$0xf] %vm3731, %v3729
        %3744 = vst.msk [vmem:[#allocation3 + $0x30] sm:$0xf] %vm3731, %v3730
        %v3745 = vld [vmem:[#allocation3] sm:$0xf]
        %v3746 = vld [vmem:[#allocation3 + $0x4] sm:$0xf]
        %v3747 = vld [vmem:[#allocation3 + $0x8] sm:$0xf]
        %v3748 = vld [vmem:[#allocation3 + $0xc] sm:$0xf]
        %v3749 = vld [vmem:[#allocation3 + $0x10] sm:$0xf]
        %v3750 = vld [vmem:[#allocation3 + $0x14] sm:$0xf]
        %v3751 = vld [vmem:[#allocation3 + $0x18] sm:$0xf]
        %v3752 = vld [vmem:[#allocation3 + $0x1c] sm:$0xf]
        %v3753 = vld [vmem:[#allocation3 + $0x20] sm:$0xf]
        %v3754 = vld [vmem:[#allocation3 + $0x24] sm:$0xf]
        %v3755 = vld [vmem:[#allocation3 + $0x28] sm:$0x1]
        %v3756 = vld [vmem:[#allocation3] sm:$0xe]
        %v3757 = vld [vmem:[#allocation3 + $0x4] sm:$0xe]
        %v3758 = vld [vmem:[#allocation3 + $0x28] sm:$0xf]
        %v3759 = vld [vmem:[#allocation3 + $0x2c] sm:$0x1]
        %v3760 = vld [vmem:[#allocation3 + $0x2c] sm:$0x3]
        %v3761 = vld [vmem:[#allocation3 + $0x4] sm:$0xc]
        %v3762 = vld [vmem:[#allocation3 + $0x8] sm:$0xc]
        %v3763 = vld [vmem:[#allocation3 + $0x2c] sm:$0xf]
        %v3764 = vld [vmem:[#allocation3 + $0x30] sm:$0x3]
        %v3765 = vld [vmem:[#allocation3 + $0x30] sm:$0x7]
        %v3766 = vld [vmem:[#allocation3 + $0x8] sm:$0x8]
        %v3777 = vunpack.c.l.b16 %v3745
        %v3778 = vunpack.c.l.b16 %v3746
        %v3779 = vunpack.c.l.b16 %v3747
        %v3780 = vunpack.c.l.b16 %v3748
        %v3781 = vunpack.c.l.b16 %v3749
        %v3782 = vunpack.c.l.b16 %v3750
        %v3783 = vunpack.c.l.b16 %v3751
        %v3784 = vunpack.c.l.b16 %v3752
        %v3785 = vunpack.c.l.b16 %v3753
        %v3786 = vunpack.c.l.b16 %v3754
        %v3787 = vpack.c.b16 %v3778, %v3777
        %v3788 = vpack.c.b16 %v3780, %v3779
        %v3789 = vpack.c.b16 %v3782, %v3781
        %v3790 = vpack.c.b16 %v3784, %v3783
        %v3791 = vpack.c.b16 %v3786, %v3785
        %v3793 = vunpack.c.l.b16 %v3755
        %v3794 = vpack.c.b16 %v3793, %v3793
        %v3796 = vshrl.u32 %v3787, 16
        %v3798 = vshll.u32 %v3787, 16
        %v3800 = vrot.slane %v3798, 1
        %v3801 = vor.u32 %v3796, %v3800
        %v3803 = vshll.u32 %v3788, 16
        %v3805 = vrot.slane %v3803, 1
        %v3806 = vsel %vm756, %v3801, %v3805
        %v3807 = vshrl.u32 %v3788, 16
        %v3809 = vor.u32 %v3807, %v3805
        %v3811 = vshll.u32 %v3789, 16
        %v3813 = vrot.slane %v3811, 1
        %v3814 = vsel %vm756, %v3809, %v3813
        %v3815 = vshrl.u32 %v3789, 16
        %v3817 = vor.u32 %v3815, %v3813
        %v3819 = vshll.u32 %v3790, 16
        %v3821 = vrot.slane %v3819, 1
        %v3822 = vsel %vm756, %v3817, %v3821
        %v3823 = vshrl.u32 %v3790, 16
        %v3825 = vor.u32 %v3823, %v3821
        %v3827 = vshll.u32 %v3791, 16
        %v3829 = vrot.slane %v3827, 1
        %v3830 = vsel %vm756, %v3825, %v3829
        %v3831 = vshrl.u32 %v3791, 16
        %v3833 = vor.u32 %v3831, %v3829
        %v3835 = vshll.u32 %v3794, 16
        %v3837 = vrot.slane %v3835, 1
        %v3838 = vsel %vm756, %v3833, %v3837
        %3839 = vrot.lane.b32.xlu0 %v3806, 8
        %v3840 = vpop.permute.xlu0 %3839
        %3841 = vrot.lane.b32.xlu0 %v3814, 8
        %v3842 = vpop.permute.xlu0 %3841
        %3843 = vrot.lane.b32.xlu0 %v3822, 8
        %v3844 = vpop.permute.xlu0 %3843
        %3845 = vrot.lane.b32.xlu0 %v3830, 8
        %v3846 = vpop.permute.xlu0 %3845
        %3847 = vrot.lane.b32.xlu0 %v3838, 8
        %v3848 = vpop.permute.xlu0 %3847
        %v3850 = vunpack.c.l.b16 %v3756
        %v3851 = vpack.c.b16 %v3778, %v3850
        %v3852 = vrot.slane %v3851, 1
        %v3853 = vrot.slane %v3788, 1
        %v3854 = vsel %vm944, %v3852, %v3853
        %v3855 = vrot.slane %v3789, 1
        %v3856 = vsel %vm944, %v3853, %v3855
        %v3857 = vrot.slane %v3790, 1
        %v3858 = vsel %vm944, %v3855, %v3857
        %v3859 = vrot.slane %v3791, 1
        %v3860 = vsel %vm944, %v3857, %v3859
        %v3861 = vrot.slane %v3794, 1
        %v3862 = vsel %vm944, %v3859, %v3861
        %3863 = vrot.lane.b32.xlu0 %v3854, 16
        %v3864 = vpop.permute.xlu0 %3863
        %3865 = vrot.lane.b32.xlu0 %v3856, 16
        %v3866 = vpop.permute.xlu0 %3865
        %3867 = vrot.lane.b32.xlu0 %v3858, 16
        %v3868 = vpop.permute.xlu0 %3867
        %3869 = vrot.lane.b32.xlu0 %v3860, 16
        %v3870 = vpop.permute.xlu0 %3869
        %3871 = vrot.lane.b32.xlu0 %v3862, 16
        %v3872 = vpop.permute.xlu0 %3871
        %v3876 = vunpack.c.l.b16 %v3757
        %v3877 = vunpack.c.l.b16 %v3758
        %v3878 = vunpack.c.l.b16 %v3759
        %v3879 = vpack.c.b16 %v3779, %v3876
        %v3880 = vpack.c.b16 %v3781, %v3780
        %v3881 = vpack.c.b16 %v3783, %v3782
        %v3882 = vpack.c.b16 %v3785, %v3784
        %v3883 = vpack.c.b16 %v3877, %v3786
        %v3884 = vpack.c.b16 %v3878, %v3878
        %v3885 = vrot.slane %v3879, 1
        %v3886 = vrot.slane %v3880, 1
        %v3887 = vsel %vm944, %v3885, %v3886
        %v3888 = vrot.slane %v3881, 1
        %v3889 = vsel %vm944, %v3886, %v3888
        %v3890 = vrot.slane %v3882, 1
        %v3891 = vsel %vm944, %v3888, %v3890
        %v3892 = vrot.slane %v3883, 1
        %v3893 = vsel %vm944, %v3890, %v3892
        %v3894 = vrot.slane %v3884, 1
        %v3895 = vsel %vm944, %v3892, %v3894
        %3896 = vrot.lane.b32.xlu0 %v3887, 24
        %v3897 = vpop.permute.xlu0 %3896
        %3898 = vrot.lane.b32.xlu0 %v3889, 24
        %v3899 = vpop.permute.xlu0 %3898
        %3900 = vrot.lane.b32.xlu0 %v3891, 24
        %v3901 = vpop.permute.xlu0 %3900
        %3902 = vrot.lane.b32.xlu0 %v3893, 24
        %v3903 = vpop.permute.xlu0 %3902
        %3904 = vrot.lane.b32.xlu0 %v3895, 24
        %v3905 = vpop.permute.xlu0 %3904
        %v3907 = vunpack.c.l.b16 %v3760
        %v3908 = vpack.c.b16 %v3907, %v3907
        %v3910 = vshrl.u32 %v3879, 16
        %v3912 = vrot.slane %v3910, 1
        %v3913 = vshll.u32 %v3879, 16
        %v3915 = vrot.slane %v3913, 2
        %v3916 = vor.u32 %v3912, %v3915
        %v3918 = vshrl.u32 %v3880, 16
        %v3920 = vrot.slane %v3918, 1
        %v3921 = vshll.u32 %v3880, 16
        %v3923 = vrot.slane %v3921, 2
        %v3924 = vor.u32 %v3920, %v3923
        %v3925 = vsel %vm1074, %v3916, %v3924
        %v3927 = vshrl.u32 %v3881, 16
        %v3929 = vrot.slane %v3927, 1
        %v3930 = vshll.u32 %v3881, 16
        %v3932 = vrot.slane %v3930, 2
        %v3933 = vor.u32 %v3929, %v3932
        %v3934 = vsel %vm1074, %v3924, %v3933
        %v3936 = vshrl.u32 %v3882, 16
        %v3938 = vrot.slane %v3936, 1
        %v3939 = vshll.u32 %v3882, 16
        %v3941 = vrot.slane %v3939, 2
        %v3942 = vor.u32 %v3938, %v3941
        %v3943 = vsel %vm1074, %v3933, %v3942
        %v3945 = vshrl.u32 %v3883, 16
        %v3947 = vrot.slane %v3945, 1
        %v3948 = vshll.u32 %v3883, 16
        %v3950 = vrot.slane %v3948, 2
        %v3951 = vor.u32 %v3947, %v3950
        %v3952 = vsel %vm1074, %v3942, %v3951
        %v3954 = vshrl.u32 %v3908, 16
        %v3956 = vrot.slane %v3954, 1
        %v3957 = vshll.u32 %v3908, 16
        %v3959 = vrot.slane %v3957, 2
        %v3960 = vor.u32 %v3956, %v3959
        %v3961 = vsel %vm1074, %v3951, %v3960
        %3962 = vrot.lane.b32.xlu0 %v3925, 32
        %v3963 = vpop.permute.xlu0 %3962
        %3964 = vrot.lane.b32.xlu0 %v3934, 32
        %v3965 = vpop.permute.xlu0 %3964
        %3966 = vrot.lane.b32.xlu0 %v3943, 32
        %v3967 = vpop.permute.xlu0 %3966
        %3968 = vrot.lane.b32.xlu0 %v3952, 32
        %v3969 = vpop.permute.xlu0 %3968
        %3970 = vrot.lane.b32.xlu0 %v3961, 32
        %v3971 = vpop.permute.xlu0 %3970
        %v3973 = vunpack.c.l.b16 %v3761
        %v3974 = vpack.c.b16 %v3779, %v3973
        %v3975 = vrot.slane %v3974, 2
        %v3976 = vrot.slane %v3880, 2
        %v3977 = vsel %vm1204, %v3975, %v3976
        %v3978 = vrot.slane %v3881, 2
        %v3979 = vsel %vm1204, %v3976, %v3978
        %v3980 = vrot.slane %v3882, 2
        %v3981 = vsel %vm1204, %v3978, %v3980
        %v3982 = vrot.slane %v3883, 2
        %v3983 = vsel %vm1204, %v3980, %v3982
        %v3984 = vrot.slane %v3908, 2
        %v3985 = vsel %vm1204, %v3982, %v3984
        %3986 = vrot.lane.b32.xlu0 %v3977, 40
        %v3987 = vpop.permute.xlu0 %3986
        %3988 = vrot.lane.b32.xlu0 %v3979, 40
        %v3989 = vpop.permute.xlu0 %3988
        %3990 = vrot.lane.b32.xlu0 %v3981, 40
        %v3991 = vpop.permute.xlu0 %3990
        %3992 = vrot.lane.b32.xlu0 %v3983, 40
        %v3993 = vpop.permute.xlu0 %3992
        %3994 = vrot.lane.b32.xlu0 %v3985, 40
        %v3995 = vpop.permute.xlu0 %3994
        %v3999 = vunpack.c.l.b16 %v3762
        %v4000 = vunpack.c.l.b16 %v3763
        %v4001 = vunpack.c.l.b16 %v3764
        %v4002 = vpack.c.b16 %v3780, %v3999
        %v4003 = vpack.c.b16 %v4000, %v3877
        %v4004 = vpack.c.b16 %v4001, %v4001
        %v4005 = vrot.slane %v4002, 2
        %v4006 = vrot.slane %v3789, 2
        %v4007 = vsel %vm1204, %v4005, %v4006
        %v4008 = vrot.slane %v3790, 2
        %v4009 = vsel %vm1204, %v4006, %v4008
        %v4010 = vrot.slane %v3791, 2
        %v4011 = vsel %vm1204, %v4008, %v4010
        %v4012 = vrot.slane %v4003, 2
        %v4013 = vsel %vm1204, %v4010, %v4012
        %v4014 = vrot.slane %v4004, 2
        %v4015 = vsel %vm1204, %v4012, %v4014
        %4016 = vrot.lane.b32.xlu0 %v4007, 48
        %v4017 = vpop.permute.xlu0 %4016
        %4018 = vrot.lane.b32.xlu0 %v4009, 48
        %v4019 = vpop.permute.xlu0 %4018
        %4020 = vrot.lane.b32.xlu0 %v4011, 48
        %v4021 = vpop.permute.xlu0 %4020
        %4022 = vrot.lane.b32.xlu0 %v4013, 48
        %v4023 = vpop.permute.xlu0 %4022
        %4024 = vrot.lane.b32.xlu0 %v4015, 48
        %v4025 = vpop.permute.xlu0 %4024
        %v4027 = vunpack.c.l.b16 %v3765
        %v4028 = vpack.c.b16 %v4027, %v4027
        %v4030 = vshrl.u32 %v4002, 16
        %v4032 = vrot.slane %v4030, 2
        %v4033 = vshll.u32 %v4002, 16
        %v4035 = vrot.slane %v4033, 3
        %v4036 = vor.u32 %v4032, %v4035
        %v4037 = vrot.slane %v3815, 2
        %v4038 = vrot.slane %v3811, 3
        %v4039 = vor.u32 %v4037, %v4038
        %v4040 = vsel %vm1334, %v4036, %v4039
        %v4041 = vrot.slane %v3823, 2
        %v4042 = vrot.slane %v3819, 3
        %v4043 = vor.u32 %v4041, %v4042
        %v4044 = vsel %vm1334, %v4039, %v4043
        %v4045 = vrot.slane %v3831, 2
        %v4046 = vrot.slane %v3827, 3
        %v4047 = vor.u32 %v4045, %v4046
        %v4048 = vsel %vm1334, %v4043, %v4047
        %v4050 = vshrl.u32 %v4003, 16
        %v4052 = vrot.slane %v4050, 2
        %v4053 = vshll.u32 %v4003, 16
        %v4055 = vrot.slane %v4053, 3
        %v4056 = vor.u32 %v4052, %v4055
        %v4057 = vsel %vm1334, %v4047, %v4056
        %v4059 = vshrl.u32 %v4028, 16
        %v4061 = vrot.slane %v4059, 2
        %v4062 = vshll.u32 %v4028, 16
        %v4064 = vrot.slane %v4062, 3
        %v4065 = vor.u32 %v4061, %v4064
        %v4066 = vsel %vm1334, %v4056, %v4065
        %4067 = vrot.lane.b32.xlu0 %v4040, 56
        %v4068 = vpop.permute.xlu0 %4067
        %4069 = vrot.lane.b32.xlu0 %v4044, 56
        %v4070 = vpop.permute.xlu0 %4069
        %4071 = vrot.lane.b32.xlu0 %v4048, 56
        %v4072 = vpop.permute.xlu0 %4071
        %4073 = vrot.lane.b32.xlu0 %v4057, 56
        %v4074 = vpop.permute.xlu0 %4073
        %4075 = vrot.lane.b32.xlu0 %v4066, 56
        %v4076 = vpop.permute.xlu0 %4075
        %v4078 = vunpack.c.l.b16 %v3766
        %v4079 = vpack.c.b16 %v3780, %v4078
        %v4080 = vrot.slane %v4079, 3
        %v4081 = vrot.slane %v3789, 3
        %v4082 = vsel %vm1464, %v4080, %v4081
        %v4083 = vrot.slane %v3790, 3
        %v4084 = vsel %vm1464, %v4081, %v4083
        %v4085 = vrot.slane %v3791, 3
        %v4086 = vsel %vm1464, %v4083, %v4085
        %v4087 = vrot.slane %v4003, 3
        %v4088 = vsel %vm1464, %v4085, %v4087
        %v4089 = vrot.slane %v4028, 3
        %v4090 = vsel %vm1464, %v4087, %v4089
        %4091 = vrot.lane.b32.xlu0 %v4082, 64
        %v4092 = vpop.permute.xlu0 %4091
        %4093 = vrot.lane.b32.xlu0 %v4084, 64
        %v4094 = vpop.permute.xlu0 %4093
        %4095 = vrot.lane.b32.xlu0 %v4086, 64
        %v4096 = vpop.permute.xlu0 %4095
        %4097 = vrot.lane.b32.xlu0 %v4088, 64
        %v4098 = vpop.permute.xlu0 %4097
        %4099 = vrot.lane.b32.xlu0 %v4090, 64
        %v4100 = vpop.permute.xlu0 %4099
        %v4102 = vsel %vm3364, %v3787, %v3840
        %v4104 = vsel %vm3364, %v3788, %v3842
        %v4106 = vsel %vm3364, %v3789, %v3844
        %v4108 = vsel %vm3364, %v3790, %v3846
        %v4110 = vsel %vm3364, %v3791, %v3848
        %v4112 = vsel %vm3385, %v4102, %v3864
        %v4114 = vsel %vm3385, %v4104, %v3866
        %v4116 = vsel %vm3385, %v4106, %v3868
        %v4118 = vsel %vm3385, %v4108, %v3870
        %v4120 = vsel %vm3385, %v4110, %v3872
        %v4122 = vsel %vm1797, %v4112, %v3897
        %v4124 = vsel %vm1797, %v4114, %v3899
        %v4126 = vsel %vm1797, %v4116, %v3901
        %v4128 = vsel %vm1797, %v4118, %v3903
        %v4130 = vsel %vm1797, %v4120, %v3905
        %v4132 = vsel %vm3428, %v4122, %v3963
        %v4134 = vsel %vm3428, %v4124, %v3965
        %v4136 = vsel %vm3428, %v4126, %v3967
        %v4138 = vsel %vm3428, %v4128, %v3969
        %v4140 = vsel %vm3428, %v4130, %v3971
        %vm4141 = vcmask 326656
        %v4143 = vsel %vm4141, %v4132, %v3987
        %v4145 = vsel %vm4141, %v4134, %v3989
        %v4147 = vsel %vm4141, %v4136, %v3991
        %v4149 = vsel %vm4141, %v4138, %v3993
        %v4151 = vsel %vm4141, %v4140, %v3995
        %vm4152 = vcmask 392192
        %v4154 = vsel %vm4152, %v4143, %v4017
        %v4156 = vsel %vm4152, %v4145, %v4019
        %v4158 = vsel %vm4152, %v4147, %v4021
        %v4160 = vsel %vm4152, %v4149, %v4023
        %v4162 = vsel %vm4152, %v4151, %v4025
        %vm4163 = vcmask 457728
        %v4165 = vsel %vm4163, %v4154, %v4068
        %v4167 = vsel %vm4163, %v4156, %v4070
        %v4169 = vsel %vm4163, %v4158, %v4072
        %v4171 = vsel %vm4163, %v4160, %v4074
        %v4173 = vsel %vm4163, %v4162, %v4076
        %vm4174 = vcmask 523264
        %v4176 = vsel %vm4174, %v4165, %v4092
        %v4178 = vsel %vm4174, %v4167, %v4094
        %v4180 = vsel %vm4174, %v4169, %v4096
        %v4182 = vsel %vm4174, %v4171, %v4098
        %v4184 = vsel %vm4174, %v4173, %v4100
        %v4185 = vld [vmem:[%s7] sm:$0xf]
        %v4186 = vld [vmem:[%s7 + $0x4] sm:$0xf]
        %v4187 = vld [vmem:[%s7 + $0x8] sm:$0xf]
        %v4188 = vld [vmem:[%s7 + $0xc] sm:$0xf]
        %v4189 = vld [vmem:[%s7 + $0x10] sm:$0xf]
        %v4190 = vld [vmem:[%s7 + $0x14] sm:$0xf]
        %v4191 = vld [vmem:[%s7 + $0x18] sm:$0xf]
        %v4192 = vld [vmem:[%s7 + $0x1c] sm:$0xf]
        %v4193 = vld [vmem:[%s7 + $0x20] sm:$0xf]
        %v4194 = vld [vmem:[%s8] sm:$0x1]
        %v4196 = vperm.slane %v4194, 0
        %v4207 = vunpack.c.l.b16 %v4185
        %v4208 = vunpack.c.l.b16 %v4186
        %v4209 = vunpack.c.l.b16 %v4187
        %v4210 = vunpack.c.l.b16 %v4188
        %v4211 = vunpack.c.l.b16 %v4189
        %v4212 = vunpack.c.l.b16 %v4190
        %v4213 = vunpack.c.l.b16 %v4191
        %v4214 = vunpack.c.l.b16 %v4192
        %v4215 = vunpack.c.l.b16 %v4193
        %v4216 = vpack.c.b16 %v4208, %v4207
        %v4217 = vpack.c.b16 %v4210, %v4209
        %v4218 = vpack.c.b16 %v4212, %v4211
        %v4219 = vpack.c.b16 %v4214, %v4213
        %v4220 = vpack.c.b16 %v4215, %v4215
        %vm4225 = vcmask 588800
        %v4226 = vsel %vm4225, %v4176, 0
        %v4228 = vsel %vm4225, %v4178, 0
        %v4230 = vsel %vm4225, %v4180, 0
        %v4232 = vsel %vm4225, %v4182, 0
        %v4234 = vsel %vm4225, %v4184, 0
        %vm4236 = vcmask 1043456
        %v4238 = vsel %vm4236, %v4220, 0
        %4240 = vmatpush.bf16.msra.mxu0 0
        %4241 = vmatpush.bf16.msra.mxu0 0
        %4242 = vmatpush.bf16.msra.mxu0 0
        %4243 = vmatpush.bf16.msra.mxu0 %v4238
        %4244 = vmatpush.bf16.msra.mxu0 %v4219
        %4245 = vmatpush.bf16.msra.mxu0 %v4218
        %4246 = vmatpush.bf16.msra.mxu0 %v4217
        %4247 = vmatpush.bf16.msra.mxu0 %v4216
        %4248 = vmatmul.bf16.gmra.mxu0 %v4226
        %v4249 = vpop.f32.mrf.mxu0
        %v4250 = vadd.f32 %v4196, %v4249
        %v4251 = vpop.f32.mrf.mxu0
        %v4252 = vadd.f32 %v4196, %v4251
        %4253 = vmatmul.bf16.gmra.mxu0 %v4228
        %v4254 = vpop.f32.mrf.mxu0
        %v4255 = vadd.f32 %v4196, %v4254
        %v4256 = vpop.f32.mrf.mxu0
        %v4257 = vadd.f32 %v4196, %v4256
        %4258 = vmatmul.bf16.gmra.mxu0 %v4230
        %v4259 = vpop.f32.mrf.mxu0
        %v4260 = vadd.f32 %v4196, %v4259
        %v4261 = vpop.f32.mrf.mxu0
        %v4262 = vadd.f32 %v4196, %v4261
        %4263 = vmatmul.bf16.gmra.mxu0 %v4232
        %v4264 = vpop.f32.mrf.mxu0
        %v4265 = vadd.f32 %v4196, %v4264
        %v4266 = vpop.f32.mrf.mxu0
        %v4267 = vadd.f32 %v4196, %v4266
        %4268 = vmatmul.bf16.gmra.mxu0 %v4234
        %v4269 = vpop.f32.mrf.mxu0
        %v4270 = vadd.f32 %v4196, %v4269
        %v4271 = vpop.f32.mrf.mxu0
        %v4272 = vadd.f32 %v4196, %v4271
        %4273 = vdwg.mxu0
        %v4274 = vmul.f32 %v4250, %v4250
        %v4275 = vmul.f32 %v4252, %v4252
        %v4276 = vmul.f32 %v4255, %v4255
        %v4277 = vmul.f32 %v4257, %v4257
        %v4278 = vmul.f32 %v4260, %v4260
        %v4279 = vmul.f32 %v4262, %v4262
        %v4280 = vmul.f32 %v4265, %v4265
        %v4281 = vmul.f32 %v4267, %v4267
        %v4282 = vmul.f32 %v4270, %v4270
        %v4283 = vmul.f32 %v4272, %v4272
        %v4284 = vmul.f32 %v4250, %v4274
        %v4285 = vmul.f32 %v4252, %v4275
        %v4286 = vmul.f32 %v4255, %v4276
        %v4287 = vmul.f32 %v4257, %v4277
        %v4288 = vmul.f32 %v4260, %v4278
        %v4289 = vmul.f32 %v4262, %v4279
        %v4290 = vmul.f32 %v4265, %v4280
        %v4291 = vmul.f32 %v4267, %v4281
        %v4292 = vmul.f32 %v4270, %v4282
        %v4293 = vmul.f32 %v4272, %v4283
        %v4294 = vmul.f32 %v4284, 0.044715
        %v4295 = vmul.f32 %v4285, 0.044715
        %v4296 = vmul.f32 %v4286, 0.044715
        %v4297 = vmul.f32 %v4287, 0.044715
        %v4298 = vmul.f32 %v4288, 0.044715
        %v4299 = vmul.f32 %v4289, 0.044715
        %v4300 = vmul.f32 %v4290, 0.044715
        %v4301 = vmul.f32 %v4291, 0.044715
        %v4302 = vmul.f32 %v4292, 0.044715
        %v4303 = vmul.f32 %v4293, 0.044715
        %v4304 = vadd.f32 %v4250, %v4294
        %v4305 = vadd.f32 %v4252, %v4295
        %v4306 = vadd.f32 %v4255, %v4296
        %v4307 = vadd.f32 %v4257, %v4297
        %v4308 = vadd.f32 %v4260, %v4298
        %v4309 = vadd.f32 %v4262, %v4299
        %v4310 = vadd.f32 %v4265, %v4300
        %v4311 = vadd.f32 %v4267, %v4301
        %v4312 = vadd.f32 %v4270, %v4302
        %v4313 = vadd.f32 %v4272, %v4303
        %v4314 = vmul.f32 %v4304, 0.7978846
        %v4315 = vmul.f32 %v4305, 0.7978846
        %v4316 = vmul.f32 %v4306, 0.7978846
        %v4317 = vmul.f32 %v4307, 0.7978846
        %v4318 = vmul.f32 %v4308, 0.7978846
        %v4319 = vmul.f32 %v4309, 0.7978846
        %v4320 = vmul.f32 %v4310, 0.7978846
        %v4321 = vmul.f32 %v4311, 0.7978846
        %v4322 = vmul.f32 %v4312, 0.7978846
        %v4323 = vmul.f32 %v4313, 0.7978846
        %v4324 = vtanh.pop %v4314
        %v4325 = vtanh.pop %v4315
        %v4326 = vtanh.pop %v4316
        %v4327 = vtanh.pop %v4317
        %v4328 = vtanh.pop %v4318
        %v4329 = vtanh.pop %v4319
        %v4330 = vtanh.pop %v4320
        %v4331 = vtanh.pop %v4321
        %v4332 = vtanh.pop %v4322
        %v4333 = vtanh.pop %v4323
        %v4334 = vadd.f32 %v4324, 1.0
        %v4335 = vadd.f32 %v4325, 1.0
        %v4336 = vadd.f32 %v4326, 1.0
        %v4337 = vadd.f32 %v4327, 1.0
        %v4338 = vadd.f32 %v4328, 1.0
        %v4339 = vadd.f32 %v4329, 1.0
        %v4340 = vadd.f32 %v4330, 1.0
        %v4341 = vadd.f32 %v4331, 1.0
        %v4342 = vadd.f32 %v4332, 1.0
        %v4343 = vadd.f32 %v4333, 1.0
        %v4344 = vmul.f32 %v4334, 0.5
        %v4345 = vmul.f32 %v4335, 0.5
        %v4346 = vmul.f32 %v4336, 0.5
        %v4347 = vmul.f32 %v4337, 0.5
        %v4348 = vmul.f32 %v4338, 0.5
        %v4349 = vmul.f32 %v4339, 0.5
        %v4350 = vmul.f32 %v4340, 0.5
        %v4351 = vmul.f32 %v4341, 0.5
        %v4352 = vmul.f32 %v4342, 0.5
        %v4353 = vmul.f32 %v4343, 0.5
        %v4354 = vmul.f32 %v4250, %v4344
        %v4355 = vmul.f32 %v4252, %v4345
        %v4356 = vmul.f32 %v4255, %v4346
        %v4357 = vmul.f32 %v4257, %v4347
        %v4358 = vmul.f32 %v4260, %v4348
        %v4359 = vmul.f32 %v4262, %v4349
        %v4360 = vmul.f32 %v4265, %v4350
        %v4361 = vmul.f32 %v4267, %v4351
        %v4362 = vmul.f32 %v4270, %v4352
        %v4363 = vmul.f32 %v4272, %v4353
        %v4373 = vrot.slane %v4354, 1
        %v4374 = vrot.slane %v4355, 1
        %v4375 = vsel %vm2354, %v4373, %v4374
        %v4376 = vrot.slane %v4356, 1
        %v4377 = vsel %vm2354, %v4374, %v4376
        %v4378 = vrot.slane %v4357, 1
        %v4379 = vsel %vm2354, %v4376, %v4378
        %v4380 = vrot.slane %v4358, 1
        %v4381 = vsel %vm2354, %v4378, %v4380
        %v4382 = vrot.slane %v4359, 1
        %v4383 = vsel %vm2354, %v4380, %v4382
        %v4384 = vrot.slane %v4360, 1
        %v4385 = vsel %vm2354, %v4382, %v4384
        %v4386 = vrot.slane %v4361, 1
        %v4387 = vsel %vm2354, %v4384, %v4386
        %v4388 = vrot.slane %v4362, 1
        %v4389 = vsel %vm2354, %v4386, %v4388
        %v4399 = vmax.f32 %v4354, %v4375
        %v4400 = vmax.f32 %v4355, %v4377
        %v4401 = vmax.f32 %v4356, %v4379
        %v4402 = vmax.f32 %v4357, %v4381
        %v4403 = vmax.f32 %v4358, %v4383
        %v4404 = vmax.f32 %v4359, %v4385
        %v4405 = vmax.f32 %v4360, %v4387
        %v4406 = vmax.f32 %v4361, %v4389
        %v4407 = vmax.f32 %v4362, %v4388
        %v4409 = vrot.slane %v4363, 1
        %v4410 = vsel %vm2354, %v4388, %v4409
        %v4413 = vmax.f32 %v4362, %v4410
        %v4414 = vmax.f32 %v4363, %v4409
        %v4424 = vrot.slane %v4400, 2
        %v4425 = vrot.slane %v4401, 2
        %v4426 = vsel %vm1891, %v4424, %v4425
        %v4427 = vrot.slane %v4402, 2
        %v4428 = vsel %vm1891, %v4425, %v4427
        %v4429 = vrot.slane %v4403, 2
        %v4430 = vsel %vm1891, %v4427, %v4429
        %v4431 = vrot.slane %v4404, 2
        %v4432 = vsel %vm1891, %v4429, %v4431
        %v4433 = vrot.slane %v4405, 2
        %v4434 = vsel %vm1891, %v4431, %v4433
        %v4435 = vrot.slane %v4406, 2
        %v4436 = vsel %vm1891, %v4433, %v4435
        %v4437 = vrot.slane %v4413, 2
        %v4438 = vsel %vm1891, %v4435, %v4437
        %v4439 = vrot.slane %v4414, 2
        %v4440 = vsel %vm1891, %v4437, %v4439
        %v4450 = vmax.f32 %v4399, %v4426
        %v4451 = vmax.f32 %v4400, %v4428
        %v4452 = vmax.f32 %v4401, %v4430
        %v4453 = vmax.f32 %v4402, %v4432
        %v4454 = vmax.f32 %v4403, %v4434
        %v4455 = vmax.f32 %v4404, %v4436
        %v4456 = vmax.f32 %v4405, %v4438
        %v4457 = vmax.f32 %v4406, %v4440
        %v4458 = vmax.f32 %v4407, %v4439
        %v4459 = vadd.f32 %v4354, %v4375
        %v4460 = vadd.f32 %v4355, %v4377
        %v4461 = vadd.f32 %v4356, %v4379
        %v4462 = vadd.f32 %v4357, %v4381
        %v4463 = vadd.f32 %v4358, %v4383
        %v4464 = vadd.f32 %v4359, %v4385
        %v4465 = vadd.f32 %v4360, %v4387
        %v4466 = vadd.f32 %v4361, %v4389
        %v4467 = vadd.f32 %v4362, %v4388
        %v4468 = vrot.slane %v4355, 2
        %v4469 = vrot.slane %v4356, 2
        %v4470 = vsel %vm1891, %v4468, %v4469
        %v4471 = vrot.slane %v4357, 2
        %v4472 = vsel %vm1891, %v4469, %v4471
        %v4473 = vrot.slane %v4358, 2
        %v4474 = vsel %vm1891, %v4471, %v4473
        %v4475 = vrot.slane %v4359, 2
        %v4476 = vsel %vm1891, %v4473, %v4475
        %v4477 = vrot.slane %v4360, 2
        %v4478 = vsel %vm1891, %v4475, %v4477
        %v4479 = vrot.slane %v4361, 2
        %v4480 = vsel %vm1891, %v4477, %v4479
        %v4481 = vrot.slane %v4362, 2
        %v4482 = vsel %vm1891, %v4479, %v4481
        %v4483 = vrot.slane %v4363, 2
        %v4484 = vsel %vm1891, %v4481, %v4483
        %v4494 = vadd.f32 %v4459, %v4470
        %v4495 = vadd.f32 %v4460, %v4472
        %v4496 = vadd.f32 %v4461, %v4474
        %v4497 = vadd.f32 %v4462, %v4476
        %v4498 = vadd.f32 %v4463, %v4478
        %v4499 = vadd.f32 %v4464, %v4480
        %v4500 = vadd.f32 %v4465, %v4482
        %v4501 = vadd.f32 %v4466, %v4484
        %v4502 = vadd.f32 %v4467, %v4483
        %v4503 = vrot.slane %v4355, 3
        %v4504 = vrot.slane %v4356, 3
        %v4505 = vsel %vm1890, %v4503, %v4504
        %v4506 = vrot.slane %v4357, 3
        %v4507 = vsel %vm1890, %v4504, %v4506
        %v4508 = vrot.slane %v4358, 3
        %v4509 = vsel %vm1890, %v4506, %v4508
        %v4510 = vrot.slane %v4359, 3
        %v4511 = vsel %vm1890, %v4508, %v4510
        %v4512 = vrot.slane %v4360, 3
        %v4513 = vsel %vm1890, %v4510, %v4512
        %v4514 = vrot.slane %v4361, 3
        %v4515 = vsel %vm1890, %v4512, %v4514
        %v4516 = vrot.slane %v4362, 3
        %v4517 = vsel %vm1890, %v4514, %v4516
        %v4518 = vrot.slane %v4363, 3
        %v4519 = vsel %vm1890, %v4516, %v4518
        %v4529 = vadd.f32 %v4494, %v4505
        %v4530 = vadd.f32 %v4495, %v4507
        %v4531 = vadd.f32 %v4496, %v4509
        %v4532 = vadd.f32 %v4497, %v4511
        %v4533 = vadd.f32 %v4498, %v4513
        %v4534 = vadd.f32 %v4499, %v4515
        %v4535 = vadd.f32 %v4500, %v4517
        %v4536 = vadd.f32 %v4501, %v4519
        %v4537 = vadd.f32 %v4502, %v4518
        %v4538 = vmul.f32 %v4529, 0.25
        %v4539 = vmul.f32 %v4530, 0.25
        %v4540 = vmul.f32 %v4531, 0.25
        %v4541 = vmul.f32 %v4532, 0.25
        %v4542 = vmul.f32 %v4533, 0.25
        %v4543 = vmul.f32 %v4534, 0.25
        %v4544 = vmul.f32 %v4535, 0.25
        %v4545 = vmul.f32 %v4536, 0.25
        %v4546 = vmul.f32 %v4537, 0.25
        %v4547 = vmul.f32 %v4450, 0.6
        %v4548 = vmul.f32 %v4451, 0.6
        %v4549 = vmul.f32 %v4452, 0.6
        %v4550 = vmul.f32 %v4453, 0.6
        %v4551 = vmul.f32 %v4454, 0.6
        %v4552 = vmul.f32 %v4455, 0.6
        %v4553 = vmul.f32 %v4456, 0.6
        %v4554 = vmul.f32 %v4457, 0.6
        %v4555 = vmul.f32 %v4458, 0.6
        %v4556 = vmul.f32 %v4538, 0.4
        %v4557 = vmul.f32 %v4539, 0.4
        %v4558 = vmul.f32 %v4540, 0.4
        %v4559 = vmul.f32 %v4541, 0.4
        %v4560 = vmul.f32 %v4542, 0.4
        %v4561 = vmul.f32 %v4543, 0.4
        %v4562 = vmul.f32 %v4544, 0.4
        %v4563 = vmul.f32 %v4545, 0.4
        %v4564 = vmul.f32 %v4546, 0.4
        %v4565 = vadd.f32 %v4547, %v4556
        %v4566 = vadd.f32 %v4548, %v4557
        %v4567 = vadd.f32 %v4549, %v4558
        %v4568 = vadd.f32 %v4550, %v4559
        %v4569 = vadd.f32 %v4551, %v4560
        %v4570 = vadd.f32 %v4552, %v4561
        %v4571 = vadd.f32 %v4553, %v4562
        %v4572 = vadd.f32 %v4554, %v4563
        %v4573 = vadd.f32 %v4555, %v4564
        %v4574 = vld [vmem:[%s9] sm:$0xf]
        %v4575 = vld [vmem:[%s9 + $0x4] sm:$0xf]
        %v4576 = vld [vmem:[%s9 + $0x8] sm:$0xf]
        %v4577 = vld [vmem:[%s9 + $0xc] sm:$0xf]
        %v4578 = vld [vmem:[%s9 + $0x10] sm:$0xf]
        %v4579 = vpack.c.bf16 %v4566, %v4565
        %v4580 = vpack.c.bf16 %v4568, %v4567
        %v4581 = vpack.c.bf16 %v4570, %v4569
        %v4582 = vpack.c.bf16 %v4572, %v4571
        %v4583 = vpack.c.bf16 %v4573, %v4573
        %v4589 = vunpack.c.l.b16 %v4574
        %v4590 = vunpack.c.l.b16 %v4575
        %v4591 = vunpack.c.l.b16 %v4576
        %v4592 = vunpack.c.l.b16 %v4577
        %v4593 = vunpack.c.l.b16 %v4578
        %v4594 = vpack.c.b16 %v4590, %v4589
        %v4595 = vpack.c.b16 %v4592, %v4591
        %v4596 = vpack.c.b16 %v4593, %v4593
        %vm4597 = vcmask 564224
        %v4599 = vsel %vm4597, %v4594, 0
        %v4602 = vsel %vm4597, %v4595, 0
        %v4605 = vsel %vm4597, %v4596, 0
        %vm4607 = vcmask 1042432
        %v4608 = vsel %vm3474, 4294967295, 65535
        %v4609 = vsel %vm4607, %v4608, 0
        %v4611 = vand.u32 %v4583, %v4609
        %4613 = vmatpush.bf16.msra.mxu0 0
        %4614 = vmatpush.bf16.msra.mxu0 0
        %4615 = vmatpush.bf16.msra.mxu0 0
        %4616 = vmatpush.bf16.msra.mxu0 %v4611
        %4617 = vmatpush.bf16.msra.mxu0 %v4582
        %4618 = vmatpush.bf16.msra.mxu0 %v4581
        %4619 = vmatpush.bf16.msra.mxu0 %v4580
        %4620 = vmatpush.bf16.msra.mxu0 %v4579
        %4621 = vmatmul.bf16.gmra.mxu0 %v4599
        %v4622 = vpop.f32.mrf.mxu0
        %v4623 = vadd.f32 0.0, %v4622
        %v4624 = vpop.f32.mrf.mxu0
        %v4625 = vadd.f32 0.0, %v4624
        %4626 = vmatmul.bf16.gmra.mxu0 %v4602
        %v4627 = vpop.f32.mrf.mxu0
        %v4628 = vadd.f32 0.0, %v4627
        %v4629 = vpop.f32.mrf.mxu0
        %v4630 = vadd.f32 0.0, %v4629
        %4631 = vmatmul.bf16.gmra.mxu0 %v4605
        %v4632 = vpop.f32.mrf.mxu0
        %v4633 = vadd.f32 0.0, %v4632
        %v4634 = vpop.f32.mrf.mxu0
        %4635 = vdwg.mxu0
        %v4636 = vpack.c.bf16 %v4623, %v4623
        %v4637 = vpack.c.bf16 %v4625, %v4625
        %v4638 = vpack.c.bf16 %v4628, %v4628
        %v4639 = vpack.c.bf16 %v4630, %v4630
        %v4640 = vpack.c.bf16 %v4633, %v4633
        %vm4641 = vcmask 125952
        %4642 = vst.msk [vmem:[#allocation4] sm:$0xf] %vm4641, %v4636
        %4643 = vst.msk [vmem:[#allocation4 + $0x4] sm:$0xf] %vm4641, %v4637
        %4644 = vst.msk [vmem:[#allocation4 + $0x8] sm:$0xf] %vm4641, %v4638
        %4645 = vst.msk [vmem:[#allocation4 + $0xc] sm:$0xf] %vm4641, %v4639
        %4646 = vst.msk [vmem:[#allocation4 + $0x10] sm:$0xf] %vm4641, %v4640
        %v4647 = vld [vmem:[#allocation4] sm:$0xf]
        %v4648 = vld [vmem:[#allocation4 + $0x4] sm:$0xf]
        %v4649 = vld [vmem:[#allocation4 + $0x8] sm:$0xf]
        %v4650 = vld [vmem:[#allocation4 + $0xc] sm:$0x1]
        %v4651 = vld [vmem:[#allocation4] sm:$0xe]
        %v4652 = vld [vmem:[#allocation4] sm:$0x8]
        %v4653 = vld [vmem:[#allocation4 + $0xc] sm:$0x7]
        %v4654 = vld [vmem:[#allocation4 + $0xc] sm:$0xf]
        %v4655 = vld [vmem:[#allocation4 + $0x4] sm:$0xc]
        %v4656 = vld [vmem:[#allocation4 + $0x10] sm:$0x3]
        %v4657 = vld [vmem:[#allocation4 + $0x10] sm:$0x7]
        %v4658 = vld [vmem:[#allocation4 + $0x4] sm:$0x8]
        %v4662 = vunpack.c.l.b16 %v4647
        %v4663 = vunpack.c.l.b16 %v4648
        %v4664 = vunpack.c.l.b16 %v4649
        %v4665 = vpack.c.b16 %v4663, %v4662
        %v4666 = vpack.c.b16 %v4664, %v4664
        %v4668 = vunpack.c.l.b16 %v4650
        %v4669 = vpack.c.b16 %v4668, %v4664
        %v4671 = vshrl.u32 %v4665, 16
        %v4673 = vshll.u32 %v4665, 16
        %v4675 = vrot.slane %v4673, 1
        %v4676 = vor.u32 %v4671, %v4675
        %v4678 = vshll.u32 %v4669, 16
        %v4680 = vrot.slane %v4678, 1
        %v4681 = vsel %vm756, %v4676, %v4680
        %v4682 = vshrl.u32 %v4669, 16
        %v4684 = vor.u32 %v4682, %v4680
        %4685 = vrot.lane.b32.xlu0 %v4681, 16
        %v4686 = vpop.permute.xlu0 %4685
        %4687 = vrot.lane.b32.xlu0 %v4684, 16
        %v4688 = vpop.permute.xlu0 %4687
        %v4690 = vunpack.c.l.b16 %v4651
        %v4691 = vpack.c.b16 %v4663, %v4690
        %v4692 = vrot.slane %v4691, 1
        %v4693 = vrot.slane %v4669, 1
        %v4694 = vsel %vm944, %v4692, %v4693
        %4695 = vrot.lane.b32.xlu0 %v4694, 32
        %v4696 = vpop.permute.xlu0 %4695
        %4697 = vrot.lane.b32.xlu0 %v4693, 32
        %v4698 = vpop.permute.xlu0 %4697
        %v4701 = vunpack.c.l.b16 %v4652
        %v4702 = vunpack.c.l.b16 %v4653
        %v4703 = vpack.c.b16 %v4663, %v4701
        %v4704 = vpack.c.b16 %v4702, %v4664
        %v4705 = vrot.slane %v4703, 3
        %v4706 = vrot.slane %v4704, 3
        %v4707 = vsel %vm1464, %v4705, %v4706
        %4708 = vrot.lane.b32.xlu0 %v4707, 48
        %v4709 = vpop.permute.xlu0 %4708
        %4710 = vrot.lane.b32.xlu0 %v4706, 48
        %v4711 = vpop.permute.xlu0 %4710
        %v4713 = vunpack.c.l.b16 %v4654
        %v4714 = vpack.c.b16 %v4713, %v4664
        %vm4715 = vsmask.f32 4352
        %v4717 = vshrl.u32 %v4703, 16
        %v4719 = vrot.slane %v4717, 3
        %v4720 = vshll.u32 %v4703, 16
        %v4722 = vrot.slane %v4720, 4
        %v4723 = vor.u32 %v4719, %v4722
        %v4725 = vshrl.u32 %v4714, 16
        %v4727 = vrot.slane %v4725, 3
        %v4728 = vshll.u32 %v4714, 16
        %v4730 = vrot.slane %v4728, 4
        %v4731 = vor.u32 %v4727, %v4730
        %v4732 = vsel %vm4715, %v4723, %v4731
        %4733 = vrot.lane.b32.xlu0 %v4732, 64
        %v4734 = vpop.permute.xlu0 %4733
        %4735 = vrot.lane.b32.xlu0 %v4731, 64
        %v4736 = vpop.permute.xlu0 %4735
        %v4737 = vpack.c.b16 %v4664, %v4663
        %v4738 = vpack.c.b16 %v4713, %v4713
        %4739 = vrot.lane.b32.xlu0 %v4737, 80
        %v4740 = vpop.permute.xlu0 %4739
        %4741 = vrot.lane.b32.xlu0 %v4738, 80
        %v4742 = vpop.permute.xlu0 %4741
        %v4745 = vunpack.c.l.b16 %v4655
        %v4746 = vunpack.c.l.b16 %v4656
        %v4747 = vpack.c.b16 %v4664, %v4745
        %v4748 = vpack.c.b16 %v4746, %v4713
        %v4749 = vrot.slane %v4747, 2
        %v4750 = vrot.slane %v4748, 2
        %v4751 = vsel %vm1204, %v4749, %v4750
        %4752 = vrot.lane.b32.xlu0 %v4751, 96
        %v4753 = vpop.permute.xlu0 %4752
        %4754 = vrot.lane.b32.xlu0 %v4750, 96
        %v4755 = vpop.permute.xlu0 %4754
        %v4757 = vunpack.c.l.b16 %v4657
        %v4758 = vpack.c.b16 %v4757, %v4713
        %v4760 = vshrl.u32 %v4747, 16
        %v4762 = vrot.slane %v4760, 2
        %v4763 = vshll.u32 %v4747, 16
        %v4765 = vrot.slane %v4763, 3
        %v4766 = vor.u32 %v4762, %v4765
        %v4768 = vshrl.u32 %v4758, 16
        %v4770 = vrot.slane %v4768, 2
        %v4771 = vshll.u32 %v4758, 16
        %v4773 = vrot.slane %v4771, 3
        %v4774 = vor.u32 %v4770, %v4773
        %v4775 = vsel %vm1334, %v4766, %v4774
        %4776 = vrot.lane.b32.xlu0 %v4775, 112
        %v4777 = vpop.permute.xlu0 %4776
        %4778 = vrot.lane.b32.xlu0 %v4774, 112
        %v4779 = vpop.permute.xlu0 %4778
        %v4781 = vunpack.c.l.b16 %v4658
        %v4782 = vpack.c.b16 %v4664, %v4781
        %v4783 = vrot.slane %v4782, 3
        %v4784 = vrot.slane %v4758, 3
        %v4785 = vsel %vm1464, %v4783, %v4784
        %v4787 = vsel %vm3385, %v4665, %v4686
        %v4790 = vsel %vm3385, %v4666, %v4688
        %v4792 = vsel %vm3428, %v4787, %v4696
        %v4794 = vsel %vm3428, %v4790, %v4698
        %v4796 = vsel %vm4152, %v4792, %v4709
        %v4798 = vsel %vm4152, %v4794, %v4711
        %v4800 = vsel %vm4174, %v4796, %v4734
        %v4802 = vsel %vm4174, %v4798, %v4736
        %v4804 = vsel %vm3653, %v4800, %v4740
        %v4806 = vsel %vm3653, %v4802, %v4742
        %vm4807 = vcmask 785408
        %v4809 = vsel %vm4807, %v4804, %v4753
        %v4811 = vsel %vm4807, %v4806, %v4755
        %vm4812 = vcmask 916480
        %v4814 = vsel %vm4812, %v4809, %v4777
        %v4817 = vsel %vm4812, %v4811, %v4779
        %v4819 = vld [vmem:[%s10] sm:$0xf]
        %v4820 = vld [vmem:[%s10 + $0x4] sm:$0xf]
        %v4821 = vld [vmem:[%s10 + $0x8] sm:$0xf]
        %v4822 = vld [vmem:[%s10 + $0xc] sm:$0xf]
        %v4823 = vld [vmem:[%s10 + $0x10] sm:$0xf]
        %v4824 = vld [vmem:[%s10 + $0x14] sm:$0xf]
        %v4825 = vld [vmem:[%s10 + $0x18] sm:$0xf]
        %v4826 = vld [vmem:[%s10 + $0x1c] sm:$0xf]
        %v4827 = vld [vmem:[%s10 + $0x20] sm:$0xf]
        %v4828 = vld [vmem:[%s10 + $0x24] sm:$0xf]
        %v4829 = vld [vmem:[%s10 + $0x28] sm:$0xf]
        %v4830 = vld [vmem:[%s10 + $0x2c] sm:$0xf]
        %v4831 = vld [vmem:[%s10 + $0x30] sm:$0xf]
        %v4832 = vld [vmem:[%s10 + $0x34] sm:$0xf]
        %v4833 = vld [vmem:[%s10 + $0x38] sm:$0xf]
        %v4834 = vld [vmem:[%s10 + $0x3c] sm:$0xf]
        %v4835 = vld [vmem:[%s10 + $0x40] sm:$0xf]
        %v4836 = vld [vmem:[%s10 + $0x44] sm:$0xf]
        %v4837 = vld [vmem:[%s11] sm:$0x1]
        %v4839 = vperm.slane %v4837, 0
        %v4859 = vunpack.c.l.b16 %v4819
        %v4860 = vunpack.c.l.b16 %v4820
        %v4861 = vunpack.c.l.b16 %v4821
        %v4862 = vunpack.c.l.b16 %v4822
        %v4863 = vunpack.c.l.b16 %v4823
        %v4864 = vunpack.c.l.b16 %v4824
        %v4865 = vunpack.c.l.b16 %v4825
        %v4866 = vunpack.c.l.b16 %v4826
        %v4867 = vunpack.c.l.b16 %v4827
        %v4868 = vunpack.c.l.b16 %v4828
        %v4869 = vunpack.c.l.b16 %v4829
        %v4870 = vunpack.c.l.b16 %v4830
        %v4871 = vunpack.c.l.b16 %v4831
        %v4872 = vunpack.c.l.b16 %v4832
        %v4873 = vunpack.c.l.b16 %v4833
        %v4874 = vunpack.c.l.b16 %v4834
        %v4875 = vunpack.c.l.b16 %v4835
        %v4876 = vunpack.c.l.b16 %v4836
        %v4877 = vpack.c.b16 %v4860, %v4859
        %v4878 = vpack.c.b16 %v4862, %v4861
        %v4879 = vpack.c.b16 %v4864, %v4863
        %v4880 = vpack.c.b16 %v4866, %v4865
        %v4881 = vpack.c.b16 %v4868, %v4867
        %v4882 = vpack.c.b16 %v4870, %v4869
        %v4883 = vpack.c.b16 %v4872, %v4871
        %v4884 = vpack.c.b16 %v4874, %v4873
        %v4885 = vpack.c.b16 %v4876, %v4875
        %v4896 = vsel %vm3385, %v4785, 0
        %v4899 = vsel %vm3385, %v4784, 0
        %4901 = vmatpush.bf16.msra.mxu0 %v4884
        %4902 = vmatpush.bf16.msra.mxu0 %v4883
        %4903 = vmatpush.bf16.msra.mxu0 %v4882
        %4904 = vmatpush.bf16.msra.mxu0 %v4881
        %4905 = vmatpush.bf16.msra.mxu0 %v4880
        %4906 = vmatpush.bf16.msra.mxu0 %v4879
        %4907 = vmatpush.bf16.msra.mxu0 %v4878
        %4908 = vmatpush.bf16.msra.mxu0 %v4877
        %4909 = vmatmul.bf16.gmra.mxu0 %v4814
        %v4910 = vpop.f32.mrf.mxu0
        %v4911 = vadd.f32 %v4839, %v4910
        %v4912 = vpop.f32.mrf.mxu0
        %v4913 = vadd.f32 %v4839, %v4912
        %4914 = vmatmul.bf16.gmra.mxu0 %v4817
        %v4915 = vpop.f32.mrf.mxu0
        %v4916 = vadd.f32 %v4839, %v4915
        %v4917 = vpop.f32.mrf.mxu0
        %4918 = vdwg.mxu0
        %4919 = vmatpush.bf16.msra.mxu0 0
        %4920 = vmatpush.bf16.msra.mxu0 0
        %4921 = vmatpush.bf16.msra.mxu0 0
        %4922 = vmatpush.bf16.msra.mxu0 0
        %4923 = vmatpush.bf16.msra.mxu0 0
        %4924 = vmatpush.bf16.msra.mxu0 0
        %4925 = vmatpush.bf16.msra.mxu0 0
        %4926 = vmatpush.bf16.msra.mxu0 %v4885
        %4927 = vmatmul.bf16.gmra.mxu0 %v4896
        %v4928 = vpop.f32.mrf.mxu0
        %v4929 = vadd.f32 %v4911, %v4928
        %v4930 = vpop.f32.mrf.mxu0
        %v4931 = vadd.f32 %v4913, %v4930
        %4932 = vmatmul.bf16.gmra.mxu0 %v4899
        %v4933 = vpop.f32.mrf.mxu0
        %v4934 = vadd.f32 %v4916, %v4933
        %v4935 = vpop.f32.mrf.mxu0
        %4936 = vdwg.mxu0
        %v4937 = vmul.f32 %v4929, %v4929
        %v4938 = vmul.f32 %v4931, %v4931
        %v4939 = vmul.f32 %v4934, %v4934
        %v4940 = vmul.f32 %v4929, %v4937
        %v4941 = vmul.f32 %v4931, %v4938
        %v4942 = vmul.f32 %v4934, %v4939
        %v4943 = vmul.f32 %v4940, 0.044715
        %v4944 = vmul.f32 %v4941, 0.044715
        %v4945 = vmul.f32 %v4942, 0.044715
        %v4946 = vadd.f32 %v4929, %v4943
        %v4947 = vadd.f32 %v4931, %v4944
        %v4948 = vadd.f32 %v4934, %v4945
        %v4949 = vmul.f32 %v4946, 0.7978846
        %v4950 = vmul.f32 %v4947, 0.7978846
        %v4951 = vmul.f32 %v4948, 0.7978846
        %v4952 = vtanh.pop %v4949
        %v4953 = vtanh.pop %v4950
        %v4954 = vtanh.pop %v4951
        %v4955 = vadd.f32 %v4952, 1.0
        %v4956 = vadd.f32 %v4953, 1.0
        %v4957 = vadd.f32 %v4954, 1.0
        %v4958 = vmul.f32 %v4955, 0.5
        %v4959 = vmul.f32 %v4956, 0.5
        %v4960 = vmul.f32 %v4957, 0.5
        %v4961 = vmul.f32 %v4929, %v4958
        %v4962 = vmul.f32 %v4931, %v4959
        %v4963 = vmul.f32 %v4934, %v4960
        %v4967 = vrot.slane %v4961, 1
        %v4968 = vrot.slane %v4962, 1
        %v4969 = vsel %vm2354, %v4967, %v4968
        %v4970 = vrot.slane %v4963, 1
        %v4971 = vsel %vm2354, %v4968, %v4970
        %v4975 = vmax.f32 %v4961, %v4969
        %v4976 = vmax.f32 %v4962, %v4971
        %v4977 = vmax.f32 %v4963, %v4970
        %v4981 = vrot.slane %v4975, 6
        %v4982 = vrot.slane %v4976, 6
        %v4983 = vsel %vm3474, %v4981, %v4982
        %v4984 = vrot.slane %v4977, 6
        %v4985 = vsel %vm3474, %v4982, %v4984
        %v4989 = vmax.f32 %v4975, %v4983
        %v4990 = vmax.f32 %v4976, %v4985
        %v4991 = vmax.f32 %v4977, %v4984
        %v4992 = vadd.f32 %v4961, %v4969
        %v4993 = vadd.f32 %v4962, %v4971
        %v4994 = vadd.f32 %v4963, %v4970
        %v4995 = vrot.slane %v4961, 6
        %v4996 = vrot.slane %v4962, 6
        %v4997 = vsel %vm3474, %v4995, %v4996
        %v4998 = vrot.slane %v4963, 6
        %v4999 = vsel %vm3474, %v4996, %v4998
        %v5003 = vadd.f32 %v4992, %v4997
        %v5004 = vadd.f32 %v4993, %v4999
        %v5005 = vadd.f32 %v4994, %v4998
        %vm5006 = vcmask 1040384
        %v5007 = vrot.slane %v4961, 7
        %v5008 = vrot.slane %v4962, 7
        %v5009 = vsel %vm5006, %v5007, %v5008
        %v5010 = vrot.slane %v4963, 7
        %v5011 = vsel %vm5006, %v5008, %v5010
        %v5015 = vadd.f32 %v5003, %v5009
        %v5016 = vadd.f32 %v5004, %v5011
        %v5017 = vadd.f32 %v5005, %v5010
        %v5018 = vmul.f32 %v5015, 0.25
        %v5019 = vmul.f32 %v5016, 0.25
        %v5020 = vmul.f32 %v5017, 0.25
        %v5021 = vmul.f32 %v4989, 0.2
        %v5022 = vmul.f32 %v4990, 0.2
        %v5023 = vmul.f32 %v4991, 0.2
        %v5024 = vmul.f32 %v5018, 0.8
        %v5025 = vmul.f32 %v5019, 0.8
        %v5026 = vmul.f32 %v5020, 0.8
        %v5027 = vadd.f32 %v5021, %v5024
        %v5028 = vadd.f32 %v5022, %v5025
        %v5029 = vadd.f32 %v5023, %v5026
        %v5030 = vld [vmem:[%s12] sm:$0xf]
        %v5031 = vld [vmem:[%s12 + $0x4] sm:$0xf]
        %v5032 = vld [vmem:[%s12 + $0x8] sm:$0xf]
        %v5033 = vpack.c.bf16 %v5028, %v5027
        %v5034 = vpack.c.bf16 %v5029, %v5029
        %v5038 = vunpack.c.l.b16 %v5030
        %v5039 = vunpack.c.l.b16 %v5031
        %v5040 = vunpack.c.l.b16 %v5032
        %v5041 = vpack.c.b16 %v5039, %v5038
        %v5042 = vpack.c.b16 %v5040, %v5040
        %vm5043 = vcmask 138240
        %v5045 = vsel %vm5043, %v5041, 0
        %v5048 = vsel %vm5043, %v5042, 0
        %v5050 = vsel 0, 4294967295, 65535
        %v5051 = vsel %vm5006, %v5050, 0
        %v5053 = vand.u32 %v5034, %v5051
        %5055 = vmatpush.bf16.msra.mxu0 0
        %5056 = vmatpush.bf16.msra.mxu0 0
        %5057 = vmatpush.bf16.msra.mxu0 0
        %5058 = vmatpush.bf16.msra.mxu0 0
        %5059 = vmatpush.bf16.msra.mxu0 0
        %5060 = vmatpush.bf16.msra.mxu0 0
        %5061 = vmatpush.bf16.msra.mxu0 %v5053
        %5062 = vmatpush.bf16.msra.mxu0 %v5033
        %5063 = vmatmul.bf16.gmra.mxu0 %v5045
        %v5064 = vpop.f32.mrf.mxu0
        %v5065 = vadd.f32 0.0, %v5064
        %v5066 = vpop.f32.mrf.mxu0
        %v5067 = vadd.f32 0.0, %v5066
        %5068 = vmatmul.bf16.gmra.mxu0 %v5048
        %v5069 = vpop.f32.mrf.mxu0
        %v5070 = vadd.f32 0.0, %v5069
        %v5071 = vpop.f32.mrf.mxu0
        %5072 = vdwg.mxu0
        %v5073 = vpack.c.bf16 %v5065, %v5065
        %v5074 = vpack.c.bf16 %v5067, %v5067
        %v5075 = vpack.c.bf16 %v5070, %v5070
        %vm5076 = vcmask 257024
        %5077 = vst.msk [vmem:[#allocation5] sm:$0xf] %vm5076, %v5073
        %5078 = vst.msk [vmem:[#allocation5 + $0x4] sm:$0xf] %vm5076, %v5074
        %5079 = vst.msk [vmem:[#allocation5 + $0x8] sm:$0xf] %vm5076, %v5075
        %v5080 = vld [vmem:[#allocation5] sm:$0xf]
        %v5081 = vld [vmem:[#allocation5 + $0x4] sm:$0x1]
        %v5082 = vld [vmem:[#allocation5] sm:$0xe]
        %v5083 = vld [vmem:[#allocation5] sm:$0xc]
        %v5084 = vld [vmem:[#allocation5 + $0x4] sm:$0x3]
        %v5085 = vld [vmem:[#allocation5 + $0x4] sm:$0x7]
        %v5086 = vld [vmem:[#allocation5] sm:$0x8]
        %v5087 = vld [vmem:[#allocation5 + $0x4] sm:$0xf]
        %v5088 = vld [vmem:[#allocation5 + $0x8] sm:$0x1]
        %v5089 = vld [vmem:[#allocation5 + $0x4] sm:$0xe]
        %v5092 = vunpack.c.l.b16 %v5080
        %v5093 = vunpack.c.l.b16 %v5081
        %v5094 = vpack.c.b16 %v5093, %v5092
        %v5096 = vshrl.u32 %v5094, 16
        %v5098 = vshll.u32 %v5094, 16
        %v5100 = vrot.slane %v5098, 1
        %v5101 = vor.u32 %v5096, %v5100
        %5102 = vrot.lane.b32.xlu0 %v5101, 32
        %v5103 = vpop.permute.xlu0 %5102
        %v5105 = vunpack.c.l.b16 %v5082
        %v5106 = vpack.c.b16 %v5093, %v5105
        %v5107 = vrot.slane %v5106, 1
        %5108 = vrot.lane.b32.xlu0 %v5107, 64
        %v5109 = vpop.permute.xlu0 %5108
        %v5112 = vunpack.c.l.b16 %v5083
        %v5113 = vunpack.c.l.b16 %v5084
        %v5114 = vpack.c.b16 %v5113, %v5112
        %v5115 = vrot.slane %v5114, 2
        %5116 = vrot.lane.b32.xlu0 %v5115, 96
        %v5117 = vpop.permute.xlu0 %5116
        %v5119 = vunpack.c.l.b16 %v5085
        %v5120 = vpack.c.b16 %v5119, %v5112
        %v5122 = vshrl.u32 %v5120, 16
        %v5124 = vrot.slane %v5122, 2
        %v5125 = vshll.u32 %v5120, 16
        %v5127 = vrot.slane %v5125, 3
        %v5128 = vor.u32 %v5124, %v5127
        %v5130 = vunpack.c.l.b16 %v5086
        %v5131 = vpack.c.b16 %v5119, %v5130
        %v5132 = vrot.slane %v5131, 3
        %5133 = vrot.lane.b32.xlu0 %v5132, 32
        %v5134 = vpop.permute.xlu0 %5133
        %v5136 = vunpack.c.l.b16 %v5087
        %v5137 = vpack.c.b16 %v5136, %v5136
        %5138 = vrot.lane.b32.xlu0 %v5137, 64
        %v5139 = vpop.permute.xlu0 %5138
        %v5141 = vunpack.c.l.b16 %v5088
        %v5142 = vpack.c.b16 %v5141, %v5136
        %v5144 = vshrl.u32 %v5142, 16
        %v5146 = vshll.u32 %v5142, 16
        %v5148 = vrot.slane %v5146, 1
        %v5149 = vor.u32 %v5144, %v5148
        %5150 = vrot.lane.b32.xlu0 %v5149, 96
        %v5151 = vpop.permute.xlu0 %5150
        %v5153 = vunpack.c.l.b16 %v5089
        %v5154 = vpack.c.b16 %v5141, %v5153
        %v5155 = vrot.slane %v5154, 1
        %v5158 = vsel %vm3428, %v5080, %v5103
        %v5160 = vsel %vm4174, %v5158, %v5109
        %v5162 = vsel %vm4807, %v5160, %v5117
        %v5166 = vsel %vm3428, %v5128, %v5134
        %v5168 = vsel %vm4174, %v5166, %v5139
        %v5170 = vsel %vm4807, %v5168, %v5151
        %v5172 = vld [vmem:[%s13] sm:$0xf]
        %v5173 = vld [vmem:[%s13 + $0x4] sm:$0xf]
        %v5174 = vld [vmem:[%s13 + $0x8] sm:$0xf]
        %v5175 = vld [vmem:[%s13 + $0xc] sm:$0xf]
        %v5176 = vld [vmem:[%s13 + $0x10] sm:$0xf]
        %v5177 = vld [vmem:[%s13 + $0x14] sm:$0xf]
        %v5178 = vld [vmem:[%s13 + $0x18] sm:$0xf]
        %v5179 = vld [vmem:[%s13 + $0x1c] sm:$0xf]
        %v5180 = vld [vmem:[%s13 + $0x20] sm:$0xf]
        %v5181 = vld [vmem:[%s13 + $0x24] sm:$0xf]
        %v5182 = vld [vmem:[%s13 + $0x28] sm:$0xf]
        %v5183 = vld [vmem:[%s13 + $0x2c] sm:$0xf]
        %v5184 = vld [vmem:[%s13 + $0x30] sm:$0xf]
        %v5185 = vld [vmem:[%s13 + $0x34] sm:$0xf]
        %v5186 = vld [vmem:[%s13 + $0x38] sm:$0xf]
        %v5187 = vld [vmem:[%s13 + $0x3c] sm:$0xf]
        %v5188 = vld [vmem:[%s13 + $0x40] sm:$0xf]
        %v5189 = vld [vmem:[%s13 + $0x44] sm:$0xf]
        %v5190 = vld [vmem:[%s13 + $0x48] sm:$0xf]
        %v5191 = vld [vmem:[%s13 + $0x4c] sm:$0xf]
        %v5192 = vld [vmem:[%s13 + $0x50] sm:$0xf]
        %v5193 = vld [vmem:[%s13 + $0x54] sm:$0xf]
        %v5194 = vld [vmem:[%s13 + $0x58] sm:$0xf]
        %v5195 = vld [vmem:[%s13 + $0x5c] sm:$0xf]
        %v5196 = vld [vmem:[%s13 + $0x60] sm:$0xf]
        %v5197 = vld [vmem:[%s13 + $0x64] sm:$0xf]
        %v5198 = vld [vmem:[%s13 + $0x68] sm:$0xf]
        %v5199 = vld [vmem:[%s13 + $0x6c] sm:$0xf]
        %v5200 = vld [vmem:[%s13 + $0x70] sm:$0xf]
        %v5201 = vld [vmem:[%s13 + $0x74] sm:$0xf]
        %v5202 = vld [vmem:[%s13 + $0x78] sm:$0xf]
        %v5203 = vld [vmem:[%s13 + $0x7c] sm:$0xf]
        %v5204 = vld [vmem:[%s13 + $0x80] sm:$0xf]
        %v5205 = vld [vmem:[%s13 + $0x84] sm:$0xf]
        %v5206 = vld [vmem:[%s13 + $0x88] sm:$0xf]
        %v5207 = vld [vmem:[%s13 + $0x8c] sm:$0xf]
        %v5208 = vld [vmem:[%s14] sm:$0x1]
        %v5210 = vperm.slane %v5208, 0
        %v5248 = vunpack.c.l.b16 %v5172
        %v5249 = vunpack.c.l.b16 %v5173
        %v5250 = vunpack.c.l.b16 %v5174
        %v5251 = vunpack.c.l.b16 %v5175
        %v5252 = vunpack.c.l.b16 %v5176
        %v5253 = vunpack.c.l.b16 %v5177
        %v5254 = vunpack.c.l.b16 %v5178
        %v5255 = vunpack.c.l.b16 %v5179
        %v5256 = vunpack.c.l.b16 %v5180
        %v5257 = vunpack.c.l.b16 %v5181
        %v5258 = vunpack.c.l.b16 %v5182
        %v5259 = vunpack.c.l.b16 %v5183
        %v5260 = vunpack.c.l.b16 %v5184
        %v5261 = vunpack.c.l.b16 %v5185
        %v5262 = vunpack.c.l.b16 %v5186
        %v5263 = vunpack.c.l.b16 %v5187
        %v5264 = vunpack.c.l.b16 %v5188
        %v5265 = vunpack.c.l.b16 %v5189
        %v5266 = vunpack.c.l.b16 %v5190
        %v5267 = vunpack.c.l.b16 %v5191
        %v5268 = vunpack.c.l.b16 %v5192
        %v5269 = vunpack.c.l.b16 %v5193
        %v5270 = vunpack.c.l.b16 %v5194
        %v5271 = vunpack.c.l.b16 %v5195
        %v5272 = vunpack.c.l.b16 %v5196
        %v5273 = vunpack.c.l.b16 %v5197
        %v5274 = vunpack.c.l.b16 %v5198
        %v5275 = vunpack.c.l.b16 %v5199
        %v5276 = vunpack.c.l.b16 %v5200
        %v5277 = vunpack.c.l.b16 %v5201
        %v5278 = vunpack.c.l.b16 %v5202
        %v5279 = vunpack.c.l.b16 %v5203
        %v5280 = vunpack.c.l.b16 %v5204
        %v5281 = vunpack.c.l.b16 %v5205
        %v5282 = vunpack.c.l.b16 %v5206
        %v5283 = vunpack.c.l.b16 %v5207
        %v5284 = vpack.c.b16 %v5249, %v5248
        %v5285 = vpack.c.b16 %v5251, %v5250
        %v5286 = vpack.c.b16 %v5253, %v5252
        %v5287 = vpack.c.b16 %v5255, %v5254
        %v5288 = vpack.c.b16 %v5257, %v5256
        %v5289 = vpack.c.b16 %v5259, %v5258
        %v5290 = vpack.c.b16 %v5261, %v5260
        %v5291 = vpack.c.b16 %v5263, %v5262
        %v5292 = vpack.c.b16 %v5265, %v5264
        %v5293 = vpack.c.b16 %v5267, %v5266
        %v5294 = vpack.c.b16 %v5269, %v5268
        %v5295 = vpack.c.b16 %v5271, %v5270
        %v5296 = vpack.c.b16 %v5273, %v5272
        %v5297 = vpack.c.b16 %v5275, %v5274
        %v5298 = vpack.c.b16 %v5277, %v5276
        %v5299 = vpack.c.b16 %v5279, %v5278
        %v5300 = vpack.c.b16 %v5281, %v5280
        %v5301 = vpack.c.b16 %v5283, %v5282
        %v5321 = vsel %vm3428, %v5155, 0
        %5323 = vmatpush.bf16.msra.mxu0 %v5291
        %5324 = vmatpush.bf16.msra.mxu0 %v5290
        %5325 = vmatpush.bf16.msra.mxu0 %v5289
        %5326 = vmatpush.bf16.msra.mxu0 %v5288
        %5327 = vmatpush.bf16.msra.mxu0 %v5287
        %5328 = vmatpush.bf16.msra.mxu0 %v5286
        %5329 = vmatpush.bf16.msra.mxu0 %v5285
        %5330 = vmatpush.bf16.msra.mxu0 %v5284
        %5331 = vmatmul.bf16.gmra.mxu0 %v5162
        %v5332 = vpop.f32.mrf.mxu0
        %v5333 = vadd.f32 %v5210, %v5332
        %v5334 = vpop.f32.mrf.mxu0
        %5335 = vdwg.mxu0
        %5336 = vmatpush.bf16.msra.mxu0 %v5299
        %5337 = vmatpush.bf16.msra.mxu0 %v5298
        %5338 = vmatpush.bf16.msra.mxu0 %v5297
        %5339 = vmatpush.bf16.msra.mxu0 %v5296
        %5340 = vmatpush.bf16.msra.mxu0 %v5295
        %5341 = vmatpush.bf16.msra.mxu0 %v5294
        %5342 = vmatpush.bf16.msra.mxu0 %v5293
        %5343 = vmatpush.bf16.msra.mxu0 %v5292
        %5344 = vmatmul.bf16.gmra.mxu0 %v5170
        %v5345 = vpop.f32.mrf.mxu0
        %v5346 = vadd.f32 %v5333, %v5345
        %v5347 = vpop.f32.mrf.mxu0
        %5348 = vdwg.mxu0
        %5349 = vmatpush.bf16.msra.mxu0 0
        %5350 = vmatpush.bf16.msra.mxu0 0
        %5351 = vmatpush.bf16.msra.mxu0 0
        %5352 = vmatpush.bf16.msra.mxu0 0
        %5353 = vmatpush.bf16.msra.mxu0 0
        %5354 = vmatpush.bf16.msra.mxu0 0
        %5355 = vmatpush.bf16.msra.mxu0 %v5301
        %5356 = vmatpush.bf16.msra.mxu0 %v5300
        %5357 = vmatmul.bf16.gmra.mxu0 %v5321
        %v5358 = vpop.f32.mrf.mxu0
        %v5359 = vadd.f32 %v5346, %v5358
        %v5360 = vpop.f32.mrf.mxu0
        %5361 = vdwg.mxu0
        %v5362 = vmul.f32 %v5359, %v5359
        %v5363 = vmul.f32 %v5359, %v5362
        %v5364 = vmul.f32 %v5363, 0.044715
        %v5365 = vadd.f32 %v5359, %v5364
        %v5366 = vmul.f32 %v5365, 0.7978846
        %v5367 = vtanh.pop %v5366
        %v5368 = vadd.f32 %v5367, 1.0
        %v5369 = vmul.f32 %v5368, 0.5
        %v5370 = vmul.f32 %v5359, %v5369
        %v5371 = vld [vmem:[%s15] sm:$0x1]
        %v5372 = vpack.c.bf16 %v5370, %v5370
        %v5374 = vsel %vm3364, %v5371, 0
        %v5377 = vsel %vm4236, %v5372, 0
        %5379 = vmatpush.bf16.msra.mxu0 0
        %5380 = vmatpush.bf16.msra.mxu0 0
        %5381 = vmatpush.bf16.msra.mxu0 0
        %5382 = vmatpush.bf16.msra.mxu0 0
        %5383 = vmatpush.bf16.msra.mxu0 0
        %5384 = vmatpush.bf16.msra.mxu0 0
        %5385 = vmatpush.bf16.msra.mxu0 0
        %5386 = vmatpush.bf16.msra.mxu0 %v5377
        %5387 = vmatmul.bf16.gmra.mxu0 %v5374
        %v5388 = vpop.f32.mrf.mxu0
        %v5389 = vadd.f32 0.0, %v5388
        %v5390 = vpop.f32.mrf.mxu0
        %5391 = vdwg.mxu0
        %v5392 = vpack.c.bf16 %v5389, %v5389
        %v5393 = vld [vmem:[%s16] sm:$0xf]
        %v5394 = vld [vmem:[%s16 + $0x4] sm:$0xf]
        %v5395 = vld [vmem:[%s16 + $0x8] sm:$0xf]
        %v5396 = vld [vmem:[%s16 + $0xc] sm:$0xf]
        %v5397 = vld [vmem:[%s16 + $0x10] sm:$0xf]
        %v5398 = vld [vmem:[%s16 + $0x14] sm:$0xf]
        %v5399 = vld [vmem:[%s16 + $0x18] sm:$0xf]
        %v5400 = vld [vmem:[%s16 + $0x1c] sm:$0xf]
        %v5401 = vld [vmem:[%s17] sm:$0x1]
        %v5410 = vunpack.c.l.b16 %v5393
        %v5411 = vunpack.c.l.b16 %v5394
        %v5412 = vunpack.c.l.b16 %v5395
        %v5413 = vunpack.c.l.b16 %v5396
        %v5414 = vunpack.c.l.b16 %v5397
        %v5415 = vunpack.c.l.b16 %v5398
        %v5416 = vunpack.c.l.b16 %v5399
        %v5417 = vunpack.c.l.b16 %v5400
        %v5418 = vpack.c.b16 %v5411, %v5410
        %v5419 = vpack.c.b16 %v5413, %v5412
        %v5420 = vpack.c.b16 %v5415, %v5414
        %v5421 = vpack.c.b16 %v5417, %v5416
        %v5427 = vsel %vm4174, %v5392, 0
        %5429 = vmatpush.bf16.msra.mxu0 0
        %5430 = vmatpush.bf16.msra.mxu0 0
        %5431 = vmatpush.bf16.msra.mxu0 0
        %5432 = vmatpush.bf16.msra.mxu0 0
        %5433 = vmatpush.bf16.msra.mxu0 %v5421
        %5434 = vmatpush.bf16.msra.mxu0 %v5420
        %5435 = vmatpush.bf16.msra.mxu0 %v5419
        %5436 = vmatpush.bf16.msra.mxu0 %v5418
        %5437 = vmatmul.bf16.gmra.mxu0 %v5427
        %v5438 = vpop.f32.mrf.mxu0
        %v5439 = vadd.f32 %v5401, %v5438
        %v5440 = vpop.f32.mrf.mxu0
        %5441 = vdwg.mxu0
        %vm5442 = vcmask 57344
        %5443 = vst.msk [vmem:[%s599] sm:$0x1] %vm5442, %v5439
        %5445 = vrot.lane.b32.xlu0 %v5439, 120
        %v5446 = vpop.permute.xlu0 %5445
        %5448 = vst.msk [vmem:[%s605] sm:$0x1] %vm5442, %v5446
        %s5449 = sand.u32 %s428, 1
        %s5450 = scalar_lea.sflag [#allocation7], %s5449
        %s5451 = sand.u32 %s428, 1
        %s5452 = scalar_lea.vmem [#allocation6], %s5451
        %s5453 = sand.u32 %s454, 1
        %s5454 = scalar_lea.sflag [#allocation9], %s5453
        %s5455 = sand.u32 %s454, 1
        %s5456 = scalar_lea.vmem [#allocation8], %s5455
        // Predicated region
        $region93: #{gmac_encoder_forward.1} parent=91 // pred_check
          %p5457 = pneg %p438
        $region94: #{gmac_encoder_forward.1} parent=91 // pred_check_branch
          %5459 = sbr.rel (%p5457) target = $region96
        $region95: #{gmac_encoder_forward.1} parent=91 // pred_region
          %5461 = vsyncadd %s5450, 0
          %s5462 = scalar_lea.hbm %s18, %s37
          %s5464 = sshll.u32 %s5452, 4
          %s5465 = int_to_ptr.vmem [resolvable:$true] %s5464
          %s5466 = sshll.u32 %s5462, 4
          %s5467 = int_to_ptr.hbm [resolvable:$true] %s5466
          %5469 = dma.vmem_to_hbm [thread:$0]  %s5465, 16, %s5467, %s5450
        $region96: #{gmac_encoder_forward.1} parent=91 // pred_fallthru
          _
        // Predicated region
        $region97: #{gmac_encoder_forward.1} parent=91 // pred_check
          %p5470 = pneg %p464
        $region98: #{gmac_encoder_forward.1} parent=91 // pred_check_branch
          %5472 = sbr.rel (%p5470) target = $region100
        $region99: #{gmac_encoder_forward.1} parent=91 // pred_region
          %5474 = vsyncadd %s5454, 0
          %s5475 = scalar_lea.hbm %s19, %s37
          %s5477 = sshll.u32 %s5456, 4
          %s5478 = int_to_ptr.vmem [resolvable:$true] %s5477
          %s5479 = sshll.u32 %s5475, 4
          %s5480 = int_to_ptr.hbm [resolvable:$true] %s5479
          %5482 = dma.vmem_to_hbm [thread:$0]  %s5478, 16, %s5480, %s5454
        $region100: #{gmac_encoder_forward.1} parent=91 // pred_fallthru
          _
      $region92: #{gmac_encoder_forward.1} parent=5 // pred_fallthru
        _
      %p5483 = scmp.le.s32.totalorder 2, %s32
      // Predicated region
      $region101: #{gmac_encoder_forward.1} parent=5 // pred_check
        %p5484 = pneg %p5483
      $region102: #{gmac_encoder_forward.1} parent=5 // pred_check_branch
        %5486 = sbr.rel (%p5484) target = $region104
      $region103: #{gmac_encoder_forward.1} parent=5 // pred_region
        %s5487 = ssub.s32 %s32, 2
        // Predicated region
        $region105: #{gmac_encoder_forward.1} parent=103 // pred_check
          %p5488 = pneg %p444
        $region106: #{gmac_encoder_forward.1} parent=103 // pred_check_branch
          %5490 = sbr.rel (%p5488) target = $region108
        $region107: #{gmac_encoder_forward.1} parent=103 // pred_region
          %s5491 = sand.u32 %s429, 1
          %s5492 = scalar_lea.sflag [#allocation7], %s5491
          %s5493 = sand.u32 %s429, 1
          %s5494 = scalar_lea.vmem [#allocation6], %s5493
          %5496 = dma.done %s5492, 16
        $region108: #{gmac_encoder_forward.1} parent=103 // pred_fallthru
          _
        // Predicated region
        $region109: #{gmac_encoder_forward.1} parent=103 // pred_check
          %p5497 = pneg %p470
        $region110: #{gmac_encoder_forward.1} parent=103 // pred_check_branch
          %5499 = sbr.rel (%p5497) target = $region112
        $region111: #{gmac_encoder_forward.1} parent=103 // pred_region
          %s5500 = sand.u32 %s455, 1
          %s5501 = scalar_lea.sflag [#allocation9], %s5500
          %s5502 = sand.u32 %s455, 1
          %s5503 = scalar_lea.vmem [#allocation8], %s5502
          %5505 = dma.done %s5501, 16
        $region112: #{gmac_encoder_forward.1} parent=103 // pred_fallthru
          _
      $region104: #{gmac_encoder_forward.1} parent=5 // pred_fallthru
        _
    $region6: #{gmac_encoder_forward.1} parent=1 // loop_footer
      %s36 = sadd.s32 1, %s32
    $region7: #{gmac_encoder_forward.1} parent=1 // loop_footer_branch
      %31 = sbr.rel target = $region3
    $region8: #{gmac_encoder_forward.1} parent=1 // loop_exit
      _
    %5506 = vsyncpa [#allocation7], 1
    %s5507 = scalar_lea.sflag [#allocation7], 1
    %5508 = vsyncpa %s5507, 1
    %5509 = vsyncpa [#allocation9], 1
    %s5510 = scalar_lea.sflag [#allocation9], 1
    %5511 = vsyncpa %s5510, 1

</llo_original>
